<compile_context>
chip_gen: v6e
topology: v6e:2x2x1
jax: 0.10.0
libtpu: 0.0.40
codegen_flags: <defaults>
</compile_context>

<pallas_src>
import jax
import jax.numpy as jnp
from jax.experimental import pallas as pl
from jax.experimental.pallas import tpu as pltpu

DIMS = [100, 2048, 512, 128, 32, 2]       # real layer widths (PyTorch module)
OUT_PAD = [2048, 512, 128, 128, 128]      # lane-padded output width per layer
NEG_INF = -1e30                           # bias pad for the padded class lanes


def _round_up(x, m):
    return (x + m - 1) // m * m


def _default_tb_target():
    """Batch-tile target from the chip's VMEM capacity: 1024 on 128-MiB chips
    (v5e/v6e), 512 on v7x's 64 MiB or if the query is unavailable."""
    try:
        if pltpu.get_tpu_info().vmem_capacity_bytes >= (96 << 20):
            return 1024
    except Exception:
        pass
    return 512


def _choose_tb(batch, tb_target):
    """Pick the batch tile: as large as the target, but never more than half
    the (rounded-up) batch so there are always >= 2 grid steps for v7x's two
    TensorCores; multiple of 8 always, multiple of 128 once big enough."""
    half = _round_up(pl.cdiv(batch, 2), 8)
    if half >= 128:
        half = _round_up(half, 128)
    return max(8, min(tb_target, half))


def mlp_kernel(x_ref,
               w1_ref, b1_ref,
               w2_ref, b2_ref,
               w3_ref, b3_ref,
               w4_ref, b4_ref,
               w5_ref, b5_ref,
               out_ref):
    """Whole MLP forward for one batch tile; all (padded, bf16) weights in VMEM."""
    # In-kernel cast: x arrives as raw (tb, 100) f32 straight from HBM.
    h = x_ref[...].astype(jnp.bfloat16)
    # 4 x (Linear + ReLU): bf16 MXU matmuls with f32 accumulation; bias add in
    # f32, ReLU in bf16 (2x elements per vreg op on bf16-capable VPUs).
    for w_ref, b_ref in ((w1_ref, b1_ref), (w2_ref, b2_ref),
                         (w3_ref, b3_ref), (w4_ref, b4_ref)):
        acc = jnp.dot(h, w_ref[...], preferred_element_type=jnp.float32)
        acc = acc + b_ref[...]
        h = jnp.maximum(acc.astype(jnp.bfloat16), 0)
    # Final Linear + Softmax. Padded class lanes carry a -1e30 bias -> exp()==0,
    # so softmax over the 128 padded lanes == softmax over the real 2 classes.
    logits = jnp.dot(h, w5_ref[...], preferred_element_type=jnp.float32) + b5_ref[...]
    m = jnp.max(logits, axis=-1, keepdims=True)
    e = jnp.exp(logits - m)
    inv = pl.reciprocal(jnp.sum(e, axis=-1, keepdims=True), approx=True)  # EUP slot
    out_ref[...] = (e * inv).astype(out_ref.dtype)


def init_params(key):
    """Deterministic PyTorch-style init: U(-1/sqrt(fan_in), 1/sqrt(fan_in)), f32."""
    params = []
    for i in range(len(DIMS) - 1):
        fan_in, fan_out = DIMS[i], DIMS[i + 1]
        key, kw, kb = jax.random.split(key, 3)
        bound = 1.0 / jnp.sqrt(float(fan_in))
        w = jax.random.uniform(kw, (fan_in, fan_out), jnp.float32, -bound, bound)
        b = jax.random.uniform(kb, (1, fan_out), jnp.float32, -bound, bound)
        params.append((w, b))
    return params


def pack_params(params):
    """Zero-pad each layer's output width to OUT_PAD and cast weights to bf16
    (biases stay f32).  Input widths: layer 0 keeps the raw 100 features (the
    kernel contracts over K=100 directly); later layers use the previous
    layer's padded width.  The last layer's padded bias lanes get NEG_INF so
    the in-kernel softmax ignores them; all other pads are zero (ReLU keeps
    padded lanes exactly 0)."""
    packed = []
    n = len(params)
    for i, (w, b) in enumerate(params):
        fi = DIMS[0] if i == 0 else OUT_PAD[i - 1]
        fo = OUT_PAD[i]
        wp = jnp.zeros((fi, fo), jnp.float32).at[:w.shape[0], :w.shape[1]].set(w)
        pad_val = NEG_INF if i == n - 1 else 0.0
        bp = jnp.full((1, fo), pad_val, jnp.float32).at[:, :b.shape[1]].set(b)
        packed.append((wp.astype(jnp.bfloat16), bp))
    return packed


def mlp_forward(x, params, tb_target=None):
    """x: (B, 100) f32 -> (B, 2) f32 softmax probabilities."""
    B, F = x.shape
    assert F == DIMS[0]

    if tb_target is None:
        tb_target = _default_tb_target()
    tb = _choose_tb(B, tb_target)
    grid = (pl.cdiv(B, tb),)   # partial last tile is handled by Pallas masking

    packed = pack_params(params)
    flat_params = []
    weight_specs = []
    for (w, b) in packed:
        flat_params.extend([w, b])
        # Full-array blocks, constant index_map -> weights stay resident and
        # are only DMA'd once (never re-fetched across grid steps).
        weight_specs.append(pl.BlockSpec(w.shape, lambda i: (0, 0)))
        weight_specs.append(pl.BlockSpec(b.shape, lambda i: (0, 0)))

    # x: full (un-padded) last dim in a single block -> no wrapper pad/cast pass.
    in_specs = [pl.BlockSpec((tb, F), lambda i: (i, 0))] + weight_specs
    out_spec = pl.BlockSpec((tb, OUT_PAD[-1]), lambda i: (i, 0))

    out_padded = pl.pallas_call(
        mlp_kernel,
        out_shape=jax.ShapeDtypeStruct((B, OUT_PAD[-1]), jnp.float32),
        grid_spec=pltpu.PrefetchScalarGridSpec(
            num_scalar_prefetch=0,
            grid=grid,
            in_specs=in_specs,
            out_specs=out_spec,
        ),
        compiler_params=pltpu.CompilerParams(
            # Batch tiles are independent -> shard across v7x's 2 TensorCores.
            dimension_semantics=("parallel",),
            # ~20 MB live at tb=1024 (8 MB f32 acc + 4 MB bf16 h + ~5.6 MB
            # double-buffered bf16 weights + I/O); 48 MiB leaves headroom on
            # v7x's 64 MiB physical VMEM and overrides v5e's 16 MiB default.
            vmem_limit_bytes=48 << 20,
        ),
    )(x, *flat_params)

    return out_padded[:, :DIMS[-1]]


def mlp_reference(x, params):
    """Pure-JAX reference mirroring the kernel's bf16-operand / f32-accumulate math."""
    h = x.astype(jnp.bfloat16)
    acc = None
    for i, (w, b) in enumerate(params):
        acc = jnp.dot(h, w.astype(jnp.bfloat16),
                      preferred_element_type=jnp.float32) + b
        if i < len(params) - 1:
            h = jnp.maximum(acc.astype(jnp.bfloat16), 0)
    return jax.nn.softmax(acc, axis=1)


if __name__ == "__main__":
    key = jax.random.PRNGKey(0)
    key, kx = jax.random.split(key)

    batch = 10  # small demo batch: exercises the partial last tile, the
                # >=2-grid-step guarantee (tb=8 -> 2 steps) and the class slice
    x = jax.random.normal(kx, (batch, DIMS[0]), jnp.float32)
    params = init_params(key)

    out = jax.block_until_ready(mlp_forward(x, params))
    ref = mlp_reference(x, params)

    assert out.shape == (batch, DIMS[-1])
    assert bool(jnp.all(jnp.isfinite(out)))
    # Tolerances account for the EUP approx-reciprocal used in the kernel softmax.
    assert jnp.allclose(jnp.sum(out, axis=1), 1.0, atol=5e-3), "softmax rows must sum to ~1"
    assert jnp.allclose(out, ref, atol=5e-3, rtol=5e-3), "mismatch vs JAX reference"

    print("KERNEL_OK")
</pallas_src>

<mosaic_0001>
module attributes {stable_mosaic.version = 11 : i64} {
  func.func @mlp_kernel(%arg0: i32, %arg1: memref<8x100xf32, #tpu.memory_space<vmem>>, %arg2: memref<100x2048xbf16, #tpu.memory_space<vmem>>, %arg3: memref<1x2048xf32, #tpu.memory_space<vmem>>, %arg4: memref<2048x512xbf16, #tpu.memory_space<vmem>>, %arg5: memref<1x512xf32, #tpu.memory_space<vmem>>, %arg6: memref<512x128xbf16, #tpu.memory_space<vmem>>, %arg7: memref<1x128xf32, #tpu.memory_space<vmem>>, %arg8: memref<128x128xbf16, #tpu.memory_space<vmem>>, %arg9: memref<1x128xf32, #tpu.memory_space<vmem>>, %arg10: memref<128x128xbf16, #tpu.memory_space<vmem>>, %arg11: memref<1x128xf32, #tpu.memory_space<vmem>>, %arg12: memref<8x128xf32, #tpu.memory_space<vmem>>) attributes {dimension_semantics = [#tpu.dimension_semantics<parallel>], iteration_bounds = array<i64: 2>, scalar_prefetch = 0 : i64, scratch_operands = 0 : i64, tpu.core_type = #tpu.core_type<tc>, window_params = [{transform_indices = @transform_0, window_bounds = array<i64: 8, 100>}, {pipeline_mode = #tpu.pipeline_mode<synchronous>, transform_indices = @transform_1, window_bounds = array<i64: 100, 2048>}, {pipeline_mode = #tpu.pipeline_mode<synchronous>, transform_indices = @transform_2, window_bounds = array<i64: 1, 2048>}, {pipeline_mode = #tpu.pipeline_mode<synchronous>, transform_indices = @transform_3, window_bounds = array<i64: 2048, 512>}, {pipeline_mode = #tpu.pipeline_mode<synchronous>, transform_indices = @transform_4, window_bounds = array<i64: 1, 512>}, {pipeline_mode = #tpu.pipeline_mode<synchronous>, transform_indices = @transform_5, window_bounds = array<i64: 512, 128>}, {pipeline_mode = #tpu.pipeline_mode<synchronous>, transform_indices = @transform_6, window_bounds = array<i64: 1, 128>}, {pipeline_mode = #tpu.pipeline_mode<synchronous>, transform_indices = @transform_7, window_bounds = array<i64: 128, 128>}, {pipeline_mode = #tpu.pipeline_mode<synchronous>, transform_indices = @transform_8, window_bounds = array<i64: 1, 128>}, {pipeline_mode = #tpu.pipeline_mode<synchronous>, transform_indices = @transform_9, window_bounds = array<i64: 128, 128>}, {pipeline_mode = #tpu.pipeline_mode<synchronous>, transform_indices = @transform_10, window_bounds = array<i64: 1, 128>}, {transform_indices = @transform_11, window_bounds = array<i64: 8, 128>}]} {
    %c0 = arith.constant 0 : index
    %c0_0 = arith.constant 0 : index
    %0 = vector.load %arg1[%c0, %c0_0] : memref<8x100xf32, #tpu.memory_space<vmem>>, vector<8x100xf32>
    %1 = arith.truncf %0 : vector<8x100xf32> to vector<8x100xbf16>
    %c0_1 = arith.constant 0 : index
    %c0_2 = arith.constant 0 : index
    %2 = vector.load %arg2[%c0_1, %c0_2] : memref<100x2048xbf16, #tpu.memory_space<vmem>>, vector<100x2048xbf16>
    %cst = arith.constant dense<0.000000e+00> : vector<8x2048xf32>
    %3 = tpu.matmul %1, %2, %cst {dimension_numbers = #tpu.dot_dimension_numbers<[1], [0], [0], [1], [0, 0, 1, 1], [], []>} : vector<8x100xbf16>, vector<100x2048xbf16>, vector<8x2048xf32> -> vector<8x2048xf32>
    %c0_3 = arith.constant 0 : index
    %c0_4 = arith.constant 0 : index
    %4 = vector.load %arg3[%c0_3, %c0_4] : memref<1x2048xf32, #tpu.memory_space<vmem>>, vector<1x2048xf32>
    %5 = vector.broadcast %4 : vector<1x2048xf32> to vector<8x2048xf32>
    %6 = arith.addf %3, %5 : vector<8x2048xf32>
    %7 = arith.truncf %6 : vector<8x2048xf32> to vector<8x2048xbf16>
    %cst_5 = arith.constant 0.000000e+00 : bf16
    %8 = vector.broadcast %cst_5 : bf16 to vector<8x2048xbf16>
    %9 = arith.maximumf %7, %8 : vector<8x2048xbf16>
    %c0_6 = arith.constant 0 : index
    %c0_7 = arith.constant 0 : index
    %10 = vector.load %arg4[%c0_6, %c0_7] : memref<2048x512xbf16, #tpu.memory_space<vmem>>, vector<2048x512xbf16>
    %cst_8 = arith.constant dense<0.000000e+00> : vector<8x512xf32>
    %11 = tpu.matmul %9, %10, %cst_8 {dimension_numbers = #tpu.dot_dimension_numbers<[1], [0], [0], [1], [0, 0, 1, 1], [], []>} : vector<8x2048xbf16>, vector<2048x512xbf16>, vector<8x512xf32> -> vector<8x512xf32>
    %c0_9 = arith.constant 0 : index
    %c0_10 = arith.constant 0 : index
    %12 = vector.load %arg5[%c0_9, %c0_10] : memref<1x512xf32, #tpu.memory_space<vmem>>, vector<1x512xf32>
    %13 = vector.broadcast %12 : vector<1x512xf32> to vector<8x512xf32>
    %14 = arith.addf %11, %13 : vector<8x512xf32>
    %15 = arith.truncf %14 : vector<8x512xf32> to vector<8x512xbf16>
    %cst_11 = arith.constant 0.000000e+00 : bf16
    %16 = vector.broadcast %cst_11 : bf16 to vector<8x512xbf16>
    %17 = arith.maximumf %15, %16 : vector<8x512xbf16>
    %c0_12 = arith.constant 0 : index
    %c0_13 = arith.constant 0 : index
    %18 = vector.load %arg6[%c0_12, %c0_13] : memref<512x128xbf16, #tpu.memory_space<vmem>>, vector<512x128xbf16>
    %cst_14 = arith.constant dense<0.000000e+00> : vector<8x128xf32>
    %19 = tpu.matmul %17, %18, %cst_14 {dimension_numbers = #tpu.dot_dimension_numbers<[1], [0], [0], [1], [0, 0, 1, 1], [], []>} : vector<8x512xbf16>, vector<512x128xbf16>, vector<8x128xf32> -> vector<8x128xf32>
    %c0_15 = arith.constant 0 : index
    %c0_16 = arith.constant 0 : index
    %20 = vector.load %arg7[%c0_15, %c0_16] : memref<1x128xf32, #tpu.memory_space<vmem>>, vector<1x128xf32>
    %21 = vector.broadcast %20 : vector<1x128xf32> to vector<8x128xf32>
    %22 = arith.addf %19, %21 : vector<8x128xf32>
    %23 = arith.truncf %22 : vector<8x128xf32> to vector<8x128xbf16>
    %cst_17 = arith.constant 0.000000e+00 : bf16
    %24 = vector.broadcast %cst_17 : bf16 to vector<8x128xbf16>
    %25 = arith.maximumf %23, %24 : vector<8x128xbf16>
    %c0_18 = arith.constant 0 : index
    %c0_19 = arith.constant 0 : index
    %26 = vector.load %arg8[%c0_18, %c0_19] : memref<128x128xbf16, #tpu.memory_space<vmem>>, vector<128x128xbf16>
    %cst_20 = arith.constant dense<0.000000e+00> : vector<8x128xf32>
    %27 = tpu.matmul %25, %26, %cst_20 {dimension_numbers = #tpu.dot_dimension_numbers<[1], [0], [0], [1], [0, 0, 1, 1], [], []>} : vector<8x128xbf16>, vector<128x128xbf16>, vector<8x128xf32> -> vector<8x128xf32>
    %c0_21 = arith.constant 0 : index
    %c0_22 = arith.constant 0 : index
    %28 = vector.load %arg9[%c0_21, %c0_22] : memref<1x128xf32, #tpu.memory_space<vmem>>, vector<1x128xf32>
    %29 = vector.broadcast %28 : vector<1x128xf32> to vector<8x128xf32>
    %30 = arith.addf %27, %29 : vector<8x128xf32>
    %31 = arith.truncf %30 : vector<8x128xf32> to vector<8x128xbf16>
    %cst_23 = arith.constant 0.000000e+00 : bf16
    %32 = vector.broadcast %cst_23 : bf16 to vector<8x128xbf16>
    %33 = arith.maximumf %31, %32 : vector<8x128xbf16>
    %c0_24 = arith.constant 0 : index
    %c0_25 = arith.constant 0 : index
    %34 = vector.load %arg10[%c0_24, %c0_25] : memref<128x128xbf16, #tpu.memory_space<vmem>>, vector<128x128xbf16>
    %cst_26 = arith.constant dense<0.000000e+00> : vector<8x128xf32>
    %35 = tpu.matmul %33, %34, %cst_26 {dimension_numbers = #tpu.dot_dimension_numbers<[1], [0], [0], [1], [0, 0, 1, 1], [], []>} : vector<8x128xbf16>, vector<128x128xbf16>, vector<8x128xf32> -> vector<8x128xf32>
    %c0_27 = arith.constant 0 : index
    %c0_28 = arith.constant 0 : index
    %36 = vector.load %arg11[%c0_27, %c0_28] : memref<1x128xf32, #tpu.memory_space<vmem>>, vector<1x128xf32>
    %37 = vector.broadcast %36 : vector<1x128xf32> to vector<8x128xf32>
    %38 = arith.addf %35, %37 : vector<8x128xf32>
    %cst_29 = arith.constant dense<0xFF800000> : vector<8xf32>
    %39 = vector.multi_reduction <maximumf>, %38, %cst_29 [1] : vector<8x128xf32> to vector<8xf32>
    %40 = vector.shape_cast %39 : vector<8xf32> to vector<8x1xf32>
    %41 = vector.broadcast %40 : vector<8x1xf32> to vector<8x128xf32>
    %42 = arith.subf %38, %41 : vector<8x128xf32>
    %43 = math.exp %42 : vector<8x128xf32>
    %cst_30 = arith.constant dense<0.000000e+00> : vector<8xf32>
    %44 = vector.multi_reduction <add>, %43, %cst_30 [1] : vector<8x128xf32> to vector<8xf32>
    %45 = vector.shape_cast %44 : vector<8xf32> to vector<8x1xf32>
    %46 = tpu.reciprocal %45 {approx = true} : vector<8x1xf32> -> vector<8x1xf32>
    %47 = vector.broadcast %46 : vector<8x1xf32> to vector<8x128xf32>
    %48 = arith.mulf %43, %47 : vector<8x128xf32>
    %c0_31 = arith.constant 0 : index
    %c0_32 = arith.constant 0 : index
    %49 = vector.load %arg12[%c0_31, %c0_32] : memref<8x128xf32, #tpu.memory_space<vmem>>, vector<8x128xf32>
    tpu.vector_store %arg12[%c0_31, %c0_32], %48 {strides = array<i32>} : memref<8x128xf32, #tpu.memory_space<vmem>>, vector<8x128xf32>,
    return
  }
  func.func @transform_0(%arg0: i32) -> (i32, i32) {
    %c0_i32 = arith.constant 0 : i32
    %c0_i32_0 = arith.constant 0 : i32
    return %arg0, %c0_i32 : i32, i32
  }
  func.func @transform_1(%arg0: i32) -> (i32, i32) {
    %c0_i32 = arith.constant 0 : i32
    %c0_i32_0 = arith.constant 0 : i32
    %c0_i32_1 = arith.constant 0 : i32
    return %c0_i32, %c0_i32_0 : i32, i32
  }
  func.func @transform_2(%arg0: i32) -> (i32, i32) {
    %c0_i32 = arith.constant 0 : i32
    %c0_i32_0 = arith.constant 0 : i32
    %c0_i32_1 = arith.constant 0 : i32
    return %c0_i32, %c0_i32_0 : i32, i32
  }
  func.func @transform_3(%arg0: i32) -> (i32, i32) {
    %c0_i32 = arith.constant 0 : i32
    %c0_i32_0 = arith.constant 0 : i32
    %c0_i32_1 = arith.constant 0 : i32
    return %c0_i32, %c0_i32_0 : i32, i32
  }
  func.func @transform_4(%arg0: i32) -> (i32, i32) {
    %c0_i32 = arith.constant 0 : i32
    %c0_i32_0 = arith.constant 0 : i32
    %c0_i32_1 = arith.constant 0 : i32
    return %c0_i32, %c0_i32_0 : i32, i32
  }
  func.func @transform_5(%arg0: i32) -> (i32, i32) {
    %c0_i32 = arith.constant 0 : i32
    %c0_i32_0 = arith.constant 0 : i32
    %c0_i32_1 = arith.constant 0 : i32
    return %c0_i32, %c0_i32_0 : i32, i32
  }
  func.func @transform_6(%arg0: i32) -> (i32, i32) {
    %c0_i32 = arith.constant 0 : i32
    %c0_i32_0 = arith.constant 0 : i32
    %c0_i32_1 = arith.constant 0 : i32
    return %c0_i32, %c0_i32_0 : i32, i32
  }
  func.func @transform_7(%arg0: i32) -> (i32, i32) {
    %c0_i32 = arith.constant 0 : i32
    %c0_i32_0 = arith.constant 0 : i32
    %c0_i32_1 = arith.constant 0 : i32
    return %c0_i32, %c0_i32_0 : i32, i32
  }
  func.func @transform_8(%arg0: i32) -> (i32, i32) {
    %c0_i32 = arith.constant 0 : i32
    %c0_i32_0 = arith.constant 0 : i32
    %c0_i32_1 = arith.constant 0 : i32
    return %c0_i32, %c0_i32_0 : i32, i32
  }
  func.func @transform_9(%arg0: i32) -> (i32, i32) {
    %c0_i32 = arith.constant 0 : i32
    %c0_i32_0 = arith.constant 0 : i32
    %c0_i32_1 = arith.constant 0 : i32
    return %c0_i32, %c0_i32_0 : i32, i32
  }
  func.func @transform_10(%arg0: i32) -> (i32, i32) {
    %c0_i32 = arith.constant 0 : i32
    %c0_i32_0 = arith.constant 0 : i32
    %c0_i32_1 = arith.constant 0 : i32
    return %c0_i32, %c0_i32_0 : i32, i32
  }
  func.func @transform_11(%arg0: i32) -> (i32, i32) {
    %c0_i32 = arith.constant 0 : i32
    %c0_i32_0 = arith.constant 0 : i32
    return %arg0, %c0_i32 : i32, i32
  }
}

</mosaic_0001>

<llo_original>
// kernel: tpu_custom_call.1
$region0: #{tpu_custom_call.1}
  #allocation0 [shape = 'u32[]', space=smem, size = 0x4, offset = 0x4, fixed_abs, tag = 'smem constant byte address 0x4 - core index']
  #allocation1 [shape = 'u32[144,128]{1,0:T(1,128)}', space=vmem, size = 0x12000, scoped, tag = 'internal scratch']
  %s0 = inlined_call_operand.hbm [shape: f32[10,100], index: 0, kind: input, shape index: {}]
  %s1 = inlined_call_operand.hbm [shape: bf16[100,2048], index: 1, kind: input, shape index: {}]
  %s2 = inlined_call_operand.hbm [shape: f32[1,2048], index: 2, kind: input, shape index: {}]
  %s3 = inlined_call_operand.hbm [shape: bf16[2048,512], index: 3, kind: input, shape index: {}]
  %s4 = inlined_call_operand.hbm [shape: f32[1,512], index: 4, kind: input, shape index: {}]
  %s5 = inlined_call_operand.hbm [shape: bf16[512,128], index: 5, kind: input, shape index: {}]
  %s6 = inlined_call_operand.hbm [shape: f32[1,128], index: 6, kind: input, shape index: {}]
  %s7 = inlined_call_operand.hbm [shape: bf16[128,128], index: 7, kind: input, shape index: {}]
  %s8 = inlined_call_operand.hbm [shape: f32[1,128], index: 8, kind: input, shape index: {}]
  %s9 = inlined_call_operand.hbm [shape: bf16[128,128], index: 9, kind: input, shape index: {}]
  %s10 = inlined_call_operand.hbm [shape: f32[1,128], index: 10, kind: input, shape index: {}]
  %s11 = inlined_call_operand.hbm [shape: f32[10,128], index: 11, kind: output, shape index: {}]
  %s12 = sld [smem:[#allocation0]]
  $region121: #{tpu_custom_call.1} parent=0
    _
  %s14 = ssub.s32 1, %s12
  %s15 = scalar_select 0, %s14, %s12
  $region1: #{tpu_custom_call.1} parent=0
    #allocation2 [shape = 'u8[8192]{0}', space=vmem, size = 0x2000, scoped, tag = 'input window, operand 0']
    #allocation3 [shape = 's32[2]{0}', space=sflag, size = 0x8, scoped, tag = 'scoped memory for tpu_custom_call.1']
    #allocation4 [shape = 's32[2]{0}', space=sflag, size = 0x8, scoped, tag = 'scoped memory for tpu_custom_call.1']
    #allocation5 [shape = 'u8[425984]{0}', space=vmem, size = 0x68000, scoped, tag = 'input window, operand 1, single buffered']
    #allocation6 [shape = 's32[1]{0}', space=sflag, size = 0x4, scoped, tag = 'scoped memory for tpu_custom_call.1']
    #allocation7 [shape = 'u8[8192]{0}', space=vmem, size = 0x2000, scoped, tag = 'input window, operand 2, single buffered']
    #allocation8 [shape = 'u8[2097152]{0}', space=vmem, size = 0x200000, scoped, tag = 'input window, operand 3, single buffered']
    #allocation9 [shape = 's32[1]{0}', space=sflag, size = 0x4, scoped, tag = 'scoped memory for tpu_custom_call.1']
    #allocation10 [shape = 'u8[2048]{0}', space=vmem, size = 0x800, scoped, tag = 'input window, operand 4, single buffered']
    #allocation11 [shape = 'u8[131072]{0}', space=vmem, size = 0x20000, scoped, tag = 'input window, operand 5, single buffered']
    #allocation12 [shape = 's32[1]{0}', space=sflag, size = 0x4, scoped, tag = 'scoped memory for tpu_custom_call.1']
    #allocation13 [shape = 'u8[512]{0}', space=vmem, size = 0x400, scoped, tag = 'input window, operand 6, single buffered']
    #allocation14 [shape = 'u8[32768]{0}', space=vmem, size = 0x8000, scoped, tag = 'input window, operand 7, single buffered']
    #allocation15 [shape = 's32[1]{0}', space=sflag, size = 0x4, scoped, tag = 'scoped memory for tpu_custom_call.1']
    #allocation16 [shape = 'u8[512]{0}', space=vmem, size = 0x400, scoped, tag = 'input window, operand 8, single buffered']
    #allocation17 [shape = 'u8[32768]{0}', space=vmem, size = 0x8000, scoped, tag = 'input window, operand 9, single buffered']
    #allocation18 [shape = 's32[1]{0}', space=sflag, size = 0x4, scoped, tag = 'scoped memory for tpu_custom_call.1']
    #allocation19 [shape = 'u8[512]{0}', space=vmem, size = 0x400, scoped, tag = 'input window, operand 10, single buffered']
    #allocation20 [shape = 'u8[8192]{0}', space=vmem, size = 0x2000, scoped, tag = 'output window, operand 0']
    %16 = vsyncpa [#allocation3], 0
    %s17 = scalar_lea.sflag [#allocation3], 1
    %18 = vsyncpa %s17, 0
    %19 = vsyncpa [#allocation6], 0
    %20 = vsyncpa [#allocation9], 0
    %21 = vsyncpa [#allocation12], 0
    %22 = vsyncpa [#allocation15], 0
    %23 = vsyncpa [#allocation18], 0
    %24 = vsyncpa [#allocation4], 0
    %s25 = scalar_lea.sflag [#allocation4], 1
    %26 = vsyncpa %s25, 0
    loop: start=0, step=1, limit=4
    $region2: #{tpu_custom_call.1} parent=1 // loop_pre_header
      _
    $region3: #{tpu_custom_call.1} parent=1 // loop_header
      %s28 = sphi 0, %s32
      %p29 = scmp.ge.s32.totalorder %s28, 4
      %s38 = sphi 0, %s40
      %s41 = sphi 0, %s38
      %s42 = sphi 0, %s41
      %s58 = sphi 0, %s42
      %s62 = sphi 0, %s62
      %s64 = sphi 0, %s62
      %s65 = sphi 0, %s64
      %s79 = sphi 0, %s65
      %s83 = sphi 0, %s83
      %s85 = sphi 0, %s83
      %s86 = sphi 0, %s85
      %s100 = sphi 0, %s86
      %s104 = sphi 0, %s104
      %s106 = sphi 0, %s104
      %s107 = sphi 0, %s106
      %s121 = sphi 0, %s107
      %s125 = sphi 0, %s125
      %s127 = sphi 0, %s125
      %s128 = sphi 0, %s127
      %s142 = sphi 0, %s128
      %s146 = sphi 0, %s146
      %s148 = sphi 0, %s146
      %s149 = sphi 0, %s148
      %s163 = sphi 0, %s149
      %s167 = sphi 0, %s167
      %s169 = sphi 0, %s167
      %s170 = sphi 0, %s169
      %s184 = sphi 0, %s170
      %s188 = sphi 0, %s188
      %s190 = sphi 0, %s188
      %s191 = sphi 0, %s190
      %s205 = sphi 0, %s191
      %s209 = sphi 0, %s209
      %s211 = sphi 0, %s209
      %s212 = sphi 0, %s211
      %s226 = sphi 0, %s212
      %s230 = sphi 0, %s230
      %s232 = sphi 0, %s230
      %s233 = sphi 0, %s232
      %s247 = sphi 0, %s233
      %s251 = sphi 0, %s251
      %s253 = sphi 0, %s251
      %s254 = sphi 0, %s253
      %s268 = sphi 0, %s254
      %s274 = sphi 0, %s276
      %s277 = sphi 0, %s274
      %s278 = sphi 0, %s277
      %s294 = sphi 0, %s278
    $region4: #{tpu_custom_call.1} parent=1 // loop_header_branch
      %31 = sbr.rel (%p29) target = $region8
    $region5: #{tpu_custom_call.1} parent=1 // loop_body
      %s33 = ssub.s32 %s28, 1
      %s34 = ssub.s32 %s28, 2
      %s35 = sadd.s32 %s28, 1
      %s36 = ssub.s32 %s28, %s35
      %p37 = scmp.eq.s32.totalorder %s36, 0
      %s39 = sadd.s32 %s38, 1
      %s40 = scalar_select %p37, %s38, %s39
      %p43 = pneg %p37
      %p44 = scmp.eq.s32.totalorder %s28, 1
      %p45 = por %p43, %p44
      %p46 = scmp.ne.s32.totalorder %s38, %s41
      %p47 = scmp.eq.s32.totalorder %s28, 0
      %p48 = por %p46, %p47
      %p49 = scmp.ne.s32.totalorder %s38, %s41
      %p50 = scmp.eq.s32.totalorder %s33, 1
      %p51 = por %p49, %p50
      %p52 = scmp.ne.s32.totalorder %s41, %s42
      %p53 = scmp.eq.s32.totalorder %s33, 0
      %p54 = por %p52, %p53
      %p55 = scmp.ne.s32.totalorder %s41, %s42
      %p56 = scmp.eq.s32.totalorder %s34, 1
      %p57 = por %p55, %p56
      %p59 = scmp.ne.s32.totalorder %s42, %s58
      %p60 = scmp.eq.s32.totalorder %s34, 0
      %p61 = por %p59, %p60
      %s63 = sadd.s32 %s62, 1
      %p66 = scmp.eq.s32.totalorder %s28, 1
      %p67 = scmp.ne.s32.totalorder %s62, %s64
      %p68 = scmp.eq.s32.totalorder %s28, 0
      %p69 = por %p67, %p68
      %p70 = scmp.ne.s32.totalorder %s62, %s64
      %p71 = scmp.eq.s32.totalorder %s33, 1
      %p72 = por %p70, %p71
      %p73 = scmp.ne.s32.totalorder %s64, %s65
      %p74 = scmp.eq.s32.totalorder %s33, 0
      %p75 = por %p73, %p74
      %p76 = scmp.ne.s32.totalorder %s64, %s65
      %p77 = scmp.eq.s32.totalorder %s34, 1
      %p78 = por %p76, %p77
      %p80 = scmp.ne.s32.totalorder %s65, %s79
      %p81 = scmp.eq.s32.totalorder %s34, 0
      %p82 = por %p80, %p81
      %s84 = sadd.s32 %s83, 1
      %p87 = scmp.eq.s32.totalorder %s28, 1
      %p88 = scmp.ne.s32.totalorder %s83, %s85
      %p89 = scmp.eq.s32.totalorder %s28, 0
      %p90 = por %p88, %p89
      %p91 = scmp.ne.s32.totalorder %s83, %s85
      %p92 = scmp.eq.s32.totalorder %s33, 1
      %p93 = por %p91, %p92
      %p94 = scmp.ne.s32.totalorder %s85, %s86
      %p95 = scmp.eq.s32.totalorder %s33, 0
      %p96 = por %p94, %p95
      %p97 = scmp.ne.s32.totalorder %s85, %s86
      %p98 = scmp.eq.s32.totalorder %s34, 1
      %p99 = por %p97, %p98
      %p101 = scmp.ne.s32.totalorder %s86, %s100
      %p102 = scmp.eq.s32.totalorder %s34, 0
      %p103 = por %p101, %p102
      %s105 = sadd.s32 %s104, 1
      %p108 = scmp.eq.s32.totalorder %s28, 1
      %p109 = scmp.ne.s32.totalorder %s104, %s106
      %p110 = scmp.eq.s32.totalorder %s28, 0
      %p111 = por %p109, %p110
      %p112 = scmp.ne.s32.totalorder %s104, %s106
      %p113 = scmp.eq.s32.totalorder %s33, 1
      %p114 = por %p112, %p113
      %p115 = scmp.ne.s32.totalorder %s106, %s107
      %p116 = scmp.eq.s32.totalorder %s33, 0
      %p117 = por %p115, %p116
      %p118 = scmp.ne.s32.totalorder %s106, %s107
      %p119 = scmp.eq.s32.totalorder %s34, 1
      %p120 = por %p118, %p119
      %p122 = scmp.ne.s32.totalorder %s107, %s121
      %p123 = scmp.eq.s32.totalorder %s34, 0
      %p124 = por %p122, %p123
      %s126 = sadd.s32 %s125, 1
      %p129 = scmp.eq.s32.totalorder %s28, 1
      %p130 = scmp.ne.s32.totalorder %s125, %s127
      %p131 = scmp.eq.s32.totalorder %s28, 0
      %p132 = por %p130, %p131
      %p133 = scmp.ne.s32.totalorder %s125, %s127
      %p134 = scmp.eq.s32.totalorder %s33, 1
      %p135 = por %p133, %p134
      %p136 = scmp.ne.s32.totalorder %s127, %s128
      %p137 = scmp.eq.s32.totalorder %s33, 0
      %p138 = por %p136, %p137
      %p139 = scmp.ne.s32.totalorder %s127, %s128
      %p140 = scmp.eq.s32.totalorder %s34, 1
      %p141 = por %p139, %p140
      %p143 = scmp.ne.s32.totalorder %s128, %s142
      %p144 = scmp.eq.s32.totalorder %s34, 0
      %p145 = por %p143, %p144
      %s147 = sadd.s32 %s146, 1
      %p150 = scmp.eq.s32.totalorder %s28, 1
      %p151 = scmp.ne.s32.totalorder %s146, %s148
      %p152 = scmp.eq.s32.totalorder %s28, 0
      %p153 = por %p151, %p152
      %p154 = scmp.ne.s32.totalorder %s146, %s148
      %p155 = scmp.eq.s32.totalorder %s33, 1
      %p156 = por %p154, %p155
      %p157 = scmp.ne.s32.totalorder %s148, %s149
      %p158 = scmp.eq.s32.totalorder %s33, 0
      %p159 = por %p157, %p158
      %p160 = scmp.ne.s32.totalorder %s148, %s149
      %p161 = scmp.eq.s32.totalorder %s34, 1
      %p162 = por %p160, %p161
      %p164 = scmp.ne.s32.totalorder %s149, %s163
      %p165 = scmp.eq.s32.totalorder %s34, 0
      %p166 = por %p164, %p165
      %s168 = sadd.s32 %s167, 1
      %p171 = scmp.eq.s32.totalorder %s28, 1
      %p172 = scmp.ne.s32.totalorder %s167, %s169
      %p173 = scmp.eq.s32.totalorder %s28, 0
      %p174 = por %p172, %p173
      %p175 = scmp.ne.s32.totalorder %s167, %s169
      %p176 = scmp.eq.s32.totalorder %s33, 1
      %p177 = por %p175, %p176
      %p178 = scmp.ne.s32.totalorder %s169, %s170
      %p179 = scmp.eq.s32.totalorder %s33, 0
      %p180 = por %p178, %p179
      %p181 = scmp.ne.s32.totalorder %s169, %s170
      %p182 = scmp.eq.s32.totalorder %s34, 1
      %p183 = por %p181, %p182
      %p185 = scmp.ne.s32.totalorder %s170, %s184
      %p186 = scmp.eq.s32.totalorder %s34, 0
      %p187 = por %p185, %p186
      %s189 = sadd.s32 %s188, 1
      %p192 = scmp.eq.s32.totalorder %s28, 1
      %p193 = scmp.ne.s32.totalorder %s188, %s190
      %p194 = scmp.eq.s32.totalorder %s28, 0
      %p195 = por %p193, %p194
      %p196 = scmp.ne.s32.totalorder %s188, %s190
      %p197 = scmp.eq.s32.totalorder %s33, 1
      %p198 = por %p196, %p197
      %p199 = scmp.ne.s32.totalorder %s190, %s191
      %p200 = scmp.eq.s32.totalorder %s33, 0
      %p201 = por %p199, %p200
      %p202 = scmp.ne.s32.totalorder %s190, %s191
      %p203 = scmp.eq.s32.totalorder %s34, 1
      %p204 = por %p202, %p203
      %p206 = scmp.ne.s32.totalorder %s191, %s205
      %p207 = scmp.eq.s32.totalorder %s34, 0
      %p208 = por %p206, %p207
      %s210 = sadd.s32 %s209, 1
      %p213 = scmp.eq.s32.totalorder %s28, 1
      %p214 = scmp.ne.s32.totalorder %s209, %s211
      %p215 = scmp.eq.s32.totalorder %s28, 0
      %p216 = por %p214, %p215
      %p217 = scmp.ne.s32.totalorder %s209, %s211
      %p218 = scmp.eq.s32.totalorder %s33, 1
      %p219 = por %p217, %p218
      %p220 = scmp.ne.s32.totalorder %s211, %s212
      %p221 = scmp.eq.s32.totalorder %s33, 0
      %p222 = por %p220, %p221
      %p223 = scmp.ne.s32.totalorder %s211, %s212
      %p224 = scmp.eq.s32.totalorder %s34, 1
      %p225 = por %p223, %p224
      %p227 = scmp.ne.s32.totalorder %s212, %s226
      %p228 = scmp.eq.s32.totalorder %s34, 0
      %p229 = por %p227, %p228
      %s231 = sadd.s32 %s230, 1
      %p234 = scmp.eq.s32.totalorder %s28, 1
      %p235 = scmp.ne.s32.totalorder %s230, %s232
      %p236 = scmp.eq.s32.totalorder %s28, 0
      %p237 = por %p235, %p236
      %p238 = scmp.ne.s32.totalorder %s230, %s232
      %p239 = scmp.eq.s32.totalorder %s33, 1
      %p240 = por %p238, %p239
      %p241 = scmp.ne.s32.totalorder %s232, %s233
      %p242 = scmp.eq.s32.totalorder %s33, 0
      %p243 = por %p241, %p242
      %p244 = scmp.ne.s32.totalorder %s232, %s233
      %p245 = scmp.eq.s32.totalorder %s34, 1
      %p246 = por %p244, %p245
      %p248 = scmp.ne.s32.totalorder %s233, %s247
      %p249 = scmp.eq.s32.totalorder %s34, 0
      %p250 = por %p248, %p249
      %s252 = sadd.s32 %s251, 1
      %p255 = scmp.eq.s32.totalorder %s28, 1
      %p256 = scmp.ne.s32.totalorder %s251, %s253
      %p257 = scmp.eq.s32.totalorder %s28, 0
      %p258 = por %p256, %p257
      %p259 = scmp.ne.s32.totalorder %s251, %s253
      %p260 = scmp.eq.s32.totalorder %s33, 1
      %p261 = por %p259, %p260
      %p262 = scmp.ne.s32.totalorder %s253, %s254
      %p263 = scmp.eq.s32.totalorder %s33, 0
      %p264 = por %p262, %p263
      %p265 = scmp.ne.s32.totalorder %s253, %s254
      %p266 = scmp.eq.s32.totalorder %s34, 1
      %p267 = por %p265, %p266
      %p269 = scmp.ne.s32.totalorder %s254, %s268
      %p270 = scmp.eq.s32.totalorder %s34, 0
      %p271 = por %p269, %p270
      %s272 = ssub.s32 %s28, %s35
      %p273 = scmp.eq.s32.totalorder %s272, 0
      %s275 = sadd.s32 %s274, 1
      %s276 = scalar_select %p273, %s274, %s275
      %p279 = pneg %p273
      %p280 = scmp.eq.s32.totalorder %s28, 1
      %p281 = por %p279, %p280
      %p282 = scmp.ne.s32.totalorder %s274, %s277
      %p283 = scmp.eq.s32.totalorder %s28, 0
      %p284 = por %p282, %p283
      %p285 = scmp.ne.s32.totalorder %s274, %s277
      %p286 = scmp.eq.s32.totalorder %s33, 1
      %p287 = por %p285, %p286
      %p288 = scmp.ne.s32.totalorder %s277, %s278
      %p289 = scmp.eq.s32.totalorder %s33, 0
      %p290 = por %p288, %p289
      %p291 = scmp.ne.s32.totalorder %s277, %s278
      %p292 = scmp.eq.s32.totalorder %s34, 1
      %p293 = por %p291, %p292
      %p295 = scmp.ne.s32.totalorder %s278, %s294
      %p296 = scmp.eq.s32.totalorder %s34, 0
      %p297 = por %p295, %p296
      %p298 = scmp.le.s32.totalorder 1, %s28
      %p299 = scmp.lt.s32.totalorder %s28, 3
      %p300 = pnand %p298, %p299
      %p301 = pneg %p300
      // Predicated region
      $region9: #{tpu_custom_call.1} parent=5 // pred_check
        _
      $region10: #{tpu_custom_call.1} parent=5 // pred_check_branch
        %303 = sbr.rel (%p300) target = $region12
      $region11: #{tpu_custom_call.1} parent=5 // pred_region
        %s304 = ssub.s32 %s28, 1
        // Predicated region
        $region13: #{tpu_custom_call.1} parent=11 // pred_check
          %p305 = pneg %p75
        $region14: #{tpu_custom_call.1} parent=11 // pred_check_branch
          %307 = sbr.rel (%p305) target = $region16
        $region15: #{tpu_custom_call.1} parent=11 // pred_region
          %s309 = ssub.s32 13312, 13312
          %310 = vsyncadd [#allocation6], %s309
          %s311 = sshll.u32 [#allocation5], 4
          %s312 = int_to_ptr.vmem [resolvable:$true] %s311
          %317 = dma.hbm_to_vmem [thread:$0]  %s1, 13312, %s312, [#allocation6], 1024, 1024, 64
        $region16: #{tpu_custom_call.1} parent=11 // pred_fallthru
          _
        // Predicated region
        $region17: #{tpu_custom_call.1} parent=11 // pred_check
          %p318 = pneg %p96
        $region18: #{tpu_custom_call.1} parent=11 // pred_check_branch
          %320 = sbr.rel (%p318) target = $region20
        $region19: #{tpu_custom_call.1} parent=11 // pred_region
          %s322 = ssub.s32 256, 256
          %323 = vsyncadd [#allocation6], %s322
          %s325 = sshll.u32 [#allocation7], 4
          %s326 = int_to_ptr.vmem [resolvable:$true] %s325
          %328 = dma.hbm_to_vmem [thread:$0]  %s2, 256, %s326, [#allocation6]
        $region20: #{tpu_custom_call.1} parent=11 // pred_fallthru
          _
        // Predicated region
        $region21: #{tpu_custom_call.1} parent=11 // pred_check
          %p329 = pneg %p117
        $region22: #{tpu_custom_call.1} parent=11 // pred_check_branch
          %331 = sbr.rel (%p329) target = $region24
        $region23: #{tpu_custom_call.1} parent=11 // pred_region
          %s333 = ssub.s32 65536, 65536
          %334 = vsyncadd [#allocation9], %s333
          %s335 = sshll.u32 [#allocation8], 4
          %s336 = int_to_ptr.vmem [resolvable:$true] %s335
          %341 = dma.hbm_to_vmem [thread:$0]  %s3, 65536, %s336, [#allocation9], 256, 256, 16
        $region24: #{tpu_custom_call.1} parent=11 // pred_fallthru
          _
        // Predicated region
        $region25: #{tpu_custom_call.1} parent=11 // pred_check
          %p342 = pneg %p138
        $region26: #{tpu_custom_call.1} parent=11 // pred_check_branch
          %344 = sbr.rel (%p342) target = $region28
        $region27: #{tpu_custom_call.1} parent=11 // pred_region
          %s346 = ssub.s32 64, 64
          %347 = vsyncadd [#allocation9], %s346
          %s349 = sshll.u32 [#allocation10], 4
          %s350 = int_to_ptr.vmem [resolvable:$true] %s349
          %352 = dma.hbm_to_vmem [thread:$0]  %s4, 64, %s350, [#allocation9]
        $region28: #{tpu_custom_call.1} parent=11 // pred_fallthru
          _
        // Predicated region
        $region29: #{tpu_custom_call.1} parent=11 // pred_check
          %p353 = pneg %p159
        $region30: #{tpu_custom_call.1} parent=11 // pred_check_branch
          %355 = sbr.rel (%p353) target = $region32
        $region31: #{tpu_custom_call.1} parent=11 // pred_region
          %s357 = ssub.s32 4096, 4096
          %358 = vsyncadd [#allocation12], %s357
          %s359 = sshll.u32 [#allocation11], 4
          %s360 = int_to_ptr.vmem [resolvable:$true] %s359
          %365 = dma.hbm_to_vmem [thread:$0]  %s5, 4096, %s360, [#allocation12], 64, 64, 4
        $region32: #{tpu_custom_call.1} parent=11 // pred_fallthru
          _
        // Predicated region
        $region33: #{tpu_custom_call.1} parent=11 // pred_check
          %p366 = pneg %p180
        $region34: #{tpu_custom_call.1} parent=11 // pred_check_branch
          %368 = sbr.rel (%p366) target = $region36
        $region35: #{tpu_custom_call.1} parent=11 // pred_region
          %s370 = ssub.s32 16, 16
          %371 = vsyncadd [#allocation12], %s370
          %s373 = sshll.u32 [#allocation13], 4
          %s374 = int_to_ptr.vmem [resolvable:$true] %s373
          %376 = dma.hbm_to_vmem [thread:$0]  %s6, 16, %s374, [#allocation12]
        $region36: #{tpu_custom_call.1} parent=11 // pred_fallthru
          _
        // Predicated region
        $region37: #{tpu_custom_call.1} parent=11 // pred_check
          %p377 = pneg %p201
        $region38: #{tpu_custom_call.1} parent=11 // pred_check_branch
          %379 = sbr.rel (%p377) target = $region40
        $region39: #{tpu_custom_call.1} parent=11 // pred_region
          %s381 = ssub.s32 1024, 1024
          %382 = vsyncadd [#allocation15], %s381
          %s383 = sshll.u32 [#allocation14], 4
          %s384 = int_to_ptr.vmem [resolvable:$true] %s383
          %389 = dma.hbm_to_vmem [thread:$0]  %s7, 1024, %s384, [#allocation15], 64, 64, 4
        $region40: #{tpu_custom_call.1} parent=11 // pred_fallthru
          _
        // Predicated region
        $region41: #{tpu_custom_call.1} parent=11 // pred_check
          %p390 = pneg %p222
        $region42: #{tpu_custom_call.1} parent=11 // pred_check_branch
          %392 = sbr.rel (%p390) target = $region44
        $region43: #{tpu_custom_call.1} parent=11 // pred_region
          %s394 = ssub.s32 16, 16
          %395 = vsyncadd [#allocation15], %s394
          %s397 = sshll.u32 [#allocation16], 4
          %s398 = int_to_ptr.vmem [resolvable:$true] %s397
          %400 = dma.hbm_to_vmem [thread:$0]  %s8, 16, %s398, [#allocation15]
        $region44: #{tpu_custom_call.1} parent=11 // pred_fallthru
          _
        // Predicated region
        $region45: #{tpu_custom_call.1} parent=11 // pred_check
          %p401 = pneg %p243
        $region46: #{tpu_custom_call.1} parent=11 // pred_check_branch
          %403 = sbr.rel (%p401) target = $region48
        $region47: #{tpu_custom_call.1} parent=11 // pred_region
          %s405 = ssub.s32 1024, 1024
          %406 = vsyncadd [#allocation18], %s405
          %s407 = sshll.u32 [#allocation17], 4
          %s408 = int_to_ptr.vmem [resolvable:$true] %s407
          %413 = dma.hbm_to_vmem [thread:$0]  %s9, 1024, %s408, [#allocation18], 64, 64, 4
        $region48: #{tpu_custom_call.1} parent=11 // pred_fallthru
          _
        // Predicated region
        $region49: #{tpu_custom_call.1} parent=11 // pred_check
          %p414 = pneg %p264
        $region50: #{tpu_custom_call.1} parent=11 // pred_check_branch
          %416 = sbr.rel (%p414) target = $region52
        $region51: #{tpu_custom_call.1} parent=11 // pred_region
          %s418 = ssub.s32 16, 16
          %419 = vsyncadd [#allocation18], %s418
          %s421 = sshll.u32 [#allocation19], 4
          %s422 = int_to_ptr.vmem [resolvable:$true] %s421
          %424 = dma.hbm_to_vmem [thread:$0]  %s10, 16, %s422, [#allocation18]
        $region52: #{tpu_custom_call.1} parent=11 // pred_fallthru
          _
      $region12: #{tpu_custom_call.1} parent=5 // pred_fallthru
        _
      %p425 = scmp.lt.s32.totalorder %s28, 2
      // Predicated region
      $region53: #{tpu_custom_call.1} parent=5 // pred_check
        %p426 = pneg %p425
      $region54: #{tpu_custom_call.1} parent=5 // pred_check_branch
        %428 = sbr.rel (%p426) target = $region56
      $region55: #{tpu_custom_call.1} parent=5 // pred_region
        // Predicated region
        $region57: #{tpu_custom_call.1} parent=55 // pred_check
          %p429 = pneg %p48
        $region58: #{tpu_custom_call.1} parent=55 // pred_check_branch
          %431 = sbr.rel (%p429) target = $region60
        $region59: #{tpu_custom_call.1} parent=55 // pred_region
          %s432 = sand.u32 %s38, 1
          %s433 = scalar_lea.sflag [#allocation3], %s432
          %s434 = sand.u32 %s38, 1
          %s435 = smul.addr %s434, 8
          %s436 = scalar_lea.vmem [#allocation2], %s435
          %s438 = ssub.s32 128, 128
          %439 = vsyncadd %s433, %s438
          %s440 = smul.addr %s28, 128
          %s441 = scalar_lea.hbm %s0, %s440
          %s443 = sshll.u32 %s436, 4
          %s444 = int_to_ptr.vmem [resolvable:$true] %s443
          %446 = dma.hbm_to_vmem [thread:$0]  %s441, 128, %s444, %s433
        $region60: #{tpu_custom_call.1} parent=55 // pred_fallthru
          _
      $region56: #{tpu_custom_call.1} parent=5 // pred_fallthru
        _
      %p447 = scmp.le.s32.totalorder 1, %s28
      %p448 = scmp.lt.s32.totalorder %s28, 3
      %p449 = pnand %p447, %p448
      %p450 = pneg %p449
      // Predicated region
      $region61: #{tpu_custom_call.1} parent=5 // pred_check
        _
      $region62: #{tpu_custom_call.1} parent=5 // pred_check_branch
        %452 = sbr.rel (%p449) target = $region64
      $region63: #{tpu_custom_call.1} parent=5 // pred_region
        %s453 = ssub.s32 %s28, 1
        %s454 = sand.u32 %s41, 1
        %s455 = scalar_lea.sflag [#allocation3], %s454
        %s456 = sand.u32 %s41, 1
        %s457 = smul.addr %s456, 8
        %s458 = scalar_lea.vmem [#allocation2], %s457
        // Predicated region
        $region65: #{tpu_custom_call.1} parent=63 // pred_check
          %p459 = pneg %p54
        $region66: #{tpu_custom_call.1} parent=63 // pred_check_branch
          %461 = sbr.rel (%p459) target = $region68
        $region67: #{tpu_custom_call.1} parent=63 // pred_region
          %462 = dma.done %s455, 128
        $region68: #{tpu_custom_call.1} parent=63 // pred_fallthru
          _
        // Predicated region
        $region69: #{tpu_custom_call.1} parent=63 // pred_check
          %p463 = pneg %p75
        $region70: #{tpu_custom_call.1} parent=63 // pred_check_branch
          %465 = sbr.rel (%p463) target = $region72
        $region71: #{tpu_custom_call.1} parent=63 // pred_region
          %466 = dma.done [#allocation6], 13312
        $region72: #{tpu_custom_call.1} parent=63 // pred_fallthru
          _
        // Predicated region
        $region73: #{tpu_custom_call.1} parent=63 // pred_check
          %p467 = pneg %p96
        $region74: #{tpu_custom_call.1} parent=63 // pred_check_branch
          %469 = sbr.rel (%p467) target = $region76
        $region75: #{tpu_custom_call.1} parent=63 // pred_region
          %470 = dma.done [#allocation6], 256
        $region76: #{tpu_custom_call.1} parent=63 // pred_fallthru
          _
        // Predicated region
        $region77: #{tpu_custom_call.1} parent=63 // pred_check
          %p471 = pneg %p117
        $region78: #{tpu_custom_call.1} parent=63 // pred_check_branch
          %473 = sbr.rel (%p471) target = $region80
        $region79: #{tpu_custom_call.1} parent=63 // pred_region
          %474 = dma.done [#allocation9], 65536
        $region80: #{tpu_custom_call.1} parent=63 // pred_fallthru
          _
        // Predicated region
        $region81: #{tpu_custom_call.1} parent=63 // pred_check
          %p475 = pneg %p138
        $region82: #{tpu_custom_call.1} parent=63 // pred_check_branch
          %477 = sbr.rel (%p475) target = $region84
        $region83: #{tpu_custom_call.1} parent=63 // pred_region
          %478 = dma.done [#allocation9], 64
        $region84: #{tpu_custom_call.1} parent=63 // pred_fallthru
          _
        // Predicated region
        $region85: #{tpu_custom_call.1} parent=63 // pred_check
          %p479 = pneg %p159
        $region86: #{tpu_custom_call.1} parent=63 // pred_check_branch
          %481 = sbr.rel (%p479) target = $region88
        $region87: #{tpu_custom_call.1} parent=63 // pred_region
          %482 = dma.done [#allocation12], 4096
        $region88: #{tpu_custom_call.1} parent=63 // pred_fallthru
          _
        // Predicated region
        $region89: #{tpu_custom_call.1} parent=63 // pred_check
          %p483 = pneg %p180
        $region90: #{tpu_custom_call.1} parent=63 // pred_check_branch
          %485 = sbr.rel (%p483) target = $region92
        $region91: #{tpu_custom_call.1} parent=63 // pred_region
          %486 = dma.done [#allocation12], 16
        $region92: #{tpu_custom_call.1} parent=63 // pred_fallthru
          _
        // Predicated region
        $region93: #{tpu_custom_call.1} parent=63 // pred_check
          %p487 = pneg %p201
        $region94: #{tpu_custom_call.1} parent=63 // pred_check_branch
          %489 = sbr.rel (%p487) target = $region96
        $region95: #{tpu_custom_call.1} parent=63 // pred_region
          %490 = dma.done [#allocation15], 1024
        $region96: #{tpu_custom_call.1} parent=63 // pred_fallthru
          _
        // Predicated region
        $region97: #{tpu_custom_call.1} parent=63 // pred_check
          %p491 = pneg %p222
        $region98: #{tpu_custom_call.1} parent=63 // pred_check_branch
          %493 = sbr.rel (%p491) target = $region100
        $region99: #{tpu_custom_call.1} parent=63 // pred_region
          %494 = dma.done [#allocation15], 16
        $region100: #{tpu_custom_call.1} parent=63 // pred_fallthru
          _
        // Predicated region
        $region101: #{tpu_custom_call.1} parent=63 // pred_check
          %p495 = pneg %p243
        $region102: #{tpu_custom_call.1} parent=63 // pred_check_branch
          %497 = sbr.rel (%p495) target = $region104
        $region103: #{tpu_custom_call.1} parent=63 // pred_region
          %498 = dma.done [#allocation18], 1024
        $region104: #{tpu_custom_call.1} parent=63 // pred_fallthru
          _
        // Predicated region
        $region105: #{tpu_custom_call.1} parent=63 // pred_check
          %p499 = pneg %p264
        $region106: #{tpu_custom_call.1} parent=63 // pred_check_branch
          %501 = sbr.rel (%p499) target = $region108
        $region107: #{tpu_custom_call.1} parent=63 // pred_region
          %502 = dma.done [#allocation18], 16
        $region108: #{tpu_custom_call.1} parent=63 // pred_fallthru
          _
        %s503 = sand.u32 %s41, 1
        %s504 = scalar_lea.sflag [#allocation3], %s503
        %s505 = sand.u32 %s41, 1
        %s506 = smul.addr %s505, 8
        %s507 = scalar_lea.vmem [#allocation2], %s506
        %p508 = pneg %p54
        %p509 = pneg %p51
        %p510 = pneg %p75
        %p511 = pneg %p72
        %p512 = pneg %p96
        %p513 = pneg %p93
        %p514 = pneg %p117
        %p515 = pneg %p114
        %p516 = pneg %p138
        %p517 = pneg %p135
        %p518 = pneg %p159
        %p519 = pneg %p156
        %p520 = pneg %p180
        %p521 = pneg %p177
        %p522 = pneg %p201
        %p523 = pneg %p198
        %p524 = pneg %p222
        %p525 = pneg %p219
        %p526 = pneg %p243
        %p527 = pneg %p240
        %p528 = pneg %p264
        %p529 = pneg %p261
        %p530 = pneg %p290
        %p531 = pneg %p287
        %s532 = sand.u32 %s277, 1
        %s533 = scalar_lea.sflag [#allocation4], %s532
        %s534 = sand.u32 %s277, 1
        %s535 = smul.addr %s534, 8
        %s536 = scalar_lea.vmem [#allocation20], %s535
        %v538 = vld [vmem:[%s458] sm:$0xff]
        %v539 = vpack.c.bf16 %v538, %v538
        %v540 = vld [vmem:[#allocation5] sm:$0xff]
        %v541 = vld [vmem:[#allocation5 + $0x8] sm:$0xff]
        %v542 = vld [vmem:[#allocation5 + $0x10] sm:$0xff]
        %v543 = vld [vmem:[#allocation5 + $0x18] sm:$0xff]
        %v544 = vld [vmem:[#allocation5 + $0x20] sm:$0xff]
        %v545 = vld [vmem:[#allocation5 + $0x28] sm:$0xff]
        %v546 = vld [vmem:[#allocation5 + $0x30] sm:$0xff]
        %v547 = vld [vmem:[#allocation5 + $0x38] sm:$0xff]
        %v548 = vld [vmem:[#allocation5 + $0x40] sm:$0xff]
        %v549 = vld [vmem:[#allocation5 + $0x48] sm:$0xff]
        %v550 = vld [vmem:[#allocation5 + $0x50] sm:$0xff]
        %v551 = vld [vmem:[#allocation5 + $0x58] sm:$0xff]
        %v552 = vld [vmem:[#allocation5 + $0x60] sm:$0xff]
        %v553 = vld [vmem:[#allocation5 + $0x68] sm:$0xff]
        %v554 = vld [vmem:[#allocation5 + $0x70] sm:$0xff]
        %v555 = vld [vmem:[#allocation5 + $0x78] sm:$0xff]
        %v556 = vld [vmem:[#allocation5 + $0x80] sm:$0xff]
        %v557 = vld [vmem:[#allocation5 + $0x88] sm:$0xff]
        %v558 = vld [vmem:[#allocation5 + $0x90] sm:$0xff]
        %v559 = vld [vmem:[#allocation5 + $0x98] sm:$0xff]
        %v560 = vld [vmem:[#allocation5 + $0xa0] sm:$0xff]
        %v561 = vld [vmem:[#allocation5 + $0xa8] sm:$0xff]
        %v562 = vld [vmem:[#allocation5 + $0xb0] sm:$0xff]
        %v563 = vld [vmem:[#allocation5 + $0xb8] sm:$0xff]
        %v564 = vld [vmem:[#allocation5 + $0xc0] sm:$0xff]
        %v565 = vld [vmem:[#allocation5 + $0xc8] sm:$0xff]
        %v566 = vld [vmem:[#allocation5 + $0xd0] sm:$0xff]
        %v567 = vld [vmem:[#allocation5 + $0xd8] sm:$0xff]
        %v568 = vld [vmem:[#allocation5 + $0xe0] sm:$0xff]
        %v569 = vld [vmem:[#allocation5 + $0xe8] sm:$0xff]
        %v570 = vld [vmem:[#allocation5 + $0xf0] sm:$0xff]
        %v571 = vld [vmem:[#allocation5 + $0xf8] sm:$0xff]
        %v572 = vld [vmem:[#allocation5 + $0x100] sm:$0xff]
        %v573 = vld [vmem:[#allocation5 + $0x108] sm:$0xff]
        %v574 = vld [vmem:[#allocation5 + $0x110] sm:$0xff]
        %v575 = vld [vmem:[#allocation5 + $0x118] sm:$0xff]
        %v576 = vld [vmem:[#allocation5 + $0x120] sm:$0xff]
        %v577 = vld [vmem:[#allocation5 + $0x128] sm:$0xff]
        %v578 = vld [vmem:[#allocation5 + $0x130] sm:$0xff]
        %v579 = vld [vmem:[#allocation5 + $0x138] sm:$0xff]
        %v580 = vld [vmem:[#allocation5 + $0x140] sm:$0xff]
        %v581 = vld [vmem:[#allocation5 + $0x148] sm:$0xff]
        %v582 = vld [vmem:[#allocation5 + $0x150] sm:$0xff]
        %v583 = vld [vmem:[#allocation5 + $0x158] sm:$0xff]
        %v584 = vld [vmem:[#allocation5 + $0x160] sm:$0xff]
        %v585 = vld [vmem:[#allocation5 + $0x168] sm:$0xff]
        %v586 = vld [vmem:[#allocation5 + $0x170] sm:$0xff]
        %v587 = vld [vmem:[#allocation5 + $0x178] sm:$0xff]
        %v588 = vld [vmem:[#allocation5 + $0x180] sm:$0xff]
        %v589 = vld [vmem:[#allocation5 + $0x188] sm:$0xff]
        %v590 = vld [vmem:[#allocation5 + $0x190] sm:$0xff]
        %v591 = vld [vmem:[#allocation5 + $0x198] sm:$0xff]
        %v592 = vld [vmem:[#allocation5 + $0x1a0] sm:$0xff]
        %v593 = vld [vmem:[#allocation5 + $0x1a8] sm:$0xff]
        %v594 = vld [vmem:[#allocation5 + $0x1b0] sm:$0xff]
        %v595 = vld [vmem:[#allocation5 + $0x1b8] sm:$0xff]
        %v596 = vld [vmem:[#allocation5 + $0x1c0] sm:$0xff]
        %v597 = vld [vmem:[#allocation5 + $0x1c8] sm:$0xff]
        %v598 = vld [vmem:[#allocation5 + $0x1d0] sm:$0xff]
        %v599 = vld [vmem:[#allocation5 + $0x1d8] sm:$0xff]
        %v600 = vld [vmem:[#allocation5 + $0x1e0] sm:$0xff]
        %v601 = vld [vmem:[#allocation5 + $0x1e8] sm:$0xff]
        %v602 = vld [vmem:[#allocation5 + $0x1f0] sm:$0xff]
        %v603 = vld [vmem:[#allocation5 + $0x1f8] sm:$0xff]
        %v604 = vld [vmem:[#allocation5 + $0x200] sm:$0xff]
        %v605 = vld [vmem:[#allocation5 + $0x208] sm:$0xff]
        %v606 = vld [vmem:[#allocation5 + $0x210] sm:$0xff]
        %v607 = vld [vmem:[#allocation5 + $0x218] sm:$0xff]
        %v608 = vld [vmem:[#allocation5 + $0x220] sm:$0xff]
        %v609 = vld [vmem:[#allocation5 + $0x228] sm:$0xff]
        %v610 = vld [vmem:[#allocation5 + $0x230] sm:$0xff]
        %v611 = vld [vmem:[#allocation5 + $0x238] sm:$0xff]
        %v612 = vld [vmem:[#allocation5 + $0x240] sm:$0xff]
        %v613 = vld [vmem:[#allocation5 + $0x248] sm:$0xff]
        %v614 = vld [vmem:[#allocation5 + $0x250] sm:$0xff]
        %v615 = vld [vmem:[#allocation5 + $0x258] sm:$0xff]
        %v616 = vld [vmem:[#allocation5 + $0x260] sm:$0xff]
        %v617 = vld [vmem:[#allocation5 + $0x268] sm:$0xff]
        %v618 = vld [vmem:[#allocation5 + $0x270] sm:$0xff]
        %v619 = vld [vmem:[#allocation5 + $0x278] sm:$0xff]
        %v620 = vld [vmem:[#allocation5 + $0x280] sm:$0xff]
        %v621 = vld [vmem:[#allocation5 + $0x288] sm:$0xff]
        %v622 = vld [vmem:[#allocation5 + $0x290] sm:$0xff]
        %v623 = vld [vmem:[#allocation5 + $0x298] sm:$0xff]
        %v624 = vld [vmem:[#allocation5 + $0x2a0] sm:$0xff]
        %v625 = vld [vmem:[#allocation5 + $0x2a8] sm:$0xff]
        %v626 = vld [vmem:[#allocation5 + $0x2b0] sm:$0xff]
        %v627 = vld [vmem:[#allocation5 + $0x2b8] sm:$0xff]
        %v628 = vld [vmem:[#allocation5 + $0x2c0] sm:$0xff]
        %v629 = vld [vmem:[#allocation5 + $0x2c8] sm:$0xff]
        %v630 = vld [vmem:[#allocation5 + $0x2d0] sm:$0xff]
        %v631 = vld [vmem:[#allocation5 + $0x2d8] sm:$0xff]
        %v632 = vld [vmem:[#allocation5 + $0x2e0] sm:$0xff]
        %v633 = vld [vmem:[#allocation5 + $0x2e8] sm:$0xff]
        %v634 = vld [vmem:[#allocation5 + $0x2f0] sm:$0xff]
        %v635 = vld [vmem:[#allocation5 + $0x2f8] sm:$0xff]
        %v636 = vld [vmem:[#allocation5 + $0x300] sm:$0x33]
        %v637 = vld [vmem:[#allocation5 + $0x308] sm:$0x33]
        %v638 = vld [vmem:[#allocation5 + $0x310] sm:$0x33]
        %v639 = vld [vmem:[#allocation5 + $0x318] sm:$0x33]
        %v640 = vld [vmem:[#allocation5 + $0x320] sm:$0x33]
        %v641 = vld [vmem:[#allocation5 + $0x328] sm:$0x33]
        %v642 = vld [vmem:[#allocation5 + $0x330] sm:$0x33]
        %v643 = vld [vmem:[#allocation5 + $0x338] sm:$0x33]
        %v644 = vld [vmem:[#allocation7] sm:$0xff]
        %v645 = vld [vmem:[#allocation7 + $0x8] sm:$0xff]
        %v648 = vlaneseq
        %v649 = vshrl.u32 %v648, 7
        %v650 = vsub.s32 0, %v649
        %v651 = vrot.slane %v644, %v650
        %v652 = vlaneseq
        %v653 = vshrl.u32 %v652, 7
        %v654 = vsub.s32 1, %v653
        %v655 = vrot.slane %v644, %v654
        %v656 = vlaneseq
        %v657 = vshrl.u32 %v656, 7
        %v658 = vsub.s32 2, %v657
        %v659 = vrot.slane %v644, %v658
        %v660 = vlaneseq
        %v661 = vshrl.u32 %v660, 7
        %v662 = vsub.s32 3, %v661
        %v663 = vrot.slane %v644, %v662
        %v664 = vlaneseq
        %v665 = vshrl.u32 %v664, 7
        %v666 = vsub.s32 4, %v665
        %v667 = vrot.slane %v644, %v666
        %v668 = vlaneseq
        %v669 = vshrl.u32 %v668, 7
        %v670 = vsub.s32 5, %v669
        %v671 = vrot.slane %v644, %v670
        %v672 = vlaneseq
        %v673 = vshrl.u32 %v672, 7
        %v674 = vsub.s32 6, %v673
        %v675 = vrot.slane %v644, %v674
        %v676 = vlaneseq
        %v677 = vshrl.u32 %v676, 7
        %v678 = vsub.s32 7, %v677
        %v679 = vrot.slane %v644, %v678
        %v680 = vlaneseq
        %v681 = vshrl.u32 %v680, 7
        %v682 = vsub.s32 0, %v681
        %v683 = vrot.slane %v645, %v682
        %v684 = vlaneseq
        %v685 = vshrl.u32 %v684, 7
        %v686 = vsub.s32 1, %v685
        %v687 = vrot.slane %v645, %v686
        %v688 = vlaneseq
        %v689 = vshrl.u32 %v688, 7
        %v690 = vsub.s32 2, %v689
        %v691 = vrot.slane %v645, %v690
        %v692 = vlaneseq
        %v693 = vshrl.u32 %v692, 7
        %v694 = vsub.s32 3, %v693
        %v695 = vrot.slane %v645, %v694
        %v696 = vlaneseq
        %v697 = vshrl.u32 %v696, 7
        %v698 = vsub.s32 4, %v697
        %v699 = vrot.slane %v645, %v698
        %v700 = vlaneseq
        %v701 = vshrl.u32 %v700, 7
        %v702 = vsub.s32 5, %v701
        %v703 = vrot.slane %v645, %v702
        %v704 = vlaneseq
        %v705 = vshrl.u32 %v704, 7
        %v706 = vsub.s32 6, %v705
        %v707 = vrot.slane %v645, %v706
        %v708 = vlaneseq
        %v709 = vshrl.u32 %v708, 7
        %v710 = vsub.s32 7, %v709
        %v711 = vrot.slane %v645, %v710
        %v832 = vunpack.c.l.b16 %v540
        %v833 = vunpack.c.h.b16 %v540
        %v834 = vunpack.c.l.b16 %v541
        %v835 = vunpack.c.h.b16 %v541
        %v836 = vunpack.c.l.b16 %v542
        %v837 = vunpack.c.h.b16 %v542
        %v838 = vunpack.c.l.b16 %v543
        %v839 = vunpack.c.h.b16 %v543
        %v840 = vunpack.c.l.b16 %v544
        %v841 = vunpack.c.h.b16 %v544
        %v842 = vunpack.c.l.b16 %v545
        %v843 = vunpack.c.h.b16 %v545
        %v844 = vunpack.c.l.b16 %v546
        %v845 = vunpack.c.h.b16 %v546
        %v846 = vunpack.c.l.b16 %v547
        %v847 = vunpack.c.h.b16 %v547
        %v848 = vunpack.c.l.b16 %v548
        %v849 = vunpack.c.h.b16 %v548
        %v850 = vunpack.c.l.b16 %v549
        %v851 = vunpack.c.h.b16 %v549
        %v852 = vunpack.c.l.b16 %v550
        %v853 = vunpack.c.h.b16 %v550
        %v854 = vunpack.c.l.b16 %v551
        %v855 = vunpack.c.h.b16 %v551
        %v856 = vunpack.c.l.b16 %v552
        %v857 = vunpack.c.h.b16 %v552
        %v858 = vunpack.c.l.b16 %v553
        %v859 = vunpack.c.h.b16 %v553
        %v860 = vunpack.c.l.b16 %v554
        %v861 = vunpack.c.h.b16 %v554
        %v862 = vunpack.c.l.b16 %v555
        %v863 = vunpack.c.h.b16 %v555
        %v864 = vunpack.c.l.b16 %v556
        %v865 = vunpack.c.h.b16 %v556
        %v866 = vunpack.c.l.b16 %v557
        %v867 = vunpack.c.h.b16 %v557
        %v868 = vunpack.c.l.b16 %v558
        %v869 = vunpack.c.h.b16 %v558
        %v870 = vunpack.c.l.b16 %v559
        %v871 = vunpack.c.h.b16 %v559
        %v872 = vunpack.c.l.b16 %v560
        %v873 = vunpack.c.h.b16 %v560
        %v874 = vunpack.c.l.b16 %v561
        %v875 = vunpack.c.h.b16 %v561
        %v876 = vunpack.c.l.b16 %v562
        %v877 = vunpack.c.h.b16 %v562
        %v878 = vunpack.c.l.b16 %v563
        %v879 = vunpack.c.h.b16 %v563
        %v880 = vunpack.c.l.b16 %v564
        %v881 = vunpack.c.h.b16 %v564
        %v882 = vunpack.c.l.b16 %v565
        %v883 = vunpack.c.h.b16 %v565
        %v884 = vunpack.c.l.b16 %v566
        %v885 = vunpack.c.h.b16 %v566
        %v886 = vunpack.c.l.b16 %v567
        %v887 = vunpack.c.h.b16 %v567
        %v888 = vunpack.c.l.b16 %v568
        %v889 = vunpack.c.h.b16 %v568
        %v890 = vunpack.c.l.b16 %v569
        %v891 = vunpack.c.h.b16 %v569
        %v892 = vunpack.c.l.b16 %v570
        %v893 = vunpack.c.h.b16 %v570
        %v894 = vunpack.c.l.b16 %v571
        %v895 = vunpack.c.h.b16 %v571
        %v896 = vunpack.c.l.b16 %v572
        %v897 = vunpack.c.h.b16 %v572
        %v898 = vunpack.c.l.b16 %v573
        %v899 = vunpack.c.h.b16 %v573
        %v900 = vunpack.c.l.b16 %v574
        %v901 = vunpack.c.h.b16 %v574
        %v902 = vunpack.c.l.b16 %v575
        %v903 = vunpack.c.h.b16 %v575
        %v904 = vunpack.c.l.b16 %v576
        %v905 = vunpack.c.h.b16 %v576
        %v906 = vunpack.c.l.b16 %v577
        %v907 = vunpack.c.h.b16 %v577
        %v908 = vunpack.c.l.b16 %v578
        %v909 = vunpack.c.h.b16 %v578
        %v910 = vunpack.c.l.b16 %v579
        %v911 = vunpack.c.h.b16 %v579
        %v912 = vunpack.c.l.b16 %v580
        %v913 = vunpack.c.h.b16 %v580
        %v914 = vunpack.c.l.b16 %v581
        %v915 = vunpack.c.h.b16 %v581
        %v916 = vunpack.c.l.b16 %v582
        %v917 = vunpack.c.h.b16 %v582
        %v918 = vunpack.c.l.b16 %v583
        %v919 = vunpack.c.h.b16 %v583
        %v920 = vunpack.c.l.b16 %v584
        %v921 = vunpack.c.h.b16 %v584
        %v922 = vunpack.c.l.b16 %v585
        %v923 = vunpack.c.h.b16 %v585
        %v924 = vunpack.c.l.b16 %v586
        %v925 = vunpack.c.h.b16 %v586
        %v926 = vunpack.c.l.b16 %v587
        %v927 = vunpack.c.h.b16 %v587
        %v928 = vunpack.c.l.b16 %v588
        %v929 = vunpack.c.h.b16 %v588
        %v930 = vunpack.c.l.b16 %v589
        %v931 = vunpack.c.h.b16 %v589
        %v932 = vunpack.c.l.b16 %v590
        %v933 = vunpack.c.h.b16 %v590
        %v934 = vunpack.c.l.b16 %v591
        %v935 = vunpack.c.h.b16 %v591
        %v936 = vunpack.c.l.b16 %v592
        %v937 = vunpack.c.h.b16 %v592
        %v938 = vunpack.c.l.b16 %v593
        %v939 = vunpack.c.h.b16 %v593
        %v940 = vunpack.c.l.b16 %v594
        %v941 = vunpack.c.h.b16 %v594
        %v942 = vunpack.c.l.b16 %v595
        %v943 = vunpack.c.h.b16 %v595
        %v944 = vunpack.c.l.b16 %v596
        %v945 = vunpack.c.h.b16 %v596
        %v946 = vunpack.c.l.b16 %v597
        %v947 = vunpack.c.h.b16 %v597
        %v948 = vunpack.c.l.b16 %v598
        %v949 = vunpack.c.h.b16 %v598
        %v950 = vunpack.c.l.b16 %v599
        %v951 = vunpack.c.h.b16 %v599
        %v952 = vunpack.c.l.b16 %v600
        %v953 = vunpack.c.h.b16 %v600
        %v954 = vunpack.c.l.b16 %v601
        %v955 = vunpack.c.h.b16 %v601
        %v956 = vunpack.c.l.b16 %v602
        %v957 = vunpack.c.h.b16 %v602
        %v958 = vunpack.c.l.b16 %v603
        %v959 = vunpack.c.h.b16 %v603
        %v960 = vunpack.c.l.b16 %v604
        %v961 = vunpack.c.h.b16 %v604
        %v962 = vunpack.c.l.b16 %v605
        %v963 = vunpack.c.h.b16 %v605
        %v964 = vunpack.c.l.b16 %v606
        %v965 = vunpack.c.h.b16 %v606
        %v966 = vunpack.c.l.b16 %v607
        %v967 = vunpack.c.h.b16 %v607
        %v968 = vunpack.c.l.b16 %v608
        %v969 = vunpack.c.h.b16 %v608
        %v970 = vunpack.c.l.b16 %v609
        %v971 = vunpack.c.h.b16 %v609
        %v972 = vunpack.c.l.b16 %v610
        %v973 = vunpack.c.h.b16 %v610
        %v974 = vunpack.c.l.b16 %v611
        %v975 = vunpack.c.h.b16 %v611
        %v976 = vunpack.c.l.b16 %v612
        %v977 = vunpack.c.h.b16 %v612
        %v978 = vunpack.c.l.b16 %v613
        %v979 = vunpack.c.h.b16 %v613
        %v980 = vunpack.c.l.b16 %v614
        %v981 = vunpack.c.h.b16 %v614
        %v982 = vunpack.c.l.b16 %v615
        %v983 = vunpack.c.h.b16 %v615
        %v984 = vunpack.c.l.b16 %v616
        %v985 = vunpack.c.h.b16 %v616
        %v986 = vunpack.c.l.b16 %v617
        %v987 = vunpack.c.h.b16 %v617
        %v988 = vunpack.c.l.b16 %v618
        %v989 = vunpack.c.h.b16 %v618
        %v990 = vunpack.c.l.b16 %v619
        %v991 = vunpack.c.h.b16 %v619
        %v992 = vunpack.c.l.b16 %v620
        %v993 = vunpack.c.h.b16 %v620
        %v994 = vunpack.c.l.b16 %v621
        %v995 = vunpack.c.h.b16 %v621
        %v996 = vunpack.c.l.b16 %v622
        %v997 = vunpack.c.h.b16 %v622
        %v998 = vunpack.c.l.b16 %v623
        %v999 = vunpack.c.h.b16 %v623
        %v1000 = vunpack.c.l.b16 %v624
        %v1001 = vunpack.c.h.b16 %v624
        %v1002 = vunpack.c.l.b16 %v625
        %v1003 = vunpack.c.h.b16 %v625
        %v1004 = vunpack.c.l.b16 %v626
        %v1005 = vunpack.c.h.b16 %v626
        %v1006 = vunpack.c.l.b16 %v627
        %v1007 = vunpack.c.h.b16 %v627
        %v1008 = vunpack.c.l.b16 %v628
        %v1009 = vunpack.c.h.b16 %v628
        %v1010 = vunpack.c.l.b16 %v629
        %v1011 = vunpack.c.h.b16 %v629
        %v1012 = vunpack.c.l.b16 %v630
        %v1013 = vunpack.c.h.b16 %v630
        %v1014 = vunpack.c.l.b16 %v631
        %v1015 = vunpack.c.h.b16 %v631
        %v1016 = vunpack.c.l.b16 %v632
        %v1017 = vunpack.c.h.b16 %v632
        %v1018 = vunpack.c.l.b16 %v633
        %v1019 = vunpack.c.h.b16 %v633
        %v1020 = vunpack.c.l.b16 %v634
        %v1021 = vunpack.c.h.b16 %v634
        %v1022 = vunpack.c.l.b16 %v635
        %v1023 = vunpack.c.h.b16 %v635
        %v1024 = vunpack.c.l.b16 %v636
        %v1025 = vunpack.c.h.b16 %v636
        %v1026 = vunpack.c.l.b16 %v637
        %v1027 = vunpack.c.h.b16 %v637
        %v1028 = vunpack.c.l.b16 %v638
        %v1029 = vunpack.c.h.b16 %v638
        %v1030 = vunpack.c.l.b16 %v639
        %v1031 = vunpack.c.h.b16 %v639
        %v1032 = vunpack.c.l.b16 %v640
        %v1033 = vunpack.c.h.b16 %v640
        %v1034 = vunpack.c.l.b16 %v641
        %v1035 = vunpack.c.h.b16 %v641
        %v1036 = vunpack.c.l.b16 %v642
        %v1037 = vunpack.c.h.b16 %v642
        %v1038 = vunpack.c.l.b16 %v643
        %v1039 = vunpack.c.h.b16 %v643
        %v1040 = vpack.c.b16 %v848, %v832
        %v1041 = vpack.c.b16 %v849, %v833
        %v1042 = vpack.c.b16 %v850, %v834
        %v1043 = vpack.c.b16 %v851, %v835
        %v1044 = vpack.c.b16 %v852, %v836
        %v1045 = vpack.c.b16 %v853, %v837
        %v1046 = vpack.c.b16 %v854, %v838
        %v1047 = vpack.c.b16 %v855, %v839
        %v1048 = vpack.c.b16 %v856, %v840
        %v1049 = vpack.c.b16 %v857, %v841
        %v1050 = vpack.c.b16 %v858, %v842
        %v1051 = vpack.c.b16 %v859, %v843
        %v1052 = vpack.c.b16 %v860, %v844
        %v1053 = vpack.c.b16 %v861, %v845
        %v1054 = vpack.c.b16 %v862, %v846
        %v1055 = vpack.c.b16 %v863, %v847
        %v1056 = vpack.c.b16 %v880, %v864
        %v1057 = vpack.c.b16 %v881, %v865
        %v1058 = vpack.c.b16 %v882, %v866
        %v1059 = vpack.c.b16 %v883, %v867
        %v1060 = vpack.c.b16 %v884, %v868
        %v1061 = vpack.c.b16 %v885, %v869
        %v1062 = vpack.c.b16 %v886, %v870
        %v1063 = vpack.c.b16 %v887, %v871
        %v1064 = vpack.c.b16 %v888, %v872
        %v1065 = vpack.c.b16 %v889, %v873
        %v1066 = vpack.c.b16 %v890, %v874
        %v1067 = vpack.c.b16 %v891, %v875
        %v1068 = vpack.c.b16 %v892, %v876
        %v1069 = vpack.c.b16 %v893, %v877
        %v1070 = vpack.c.b16 %v894, %v878
        %v1071 = vpack.c.b16 %v895, %v879
        %v1072 = vpack.c.b16 %v912, %v896
        %v1073 = vpack.c.b16 %v913, %v897
        %v1074 = vpack.c.b16 %v914, %v898
        %v1075 = vpack.c.b16 %v915, %v899
        %v1076 = vpack.c.b16 %v916, %v900
        %v1077 = vpack.c.b16 %v917, %v901
        %v1078 = vpack.c.b16 %v918, %v902
        %v1079 = vpack.c.b16 %v919, %v903
        %v1080 = vpack.c.b16 %v920, %v904
        %v1081 = vpack.c.b16 %v921, %v905
        %v1082 = vpack.c.b16 %v922, %v906
        %v1083 = vpack.c.b16 %v923, %v907
        %v1084 = vpack.c.b16 %v924, %v908
        %v1085 = vpack.c.b16 %v925, %v909
        %v1086 = vpack.c.b16 %v926, %v910
        %v1087 = vpack.c.b16 %v927, %v911
        %v1088 = vpack.c.b16 %v944, %v928
        %v1089 = vpack.c.b16 %v945, %v929
        %v1090 = vpack.c.b16 %v946, %v930
        %v1091 = vpack.c.b16 %v947, %v931
        %v1092 = vpack.c.b16 %v948, %v932
        %v1093 = vpack.c.b16 %v949, %v933
        %v1094 = vpack.c.b16 %v950, %v934
        %v1095 = vpack.c.b16 %v951, %v935
        %v1096 = vpack.c.b16 %v952, %v936
        %v1097 = vpack.c.b16 %v953, %v937
        %v1098 = vpack.c.b16 %v954, %v938
        %v1099 = vpack.c.b16 %v955, %v939
        %v1100 = vpack.c.b16 %v956, %v940
        %v1101 = vpack.c.b16 %v957, %v941
        %v1102 = vpack.c.b16 %v958, %v942
        %v1103 = vpack.c.b16 %v959, %v943
        %v1104 = vpack.c.b16 %v976, %v960
        %v1105 = vpack.c.b16 %v977, %v961
        %v1106 = vpack.c.b16 %v978, %v962
        %v1107 = vpack.c.b16 %v979, %v963
        %v1108 = vpack.c.b16 %v980, %v964
        %v1109 = vpack.c.b16 %v981, %v965
        %v1110 = vpack.c.b16 %v982, %v966
        %v1111 = vpack.c.b16 %v983, %v967
        %v1112 = vpack.c.b16 %v984, %v968
        %v1113 = vpack.c.b16 %v985, %v969
        %v1114 = vpack.c.b16 %v986, %v970
        %v1115 = vpack.c.b16 %v987, %v971
        %v1116 = vpack.c.b16 %v988, %v972
        %v1117 = vpack.c.b16 %v989, %v973
        %v1118 = vpack.c.b16 %v990, %v974
        %v1119 = vpack.c.b16 %v991, %v975
        %v1120 = vpack.c.b16 %v1008, %v992
        %v1121 = vpack.c.b16 %v1009, %v993
        %v1122 = vpack.c.b16 %v1010, %v994
        %v1123 = vpack.c.b16 %v1011, %v995
        %v1124 = vpack.c.b16 %v1012, %v996
        %v1125 = vpack.c.b16 %v1013, %v997
        %v1126 = vpack.c.b16 %v1014, %v998
        %v1127 = vpack.c.b16 %v1015, %v999
        %v1128 = vpack.c.b16 %v1016, %v1000
        %v1129 = vpack.c.b16 %v1017, %v1001
        %v1130 = vpack.c.b16 %v1018, %v1002
        %v1131 = vpack.c.b16 %v1019, %v1003
        %v1132 = vpack.c.b16 %v1020, %v1004
        %v1133 = vpack.c.b16 %v1021, %v1005
        %v1134 = vpack.c.b16 %v1022, %v1006
        %v1135 = vpack.c.b16 %v1023, %v1007
        %v1136 = vpack.c.b16 %v1024, %v1024
        %v1137 = vpack.c.b16 %v1025, %v1025
        %v1138 = vpack.c.b16 %v1026, %v1026
        %v1139 = vpack.c.b16 %v1027, %v1027
        %v1140 = vpack.c.b16 %v1028, %v1028
        %v1141 = vpack.c.b16 %v1029, %v1029
        %v1142 = vpack.c.b16 %v1030, %v1030
        %v1143 = vpack.c.b16 %v1031, %v1031
        %v1144 = vpack.c.b16 %v1032, %v1032
        %v1145 = vpack.c.b16 %v1033, %v1033
        %v1146 = vpack.c.b16 %v1034, %v1034
        %v1147 = vpack.c.b16 %v1035, %v1035
        %v1148 = vpack.c.b16 %v1036, %v1036
        %v1149 = vpack.c.b16 %v1037, %v1037
        %v1150 = vpack.c.b16 %v1038, %v1038
        %v1151 = vpack.c.b16 %v1039, %v1039
        %vm1248 = vcmask 818176
        %v1250 = vsel %vm1248, %v539, 0
        %vm1252 = vcmask 1041408
        %v1254 = vsel %vm1252, %v1136, 0
        %v1257 = vsel %vm1252, %v1137, 0
        %v1260 = vsel %vm1252, %v1138, 0
        %v1263 = vsel %vm1252, %v1139, 0
        %v1266 = vsel %vm1252, %v1140, 0
        %v1269 = vsel %vm1252, %v1141, 0
        %v1272 = vsel %vm1252, %v1142, 0
        %v1275 = vsel %vm1252, %v1143, 0
        %v1278 = vsel %vm1252, %v1144, 0
        %v1281 = vsel %vm1252, %v1145, 0
        %v1284 = vsel %vm1252, %v1146, 0
        %v1287 = vsel %vm1252, %v1147, 0
        %v1290 = vsel %vm1252, %v1148, 0
        %v1293 = vsel %vm1252, %v1149, 0
        %v1296 = vsel %vm1252, %v1150, 0
        %v1299 = vsel %vm1252, %v1151, 0
        %1301 = vmatprep.subr.bf16.mxu0 0
        %1302 = vmatpush1.bf16.msra.mxu0 0
        %1303 = vmatprep.subr.bf16.mxu0 %v1257
        %1304 = vmatpush1.bf16.msra.mxu0 %v1254
        %1305 = vmatprep.subr.bf16.mxu0 %v1121
        %1306 = vmatpush1.bf16.msra.mxu0 %v1120
        %1307 = vmatprep.subr.bf16.mxu0 %v1105
        %1308 = vmatpush1.bf16.msra.mxu0 %v1104
        %1309 = vmatprep.subr.bf16.mxu0 %v1089
        %1310 = vmatpush1.bf16.msra.mxu0 %v1088
        %1311 = vmatprep.subr.bf16.mxu0 %v1073
        %1312 = vmatpush1.bf16.msra.mxu0 %v1072
        %1313 = vmatprep.subr.bf16.mxu0 %v1057
        %1314 = vmatpush1.bf16.msra.mxu0 %v1056
        %1315 = vmatprep.subr.bf16.mxu0 %v1041
        %1316 = vmatpush1.bf16.msra.mxu0 %v1040
        %1317 = vmatprep.subr.bf16.mxu0 0
        %1318 = vmatpush2.bf16.msra.mxu0 0
        %1319 = vmatprep.subr.bf16.mxu0 0
        %1320 = vmatpush2.bf16.msra.mxu0 0
        %1321 = vmatprep.subr.bf16.mxu0 0
        %1322 = vmatpush2.bf16.msra.mxu0 0
        %1323 = vmatprep.subr.bf16.mxu0 0
        %1324 = vmatpush2.bf16.msra.mxu0 0
        %1325 = vmatprep.subr.bf16.mxu0 0
        %1326 = vmatpush2.bf16.msra.mxu0 0
        %1327 = vmatprep.subr.bf16.mxu0 0
        %1328 = vmatpush2.bf16.msra.mxu0 0
        %1329 = vmatprep.subr.bf16.mxu0 0
        %1330 = vmatpush2.bf16.msra.mxu0 0
        %1331 = vmatprep.subr.bf16.mxu0 0
        %1332 = vmatpush2.bf16.msra.mxu0 0
        %1333 = vmatprep.mubr.bf16.mxu0 0
        %1334 = vmatmul.mubr.bf16.gmra.mxu0 %v1250
        %v1335 = vpop.f32.mrf.mxu0
        %v1336 = vadd.f32 %v651, %v1335
        %v1337 = vpop.f32.mrf.mxu0
        %v1338 = vadd.f32 %v655, %v1337
        %v1339 = vpop.f32.mrf.mxu0
        %v1340 = vpop.f32.mrf.mxu0
        %1341 = vdwg.mxu0
        %1342 = vmatprep.subr.bf16.mxu0 0
        %1343 = vmatpush1.bf16.msra.mxu0 0
        %1344 = vmatprep.subr.bf16.mxu0 %v1263
        %1345 = vmatpush1.bf16.msra.mxu0 %v1260
        %1346 = vmatprep.subr.bf16.mxu0 %v1123
        %1347 = vmatpush1.bf16.msra.mxu0 %v1122
        %1348 = vmatprep.subr.bf16.mxu0 %v1107
        %1349 = vmatpush1.bf16.msra.mxu0 %v1106
        %1350 = vmatprep.subr.bf16.mxu0 %v1091
        %1351 = vmatpush1.bf16.msra.mxu0 %v1090
        %1352 = vmatprep.subr.bf16.mxu0 %v1075
        %1353 = vmatpush1.bf16.msra.mxu0 %v1074
        %1354 = vmatprep.subr.bf16.mxu0 %v1059
        %1355 = vmatpush1.bf16.msra.mxu0 %v1058
        %1356 = vmatprep.subr.bf16.mxu0 %v1043
        %1357 = vmatpush1.bf16.msra.mxu0 %v1042
        %1358 = vmatprep.subr.bf16.mxu0 0
        %1359 = vmatpush2.bf16.msra.mxu0 0
        %1360 = vmatprep.subr.bf16.mxu0 0
        %1361 = vmatpush2.bf16.msra.mxu0 0
        %1362 = vmatprep.subr.bf16.mxu0 0
        %1363 = vmatpush2.bf16.msra.mxu0 0
        %1364 = vmatprep.subr.bf16.mxu0 0
        %1365 = vmatpush2.bf16.msra.mxu0 0
        %1366 = vmatprep.subr.bf16.mxu0 0
        %1367 = vmatpush2.bf16.msra.mxu0 0
        %1368 = vmatprep.subr.bf16.mxu0 0
        %1369 = vmatpush2.bf16.msra.mxu0 0
        %1370 = vmatprep.subr.bf16.mxu0 0
        %1371 = vmatpush2.bf16.msra.mxu0 0
        %1372 = vmatprep.subr.bf16.mxu0 0
        %1373 = vmatpush2.bf16.msra.mxu0 0
        %1374 = vmatprep.mubr.bf16.mxu0 0
        %1375 = vmatmul.mubr.bf16.gmra.mxu0 %v1250
        %v1376 = vpop.f32.mrf.mxu0
        %v1377 = vadd.f32 %v659, %v1376
        %v1378 = vpop.f32.mrf.mxu0
        %v1379 = vadd.f32 %v663, %v1378
        %v1380 = vpop.f32.mrf.mxu0
        %v1381 = vpop.f32.mrf.mxu0
        %1382 = vdwg.mxu0
        %1383 = vmatprep.subr.bf16.mxu0 0
        %1384 = vmatpush1.bf16.msra.mxu0 0
        %1385 = vmatprep.subr.bf16.mxu0 %v1269
        %1386 = vmatpush1.bf16.msra.mxu0 %v1266
        %1387 = vmatprep.subr.bf16.mxu0 %v1125
        %1388 = vmatpush1.bf16.msra.mxu0 %v1124
        %1389 = vmatprep.subr.bf16.mxu0 %v1109
        %1390 = vmatpush1.bf16.msra.mxu0 %v1108
        %1391 = vmatprep.subr.bf16.mxu0 %v1093
        %1392 = vmatpush1.bf16.msra.mxu0 %v1092
        %1393 = vmatprep.subr.bf16.mxu0 %v1077
        %1394 = vmatpush1.bf16.msra.mxu0 %v1076
        %1395 = vmatprep.subr.bf16.mxu0 %v1061
        %1396 = vmatpush1.bf16.msra.mxu0 %v1060
        %1397 = vmatprep.subr.bf16.mxu0 %v1045
        %1398 = vmatpush1.bf16.msra.mxu0 %v1044
        %1399 = vmatprep.subr.bf16.mxu0 0
        %1400 = vmatpush2.bf16.msra.mxu0 0
        %1401 = vmatprep.subr.bf16.mxu0 0
        %1402 = vmatpush2.bf16.msra.mxu0 0
        %1403 = vmatprep.subr.bf16.mxu0 0
        %1404 = vmatpush2.bf16.msra.mxu0 0
        %1405 = vmatprep.subr.bf16.mxu0 0
        %1406 = vmatpush2.bf16.msra.mxu0 0
        %1407 = vmatprep.subr.bf16.mxu0 0
        %1408 = vmatpush2.bf16.msra.mxu0 0
        %1409 = vmatprep.subr.bf16.mxu0 0
        %1410 = vmatpush2.bf16.msra.mxu0 0
        %1411 = vmatprep.subr.bf16.mxu0 0
        %1412 = vmatpush2.bf16.msra.mxu0 0
        %1413 = vmatprep.subr.bf16.mxu0 0
        %1414 = vmatpush2.bf16.msra.mxu0 0
        %1415 = vmatprep.mubr.bf16.mxu0 0
        %1416 = vmatmul.mubr.bf16.gmra.mxu0 %v1250
        %v1417 = vpop.f32.mrf.mxu0
        %v1418 = vadd.f32 %v667, %v1417
        %v1419 = vpop.f32.mrf.mxu0
        %v1420 = vadd.f32 %v671, %v1419
        %v1421 = vpop.f32.mrf.mxu0
        %v1422 = vpop.f32.mrf.mxu0
        %1423 = vdwg.mxu0
        %1424 = vmatprep.subr.bf16.mxu0 0
        %1425 = vmatpush1.bf16.msra.mxu0 0
        %1426 = vmatprep.subr.bf16.mxu0 %v1275
        %1427 = vmatpush1.bf16.msra.mxu0 %v1272
        %1428 = vmatprep.subr.bf16.mxu0 %v1127
        %1429 = vmatpush1.bf16.msra.mxu0 %v1126
        %1430 = vmatprep.subr.bf16.mxu0 %v1111
        %1431 = vmatpush1.bf16.msra.mxu0 %v1110
        %1432 = vmatprep.subr.bf16.mxu0 %v1095
        %1433 = vmatpush1.bf16.msra.mxu0 %v1094
        %1434 = vmatprep.subr.bf16.mxu0 %v1079
        %1435 = vmatpush1.bf16.msra.mxu0 %v1078
        %1436 = vmatprep.subr.bf16.mxu0 %v1063
        %1437 = vmatpush1.bf16.msra.mxu0 %v1062
        %1438 = vmatprep.subr.bf16.mxu0 %v1047
        %1439 = vmatpush1.bf16.msra.mxu0 %v1046
        %1440 = vmatprep.subr.bf16.mxu0 0
        %1441 = vmatpush2.bf16.msra.mxu0 0
        %1442 = vmatprep.subr.bf16.mxu0 0
        %1443 = vmatpush2.bf16.msra.mxu0 0
        %1444 = vmatprep.subr.bf16.mxu0 0
        %1445 = vmatpush2.bf16.msra.mxu0 0
        %1446 = vmatprep.subr.bf16.mxu0 0
        %1447 = vmatpush2.bf16.msra.mxu0 0
        %1448 = vmatprep.subr.bf16.mxu0 0
        %1449 = vmatpush2.bf16.msra.mxu0 0
        %1450 = vmatprep.subr.bf16.mxu0 0
        %1451 = vmatpush2.bf16.msra.mxu0 0
        %1452 = vmatprep.subr.bf16.mxu0 0
        %1453 = vmatpush2.bf16.msra.mxu0 0
        %1454 = vmatprep.subr.bf16.mxu0 0
        %1455 = vmatpush2.bf16.msra.mxu0 0
        %1456 = vmatprep.mubr.bf16.mxu0 0
        %1457 = vmatmul.mubr.bf16.gmra.mxu0 %v1250
        %v1458 = vpop.f32.mrf.mxu0
        %v1459 = vadd.f32 %v675, %v1458
        %v1460 = vpop.f32.mrf.mxu0
        %v1461 = vadd.f32 %v679, %v1460
        %v1462 = vpop.f32.mrf.mxu0
        %v1463 = vpop.f32.mrf.mxu0
        %1464 = vdwg.mxu0
        %1465 = vmatprep.subr.bf16.mxu0 0
        %1466 = vmatpush1.bf16.msra.mxu0 0
        %1467 = vmatprep.subr.bf16.mxu0 %v1281
        %1468 = vmatpush1.bf16.msra.mxu0 %v1278
        %1469 = vmatprep.subr.bf16.mxu0 %v1129
        %1470 = vmatpush1.bf16.msra.mxu0 %v1128
        %1471 = vmatprep.subr.bf16.mxu0 %v1113
        %1472 = vmatpush1.bf16.msra.mxu0 %v1112
        %1473 = vmatprep.subr.bf16.mxu0 %v1097
        %1474 = vmatpush1.bf16.msra.mxu0 %v1096
        %1475 = vmatprep.subr.bf16.mxu0 %v1081
        %1476 = vmatpush1.bf16.msra.mxu0 %v1080
        %1477 = vmatprep.subr.bf16.mxu0 %v1065
        %1478 = vmatpush1.bf16.msra.mxu0 %v1064
        %1479 = vmatprep.subr.bf16.mxu0 %v1049
        %1480 = vmatpush1.bf16.msra.mxu0 %v1048
        %1481 = vmatprep.subr.bf16.mxu0 0
        %1482 = vmatpush2.bf16.msra.mxu0 0
        %1483 = vmatprep.subr.bf16.mxu0 0
        %1484 = vmatpush2.bf16.msra.mxu0 0
        %1485 = vmatprep.subr.bf16.mxu0 0
        %1486 = vmatpush2.bf16.msra.mxu0 0
        %1487 = vmatprep.subr.bf16.mxu0 0
        %1488 = vmatpush2.bf16.msra.mxu0 0
        %1489 = vmatprep.subr.bf16.mxu0 0
        %1490 = vmatpush2.bf16.msra.mxu0 0
        %1491 = vmatprep.subr.bf16.mxu0 0
        %1492 = vmatpush2.bf16.msra.mxu0 0
        %1493 = vmatprep.subr.bf16.mxu0 0
        %1494 = vmatpush2.bf16.msra.mxu0 0
        %1495 = vmatprep.subr.bf16.mxu0 0
        %1496 = vmatpush2.bf16.msra.mxu0 0
        %1497 = vmatprep.mubr.bf16.mxu0 0
        %1498 = vmatmul.mubr.bf16.gmra.mxu0 %v1250
        %v1499 = vpop.f32.mrf.mxu0
        %v1500 = vadd.f32 %v683, %v1499
        %v1501 = vpop.f32.mrf.mxu0
        %v1502 = vadd.f32 %v687, %v1501
        %v1503 = vpop.f32.mrf.mxu0
        %v1504 = vpop.f32.mrf.mxu0
        %1505 = vdwg.mxu0
        %1506 = vmatprep.subr.bf16.mxu0 0
        %1507 = vmatpush1.bf16.msra.mxu0 0
        %1508 = vmatprep.subr.bf16.mxu0 %v1287
        %1509 = vmatpush1.bf16.msra.mxu0 %v1284
        %1510 = vmatprep.subr.bf16.mxu0 %v1131
        %1511 = vmatpush1.bf16.msra.mxu0 %v1130
        %1512 = vmatprep.subr.bf16.mxu0 %v1115
        %1513 = vmatpush1.bf16.msra.mxu0 %v1114
        %1514 = vmatprep.subr.bf16.mxu0 %v1099
        %1515 = vmatpush1.bf16.msra.mxu0 %v1098
        %1516 = vmatprep.subr.bf16.mxu0 %v1083
        %1517 = vmatpush1.bf16.msra.mxu0 %v1082
        %1518 = vmatprep.subr.bf16.mxu0 %v1067
        %1519 = vmatpush1.bf16.msra.mxu0 %v1066
        %1520 = vmatprep.subr.bf16.mxu0 %v1051
        %1521 = vmatpush1.bf16.msra.mxu0 %v1050
        %1522 = vmatprep.subr.bf16.mxu0 0
        %1523 = vmatpush2.bf16.msra.mxu0 0
        %1524 = vmatprep.subr.bf16.mxu0 0
        %1525 = vmatpush2.bf16.msra.mxu0 0
        %1526 = vmatprep.subr.bf16.mxu0 0
        %1527 = vmatpush2.bf16.msra.mxu0 0
        %1528 = vmatprep.subr.bf16.mxu0 0
        %1529 = vmatpush2.bf16.msra.mxu0 0
        %1530 = vmatprep.subr.bf16.mxu0 0
        %1531 = vmatpush2.bf16.msra.mxu0 0
        %1532 = vmatprep.subr.bf16.mxu0 0
        %1533 = vmatpush2.bf16.msra.mxu0 0
        %1534 = vmatprep.subr.bf16.mxu0 0
        %1535 = vmatpush2.bf16.msra.mxu0 0
        %1536 = vmatprep.subr.bf16.mxu0 0
        %1537 = vmatpush2.bf16.msra.mxu0 0
        %1538 = vmatprep.mubr.bf16.mxu0 0
        %1539 = vmatmul.mubr.bf16.gmra.mxu0 %v1250
        %v1540 = vpop.f32.mrf.mxu0
        %v1541 = vadd.f32 %v691, %v1540
        %v1542 = vpop.f32.mrf.mxu0
        %v1543 = vadd.f32 %v695, %v1542
        %v1544 = vpop.f32.mrf.mxu0
        %v1545 = vpop.f32.mrf.mxu0
        %1546 = vdwg.mxu0
        %1547 = vmatprep.subr.bf16.mxu0 0
        %1548 = vmatpush1.bf16.msra.mxu0 0
        %1549 = vmatprep.subr.bf16.mxu0 %v1293
        %1550 = vmatpush1.bf16.msra.mxu0 %v1290
        %1551 = vmatprep.subr.bf16.mxu0 %v1133
        %1552 = vmatpush1.bf16.msra.mxu0 %v1132
        %1553 = vmatprep.subr.bf16.mxu0 %v1117
        %1554 = vmatpush1.bf16.msra.mxu0 %v1116
        %1555 = vmatprep.subr.bf16.mxu0 %v1101
        %1556 = vmatpush1.bf16.msra.mxu0 %v1100
        %1557 = vmatprep.subr.bf16.mxu0 %v1085
        %1558 = vmatpush1.bf16.msra.mxu0 %v1084
        %1559 = vmatprep.subr.bf16.mxu0 %v1069
        %1560 = vmatpush1.bf16.msra.mxu0 %v1068
        %1561 = vmatprep.subr.bf16.mxu0 %v1053
        %1562 = vmatpush1.bf16.msra.mxu0 %v1052
        %1563 = vmatprep.subr.bf16.mxu0 0
        %1564 = vmatpush2.bf16.msra.mxu0 0
        %1565 = vmatprep.subr.bf16.mxu0 0
        %1566 = vmatpush2.bf16.msra.mxu0 0
        %1567 = vmatprep.subr.bf16.mxu0 0
        %1568 = vmatpush2.bf16.msra.mxu0 0
        %1569 = vmatprep.subr.bf16.mxu0 0
        %1570 = vmatpush2.bf16.msra.mxu0 0
        %1571 = vmatprep.subr.bf16.mxu0 0
        %1572 = vmatpush2.bf16.msra.mxu0 0
        %1573 = vmatprep.subr.bf16.mxu0 0
        %1574 = vmatpush2.bf16.msra.mxu0 0
        %1575 = vmatprep.subr.bf16.mxu0 0
        %1576 = vmatpush2.bf16.msra.mxu0 0
        %1577 = vmatprep.subr.bf16.mxu0 0
        %1578 = vmatpush2.bf16.msra.mxu0 0
        %1579 = vmatprep.mubr.bf16.mxu0 0
        %1580 = vmatmul.mubr.bf16.gmra.mxu0 %v1250
        %v1581 = vpop.f32.mrf.mxu0
        %v1582 = vadd.f32 %v699, %v1581
        %v1583 = vpop.f32.mrf.mxu0
        %v1584 = vadd.f32 %v703, %v1583
        %v1585 = vpop.f32.mrf.mxu0
        %v1586 = vpop.f32.mrf.mxu0
        %1587 = vdwg.mxu0
        %1588 = vmatprep.subr.bf16.mxu0 0
        %1589 = vmatpush1.bf16.msra.mxu0 0
        %1590 = vmatprep.subr.bf16.mxu0 %v1299
        %1591 = vmatpush1.bf16.msra.mxu0 %v1296
        %1592 = vmatprep.subr.bf16.mxu0 %v1135
        %1593 = vmatpush1.bf16.msra.mxu0 %v1134
        %1594 = vmatprep.subr.bf16.mxu0 %v1119
        %1595 = vmatpush1.bf16.msra.mxu0 %v1118
        %1596 = vmatprep.subr.bf16.mxu0 %v1103
        %1597 = vmatpush1.bf16.msra.mxu0 %v1102
        %1598 = vmatprep.subr.bf16.mxu0 %v1087
        %1599 = vmatpush1.bf16.msra.mxu0 %v1086
        %1600 = vmatprep.subr.bf16.mxu0 %v1071
        %1601 = vmatpush1.bf16.msra.mxu0 %v1070
        %1602 = vmatprep.subr.bf16.mxu0 %v1055
        %1603 = vmatpush1.bf16.msra.mxu0 %v1054
        %1604 = vmatprep.subr.bf16.mxu0 0
        %1605 = vmatpush2.bf16.msra.mxu0 0
        %1606 = vmatprep.subr.bf16.mxu0 0
        %1607 = vmatpush2.bf16.msra.mxu0 0
        %1608 = vmatprep.subr.bf16.mxu0 0
        %1609 = vmatpush2.bf16.msra.mxu0 0
        %1610 = vmatprep.subr.bf16.mxu0 0
        %1611 = vmatpush2.bf16.msra.mxu0 0
        %1612 = vmatprep.subr.bf16.mxu0 0
        %1613 = vmatpush2.bf16.msra.mxu0 0
        %1614 = vmatprep.subr.bf16.mxu0 0
        %1615 = vmatpush2.bf16.msra.mxu0 0
        %1616 = vmatprep.subr.bf16.mxu0 0
        %1617 = vmatpush2.bf16.msra.mxu0 0
        %1618 = vmatprep.subr.bf16.mxu0 0
        %1619 = vmatpush2.bf16.msra.mxu0 0
        %1620 = vmatprep.mubr.bf16.mxu0 0
        %1621 = vmatmul.mubr.bf16.gmra.mxu0 %v1250
        %v1622 = vpop.f32.mrf.mxu0
        %v1623 = vadd.f32 %v707, %v1622
        %v1624 = vpop.f32.mrf.mxu0
        %v1625 = vadd.f32 %v711, %v1624
        %v1626 = vpop.f32.mrf.mxu0
        %v1627 = vpop.f32.mrf.mxu0
        %1628 = vdwg.mxu0
        %v1629 = vpack.c.bf16 %v1336, %v1336
        %v1630 = vpack.c.bf16 %v1338, %v1338
        %v1631 = vpack.c.bf16 %v1377, %v1377
        %v1632 = vpack.c.bf16 %v1379, %v1379
        %v1633 = vpack.c.bf16 %v1418, %v1418
        %v1634 = vpack.c.bf16 %v1420, %v1420
        %v1635 = vpack.c.bf16 %v1459, %v1459
        %v1636 = vpack.c.bf16 %v1461, %v1461
        %v1637 = vpack.c.bf16 %v1500, %v1500
        %v1638 = vpack.c.bf16 %v1502, %v1502
        %v1639 = vpack.c.bf16 %v1541, %v1541
        %v1640 = vpack.c.bf16 %v1543, %v1543
        %v1641 = vpack.c.bf16 %v1582, %v1582
        %v1642 = vpack.c.bf16 %v1584, %v1584
        %v1643 = vpack.c.bf16 %v1623, %v1623
        %v1644 = vpack.c.bf16 %v1625, %v1625
        %v1645 = vmax.bf16 %v1629, 0
        %v1646 = vmax.bf16 %v1630, 0
        %v1647 = vmax.bf16 %v1631, 0
        %v1648 = vmax.bf16 %v1632, 0
        %v1649 = vmax.bf16 %v1633, 0
        %v1650 = vmax.bf16 %v1634, 0
        %v1651 = vmax.bf16 %v1635, 0
        %v1652 = vmax.bf16 %v1636, 0
        %v1653 = vmax.bf16 %v1637, 0
        %v1654 = vmax.bf16 %v1638, 0
        %v1655 = vmax.bf16 %v1639, 0
        %v1656 = vmax.bf16 %v1640, 0
        %v1657 = vmax.bf16 %v1641, 0
        %v1658 = vmax.bf16 %v1642, 0
        %v1659 = vmax.bf16 %v1643, 0
        %v1660 = vmax.bf16 %v1644, 0
        %v1661 = vld [vmem:[#allocation8] sm:$0xff]
        %v1662 = vld [vmem:[#allocation8 + $0x8] sm:$0xff]
        %v1663 = vld [vmem:[#allocation8 + $0x10] sm:$0xff]
        %v1664 = vld [vmem:[#allocation8 + $0x18] sm:$0xff]
        %v1665 = vld [vmem:[#allocation8 + $0x20] sm:$0xff]
        %v1666 = vld [vmem:[#allocation8 + $0x28] sm:$0xff]
        %v1667 = vld [vmem:[#allocation8 + $0x30] sm:$0xff]
        %v1668 = vld [vmem:[#allocation8 + $0x38] sm:$0xff]
        %v1669 = vld [vmem:[#allocation8 + $0x40] sm:$0xff]
        %v1670 = vld [vmem:[#allocation8 + $0x48] sm:$0xff]
        %v1671 = vld [vmem:[#allocation8 + $0x50] sm:$0xff]
        %v1672 = vld [vmem:[#allocation8 + $0x58] sm:$0xff]
        %v1673 = vld [vmem:[#allocation8 + $0x60] sm:$0xff]
        %v1674 = vld [vmem:[#allocation8 + $0x68] sm:$0xff]
        %v1675 = vld [vmem:[#allocation8 + $0x70] sm:$0xff]
        %v1676 = vld [vmem:[#allocation8 + $0x78] sm:$0xff]
        %v1677 = vld [vmem:[#allocation8 + $0x80] sm:$0xff]
        %v1678 = vld [vmem:[#allocation8 + $0x88] sm:$0xff]
        %v1679 = vld [vmem:[#allocation8 + $0x90] sm:$0xff]
        %v1680 = vld [vmem:[#allocation8 + $0x98] sm:$0xff]
        %v1681 = vld [vmem:[#allocation8 + $0xa0] sm:$0xff]
        %v1682 = vld [vmem:[#allocation8 + $0xa8] sm:$0xff]
        %v1683 = vld [vmem:[#allocation8 + $0xb0] sm:$0xff]
        %v1684 = vld [vmem:[#allocation8 + $0xb8] sm:$0xff]
        %v1685 = vld [vmem:[#allocation8 + $0xc0] sm:$0xff]
        %v1686 = vld [vmem:[#allocation8 + $0xc8] sm:$0xff]
        %v1687 = vld [vmem:[#allocation8 + $0xd0] sm:$0xff]
        %v1688 = vld [vmem:[#allocation8 + $0xd8] sm:$0xff]
        %v1689 = vld [vmem:[#allocation8 + $0xe0] sm:$0xff]
        %v1690 = vld [vmem:[#allocation8 + $0xe8] sm:$0xff]
        %v1691 = vld [vmem:[#allocation8 + $0xf0] sm:$0xff]
        %v1692 = vld [vmem:[#allocation8 + $0xf8] sm:$0xff]
        %v1693 = vld [vmem:[#allocation8 + $0x100] sm:$0xff]
        %v1694 = vld [vmem:[#allocation8 + $0x108] sm:$0xff]
        %v1695 = vld [vmem:[#allocation8 + $0x110] sm:$0xff]
        %v1696 = vld [vmem:[#allocation8 + $0x118] sm:$0xff]
        %v1697 = vld [vmem:[#allocation8 + $0x120] sm:$0xff]
        %v1698 = vld [vmem:[#allocation8 + $0x128] sm:$0xff]
        %v1699 = vld [vmem:[#allocation8 + $0x130] sm:$0xff]
        %v1700 = vld [vmem:[#allocation8 + $0x138] sm:$0xff]
        %v1701 = vld [vmem:[#allocation8 + $0x140] sm:$0xff]
        %v1702 = vld [vmem:[#allocation8 + $0x148] sm:$0xff]
        %v1703 = vld [vmem:[#allocation8 + $0x150] sm:$0xff]
        %v1704 = vld [vmem:[#allocation8 + $0x158] sm:$0xff]
        %v1705 = vld [vmem:[#allocation8 + $0x160] sm:$0xff]
        %v1706 = vld [vmem:[#allocation8 + $0x168] sm:$0xff]
        %v1707 = vld [vmem:[#allocation8 + $0x170] sm:$0xff]
        %v1708 = vld [vmem:[#allocation8 + $0x178] sm:$0xff]
        %v1709 = vld [vmem:[#allocation8 + $0x180] sm:$0xff]
        %v1710 = vld [vmem:[#allocation8 + $0x188] sm:$0xff]
        %v1711 = vld [vmem:[#allocation8 + $0x190] sm:$0xff]
        %v1712 = vld [vmem:[#allocation8 + $0x198] sm:$0xff]
        %v1713 = vld [vmem:[#allocation8 + $0x1a0] sm:$0xff]
        %v1714 = vld [vmem:[#allocation8 + $0x1a8] sm:$0xff]
        %v1715 = vld [vmem:[#allocation8 + $0x1b0] sm:$0xff]
        %v1716 = vld [vmem:[#allocation8 + $0x1b8] sm:$0xff]
        %v1717 = vld [vmem:[#allocation8 + $0x1c0] sm:$0xff]
        %v1718 = vld [vmem:[#allocation8 + $0x1c8] sm:$0xff]
        %v1719 = vld [vmem:[#allocation8 + $0x1d0] sm:$0xff]
        %v1720 = vld [vmem:[#allocation8 + $0x1d8] sm:$0xff]
        %v1721 = vld [vmem:[#allocation8 + $0x1e0] sm:$0xff]
        %v1722 = vld [vmem:[#allocation8 + $0x1e8] sm:$0xff]
        %v1723 = vld [vmem:[#allocation8 + $0x1f0] sm:$0xff]
        %v1724 = vld [vmem:[#allocation8 + $0x1f8] sm:$0xff]
        %v1725 = vld [vmem:[#allocation8 + $0x200] sm:$0xff]
        %v1726 = vld [vmem:[#allocation8 + $0x208] sm:$0xff]
        %v1727 = vld [vmem:[#allocation8 + $0x210] sm:$0xff]
        %v1728 = vld [vmem:[#allocation8 + $0x218] sm:$0xff]
        %v1729 = vld [vmem:[#allocation8 + $0x220] sm:$0xff]
        %v1730 = vld [vmem:[#allocation8 + $0x228] sm:$0xff]
        %v1731 = vld [vmem:[#allocation8 + $0x230] sm:$0xff]
        %v1732 = vld [vmem:[#allocation8 + $0x238] sm:$0xff]
        %v1733 = vld [vmem:[#allocation8 + $0x240] sm:$0xff]
        %v1734 = vld [vmem:[#allocation8 + $0x248] sm:$0xff]
        %v1735 = vld [vmem:[#allocation8 + $0x250] sm:$0xff]
        %v1736 = vld [vmem:[#allocation8 + $0x258] sm:$0xff]
        %v1737 = vld [vmem:[#allocation8 + $0x260] sm:$0xff]
        %v1738 = vld [vmem:[#allocation8 + $0x268] sm:$0xff]
        %v1739 = vld [vmem:[#allocation8 + $0x270] sm:$0xff]
        %v1740 = vld [vmem:[#allocation8 + $0x278] sm:$0xff]
        %v1741 = vld [vmem:[#allocation8 + $0x280] sm:$0xff]
        %v1742 = vld [vmem:[#allocation8 + $0x288] sm:$0xff]
        %v1743 = vld [vmem:[#allocation8 + $0x290] sm:$0xff]
        %v1744 = vld [vmem:[#allocation8 + $0x298] sm:$0xff]
        %v1745 = vld [vmem:[#allocation8 + $0x2a0] sm:$0xff]
        %v1746 = vld [vmem:[#allocation8 + $0x2a8] sm:$0xff]
        %v1747 = vld [vmem:[#allocation8 + $0x2b0] sm:$0xff]
        %v1748 = vld [vmem:[#allocation8 + $0x2b8] sm:$0xff]
        %v1749 = vld [vmem:[#allocation8 + $0x2c0] sm:$0xff]
        %v1750 = vld [vmem:[#allocation8 + $0x2c8] sm:$0xff]
        %v1751 = vld [vmem:[#allocation8 + $0x2d0] sm:$0xff]
        %v1752 = vld [vmem:[#allocation8 + $0x2d8] sm:$0xff]
        %v1753 = vld [vmem:[#allocation8 + $0x2e0] sm:$0xff]
        %v1754 = vld [vmem:[#allocation8 + $0x2e8] sm:$0xff]
        %v1755 = vld [vmem:[#allocation8 + $0x2f0] sm:$0xff]
        %v1756 = vld [vmem:[#allocation8 + $0x2f8] sm:$0xff]
        %v1757 = vld [vmem:[#allocation8 + $0x300] sm:$0xff]
        %v1758 = vld [vmem:[#allocation8 + $0x308] sm:$0xff]
        %v1759 = vld [vmem:[#allocation8 + $0x310] sm:$0xff]
        %v1760 = vld [vmem:[#allocation8 + $0x318] sm:$0xff]
        %v1761 = vld [vmem:[#allocation8 + $0x320] sm:$0xff]
        %v1762 = vld [vmem:[#allocation8 + $0x328] sm:$0xff]
        %v1763 = vld [vmem:[#allocation8 + $0x330] sm:$0xff]
        %v1764 = vld [vmem:[#allocation8 + $0x338] sm:$0xff]
        %v1765 = vld [vmem:[#allocation8 + $0x340] sm:$0xff]
        %v1766 = vld [vmem:[#allocation8 + $0x348] sm:$0xff]
        %v1767 = vld [vmem:[#allocation8 + $0x350] sm:$0xff]
        %v1768 = vld [vmem:[#allocation8 + $0x358] sm:$0xff]
        %v1769 = vld [vmem:[#allocation8 + $0x360] sm:$0xff]
        %v1770 = vld [vmem:[#allocation8 + $0x368] sm:$0xff]
        %v1771 = vld [vmem:[#allocation8 + $0x370] sm:$0xff]
        %v1772 = vld [vmem:[#allocation8 + $0x378] sm:$0xff]
        %v1773 = vld [vmem:[#allocation8 + $0x380] sm:$0xff]
        %v1774 = vld [vmem:[#allocation8 + $0x388] sm:$0xff]
        %v1775 = vld [vmem:[#allocation8 + $0x390] sm:$0xff]
        %v1776 = vld [vmem:[#allocation8 + $0x398] sm:$0xff]
        %v1777 = vld [vmem:[#allocation8 + $0x3a0] sm:$0xff]
        %v1778 = vld [vmem:[#allocation8 + $0x3a8] sm:$0xff]
        %v1779 = vld [vmem:[#allocation8 + $0x3b0] sm:$0xff]
        %v1780 = vld [vmem:[#allocation8 + $0x3b8] sm:$0xff]
        %v1781 = vld [vmem:[#allocation8 + $0x3c0] sm:$0xff]
        %v1782 = vld [vmem:[#allocation8 + $0x3c8] sm:$0xff]
        %v1783 = vld [vmem:[#allocation8 + $0x3d0] sm:$0xff]
        %v1784 = vld [vmem:[#allocation8 + $0x3d8] sm:$0xff]
        %v1785 = vld [vmem:[#allocation8 + $0x3e0] sm:$0xff]
        %v1786 = vld [vmem:[#allocation8 + $0x3e8] sm:$0xff]
        %v1787 = vld [vmem:[#allocation8 + $0x3f0] sm:$0xff]
        %v1788 = vld [vmem:[#allocation8 + $0x3f8] sm:$0xff]
        %v1789 = vld [vmem:[#allocation8 + $0x400] sm:$0xff]
        %v1790 = vld [vmem:[#allocation8 + $0x408] sm:$0xff]
        %v1791 = vld [vmem:[#allocation8 + $0x410] sm:$0xff]
        %v1792 = vld [vmem:[#allocation8 + $0x418] sm:$0xff]
        %v1793 = vld [vmem:[#allocation8 + $0x420] sm:$0xff]
        %v1794 = vld [vmem:[#allocation8 + $0x428] sm:$0xff]
        %v1795 = vld [vmem:[#allocation8 + $0x430] sm:$0xff]
        %v1796 = vld [vmem:[#allocation8 + $0x438] sm:$0xff]
        %v1797 = vld [vmem:[#allocation8 + $0x440] sm:$0xff]
        %v1798 = vld [vmem:[#allocation8 + $0x448] sm:$0xff]
        %v1799 = vld [vmem:[#allocation8 + $0x450] sm:$0xff]
        %v1800 = vld [vmem:[#allocation8 + $0x458] sm:$0xff]
        %v1801 = vld [vmem:[#allocation8 + $0x460] sm:$0xff]
        %v1802 = vld [vmem:[#allocation8 + $0x468] sm:$0xff]
        %v1803 = vld [vmem:[#allocation8 + $0x470] sm:$0xff]
        %v1804 = vld [vmem:[#allocation8 + $0x478] sm:$0xff]
        %v1805 = vld [vmem:[#allocation8 + $0x480] sm:$0xff]
        %v1806 = vld [vmem:[#allocation8 + $0x488] sm:$0xff]
        %v1807 = vld [vmem:[#allocation8 + $0x490] sm:$0xff]
        %v1808 = vld [vmem:[#allocation8 + $0x498] sm:$0xff]
        %v1809 = vld [vmem:[#allocation8 + $0x4a0] sm:$0xff]
        %v1810 = vld [vmem:[#allocation8 + $0x4a8] sm:$0xff]
        %v1811 = vld [vmem:[#allocation8 + $0x4b0] sm:$0xff]
        %v1812 = vld [vmem:[#allocation8 + $0x4b8] sm:$0xff]
        %v1813 = vld [vmem:[#allocation8 + $0x4c0] sm:$0xff]
        %v1814 = vld [vmem:[#allocation8 + $0x4c8] sm:$0xff]
        %v1815 = vld [vmem:[#allocation8 + $0x4d0] sm:$0xff]
        %v1816 = vld [vmem:[#allocation8 + $0x4d8] sm:$0xff]
        %v1817 = vld [vmem:[#allocation8 + $0x4e0] sm:$0xff]
        %v1818 = vld [vmem:[#allocation8 + $0x4e8] sm:$0xff]
        %v1819 = vld [vmem:[#allocation8 + $0x4f0] sm:$0xff]
        %v1820 = vld [vmem:[#allocation8 + $0x4f8] sm:$0xff]
        %v1821 = vld [vmem:[#allocation8 + $0x500] sm:$0xff]
        %v1822 = vld [vmem:[#allocation8 + $0x508] sm:$0xff]
        %v1823 = vld [vmem:[#allocation8 + $0x510] sm:$0xff]
        %v1824 = vld [vmem:[#allocation8 + $0x518] sm:$0xff]
        %v1825 = vld [vmem:[#allocation8 + $0x520] sm:$0xff]
        %v1826 = vld [vmem:[#allocation8 + $0x528] sm:$0xff]
        %v1827 = vld [vmem:[#allocation8 + $0x530] sm:$0xff]
        %v1828 = vld [vmem:[#allocation8 + $0x538] sm:$0xff]
        %v1829 = vld [vmem:[#allocation8 + $0x540] sm:$0xff]
        %v1830 = vld [vmem:[#allocation8 + $0x548] sm:$0xff]
        %v1831 = vld [vmem:[#allocation8 + $0x550] sm:$0xff]
        %v1832 = vld [vmem:[#allocation8 + $0x558] sm:$0xff]
        %v1833 = vld [vmem:[#allocation8 + $0x560] sm:$0xff]
        %v1834 = vld [vmem:[#allocation8 + $0x568] sm:$0xff]
        %v1835 = vld [vmem:[#allocation8 + $0x570] sm:$0xff]
        %v1836 = vld [vmem:[#allocation8 + $0x578] sm:$0xff]
        %v1837 = vld [vmem:[#allocation8 + $0x580] sm:$0xff]
        %v1838 = vld [vmem:[#allocation8 + $0x588] sm:$0xff]
        %v1839 = vld [vmem:[#allocation8 + $0x590] sm:$0xff]
        %v1840 = vld [vmem:[#allocation8 + $0x598] sm:$0xff]
        %v1841 = vld [vmem:[#allocation8 + $0x5a0] sm:$0xff]
        %v1842 = vld [vmem:[#allocation8 + $0x5a8] sm:$0xff]
        %v1843 = vld [vmem:[#allocation8 + $0x5b0] sm:$0xff]
        %v1844 = vld [vmem:[#allocation8 + $0x5b8] sm:$0xff]
        %v1845 = vld [vmem:[#allocation8 + $0x5c0] sm:$0xff]
        %v1846 = vld [vmem:[#allocation8 + $0x5c8] sm:$0xff]
        %v1847 = vld [vmem:[#allocation8 + $0x5d0] sm:$0xff]
        %v1848 = vld [vmem:[#allocation8 + $0x5d8] sm:$0xff]
        %v1849 = vld [vmem:[#allocation8 + $0x5e0] sm:$0xff]
        %v1850 = vld [vmem:[#allocation8 + $0x5e8] sm:$0xff]
        %v1851 = vld [vmem:[#allocation8 + $0x5f0] sm:$0xff]
        %v1852 = vld [vmem:[#allocation8 + $0x5f8] sm:$0xff]
        %v1853 = vld [vmem:[#allocation8 + $0x600] sm:$0xff]
        %v1854 = vld [vmem:[#allocation8 + $0x608] sm:$0xff]
        %v1855 = vld [vmem:[#allocation8 + $0x610] sm:$0xff]
        %v1856 = vld [vmem:[#allocation8 + $0x618] sm:$0xff]
        %v1857 = vld [vmem:[#allocation8 + $0x620] sm:$0xff]
        %v1858 = vld [vmem:[#allocation8 + $0x628] sm:$0xff]
        %v1859 = vld [vmem:[#allocation8 + $0x630] sm:$0xff]
        %v1860 = vld [vmem:[#allocation8 + $0x638] sm:$0xff]
        %v1861 = vld [vmem:[#allocation8 + $0x640] sm:$0xff]
        %v1862 = vld [vmem:[#allocation8 + $0x648] sm:$0xff]
        %v1863 = vld [vmem:[#allocation8 + $0x650] sm:$0xff]
        %v1864 = vld [vmem:[#allocation8 + $0x658] sm:$0xff]
        %v1865 = vld [vmem:[#allocation8 + $0x660] sm:$0xff]
        %v1866 = vld [vmem:[#allocation8 + $0x668] sm:$0xff]
        %v1867 = vld [vmem:[#allocation8 + $0x670] sm:$0xff]
        %v1868 = vld [vmem:[#allocation8 + $0x678] sm:$0xff]
        %v1869 = vld [vmem:[#allocation8 + $0x680] sm:$0xff]
        %v1870 = vld [vmem:[#allocation8 + $0x688] sm:$0xff]
        %v1871 = vld [vmem:[#allocation8 + $0x690] sm:$0xff]
        %v1872 = vld [vmem:[#allocation8 + $0x698] sm:$0xff]
        %v1873 = vld [vmem:[#allocation8 + $0x6a0] sm:$0xff]
        %v1874 = vld [vmem:[#allocation8 + $0x6a8] sm:$0xff]
        %v1875 = vld [vmem:[#allocation8 + $0x6b0] sm:$0xff]
        %v1876 = vld [vmem:[#allocation8 + $0x6b8] sm:$0xff]
        %v1877 = vld [vmem:[#allocation8 + $0x6c0] sm:$0xff]
        %v1878 = vld [vmem:[#allocation8 + $0x6c8] sm:$0xff]
        %v1879 = vld [vmem:[#allocation8 + $0x6d0] sm:$0xff]
        %v1880 = vld [vmem:[#allocation8 + $0x6d8] sm:$0xff]
        %v1881 = vld [vmem:[#allocation8 + $0x6e0] sm:$0xff]
        %v1882 = vld [vmem:[#allocation8 + $0x6e8] sm:$0xff]
        %v1883 = vld [vmem:[#allocation8 + $0x6f0] sm:$0xff]
        %v1884 = vld [vmem:[#allocation8 + $0x6f8] sm:$0xff]
        %v1885 = vld [vmem:[#allocation8 + $0x700] sm:$0xff]
        %v1886 = vld [vmem:[#allocation8 + $0x708] sm:$0xff]
        %v1887 = vld [vmem:[#allocation8 + $0x710] sm:$0xff]
        %v1888 = vld [vmem:[#allocation8 + $0x718] sm:$0xff]
        %v1889 = vld [vmem:[#allocation8 + $0x720] sm:$0xff]
        %v1890 = vld [vmem:[#allocation8 + $0x728] sm:$0xff]
        %v1891 = vld [vmem:[#allocation8 + $0x730] sm:$0xff]
        %v1892 = vld [vmem:[#allocation8 + $0x738] sm:$0xff]
        %v1893 = vld [vmem:[#allocation8 + $0x740] sm:$0xff]
        %v1894 = vld [vmem:[#allocation8 + $0x748] sm:$0xff]
        %v1895 = vld [vmem:[#allocation8 + $0x750] sm:$0xff]
        %v1896 = vld [vmem:[#allocation8 + $0x758] sm:$0xff]
        %v1897 = vld [vmem:[#allocation8 + $0x760] sm:$0xff]
        %v1898 = vld [vmem:[#allocation8 + $0x768] sm:$0xff]
        %v1899 = vld [vmem:[#allocation8 + $0x770] sm:$0xff]
        %v1900 = vld [vmem:[#allocation8 + $0x778] sm:$0xff]
        %v1901 = vld [vmem:[#allocation8 + $0x780] sm:$0xff]
        %v1902 = vld [vmem:[#allocation8 + $0x788] sm:$0xff]
        %v1903 = vld [vmem:[#allocation8 + $0x790] sm:$0xff]
        %v1904 = vld [vmem:[#allocation8 + $0x798] sm:$0xff]
        %v1905 = vld [vmem:[#allocation8 + $0x7a0] sm:$0xff]
        %v1906 = vld [vmem:[#allocation8 + $0x7a8] sm:$0xff]
        %v1907 = vld [vmem:[#allocation8 + $0x7b0] sm:$0xff]
        %v1908 = vld [vmem:[#allocation8 + $0x7b8] sm:$0xff]
        %v1909 = vld [vmem:[#allocation8 + $0x7c0] sm:$0xff]
        %v1910 = vld [vmem:[#allocation8 + $0x7c8] sm:$0xff]
        %v1911 = vld [vmem:[#allocation8 + $0x7d0] sm:$0xff]
        %v1912 = vld [vmem:[#allocation8 + $0x7d8] sm:$0xff]
        %v1913 = vld [vmem:[#allocation8 + $0x7e0] sm:$0xff]
        %v1914 = vld [vmem:[#allocation8 + $0x7e8] sm:$0xff]
        %v1915 = vld [vmem:[#allocation8 + $0x7f0] sm:$0xff]
        %v1916 = vld [vmem:[#allocation8 + $0x7f8] sm:$0xff]
        %v1917 = vld [vmem:[#allocation8 + $0x800] sm:$0xff]
        %v1918 = vld [vmem:[#allocation8 + $0x808] sm:$0xff]
        %v1919 = vld [vmem:[#allocation8 + $0x810] sm:$0xff]
        %v1920 = vld [vmem:[#allocation8 + $0x818] sm:$0xff]
        %v1921 = vld [vmem:[#allocation8 + $0x820] sm:$0xff]
        %v1922 = vld [vmem:[#allocation8 + $0x828] sm:$0xff]
        %v1923 = vld [vmem:[#allocation8 + $0x830] sm:$0xff]
        %v1924 = vld [vmem:[#allocation8 + $0x838] sm:$0xff]
        %v1925 = vld [vmem:[#allocation8 + $0x840] sm:$0xff]
        %v1926 = vld [vmem:[#allocation8 + $0x848] sm:$0xff]
        %v1927 = vld [vmem:[#allocation8 + $0x850] sm:$0xff]
        %v1928 = vld [vmem:[#allocation8 + $0x858] sm:$0xff]
        %v1929 = vld [vmem:[#allocation8 + $0x860] sm:$0xff]
        %v1930 = vld [vmem:[#allocation8 + $0x868] sm:$0xff]
        %v1931 = vld [vmem:[#allocation8 + $0x870] sm:$0xff]
        %v1932 = vld [vmem:[#allocation8 + $0x878] sm:$0xff]
        %v1933 = vld [vmem:[#allocation8 + $0x880] sm:$0xff]
        %v1934 = vld [vmem:[#allocation8 + $0x888] sm:$0xff]
        %v1935 = vld [vmem:[#allocation8 + $0x890] sm:$0xff]
        %v1936 = vld [vmem:[#allocation8 + $0x898] sm:$0xff]
        %v1937 = vld [vmem:[#allocation8 + $0x8a0] sm:$0xff]
        %v1938 = vld [vmem:[#allocation8 + $0x8a8] sm:$0xff]
        %v1939 = vld [vmem:[#allocation8 + $0x8b0] sm:$0xff]
        %v1940 = vld [vmem:[#allocation8 + $0x8b8] sm:$0xff]
        %v1941 = vld [vmem:[#allocation8 + $0x8c0] sm:$0xff]
        %v1942 = vld [vmem:[#allocation8 + $0x8c8] sm:$0xff]
        %v1943 = vld [vmem:[#allocation8 + $0x8d0] sm:$0xff]
        %v1944 = vld [vmem:[#allocation8 + $0x8d8] sm:$0xff]
        %v1945 = vld [vmem:[#allocation8 + $0x8e0] sm:$0xff]
        %v1946 = vld [vmem:[#allocation8 + $0x8e8] sm:$0xff]
        %v1947 = vld [vmem:[#allocation8 + $0x8f0] sm:$0xff]
        %v1948 = vld [vmem:[#allocation8 + $0x8f8] sm:$0xff]
        %v1949 = vld [vmem:[#allocation8 + $0x900] sm:$0xff]
        %v1950 = vld [vmem:[#allocation8 + $0x908] sm:$0xff]
        %v1951 = vld [vmem:[#allocation8 + $0x910] sm:$0xff]
        %v1952 = vld [vmem:[#allocation8 + $0x918] sm:$0xff]
        %v1953 = vld [vmem:[#allocation8 + $0x920] sm:$0xff]
        %v1954 = vld [vmem:[#allocation8 + $0x928] sm:$0xff]
        %v1955 = vld [vmem:[#allocation8 + $0x930] sm:$0xff]
        %v1956 = vld [vmem:[#allocation8 + $0x938] sm:$0xff]
        %v1957 = vld [vmem:[#allocation8 + $0x940] sm:$0xff]
        %v1958 = vld [vmem:[#allocation8 + $0x948] sm:$0xff]
        %v1959 = vld [vmem:[#allocation8 + $0x950] sm:$0xff]
        %v1960 = vld [vmem:[#allocation8 + $0x958] sm:$0xff]
        %v1961 = vld [vmem:[#allocation8 + $0x960] sm:$0xff]
        %v1962 = vld [vmem:[#allocation8 + $0x968] sm:$0xff]
        %v1963 = vld [vmem:[#allocation8 + $0x970] sm:$0xff]
        %v1964 = vld [vmem:[#allocation8 + $0x978] sm:$0xff]
        %v1965 = vld [vmem:[#allocation8 + $0x980] sm:$0xff]
        %v1966 = vld [vmem:[#allocation8 + $0x988] sm:$0xff]
        %v1967 = vld [vmem:[#allocation8 + $0x990] sm:$0xff]
        %v1968 = vld [vmem:[#allocation8 + $0x998] sm:$0xff]
        %v1969 = vld [vmem:[#allocation8 + $0x9a0] sm:$0xff]
        %v1970 = vld [vmem:[#allocation8 + $0x9a8] sm:$0xff]
        %v1971 = vld [vmem:[#allocation8 + $0x9b0] sm:$0xff]
        %v1972 = vld [vmem:[#allocation8 + $0x9b8] sm:$0xff]
        %v1973 = vld [vmem:[#allocation8 + $0x9c0] sm:$0xff]
        %v1974 = vld [vmem:[#allocation8 + $0x9c8] sm:$0xff]
        %v1975 = vld [vmem:[#allocation8 + $0x9d0] sm:$0xff]
        %v1976 = vld [vmem:[#allocation8 + $0x9d8] sm:$0xff]
        %v1977 = vld [vmem:[#allocation8 + $0x9e0] sm:$0xff]
        %v1978 = vld [vmem:[#allocation8 + $0x9e8] sm:$0xff]
        %v1979 = vld [vmem:[#allocation8 + $0x9f0] sm:$0xff]
        %v1980 = vld [vmem:[#allocation8 + $0x9f8] sm:$0xff]
        %v1981 = vld [vmem:[#allocation8 + $0xa00] sm:$0xff]
        %v1982 = vld [vmem:[#allocation8 + $0xa08] sm:$0xff]
        %v1983 = vld [vmem:[#allocation8 + $0xa10] sm:$0xff]
        %v1984 = vld [vmem:[#allocation8 + $0xa18] sm:$0xff]
        %v1985 = vld [vmem:[#allocation8 + $0xa20] sm:$0xff]
        %v1986 = vld [vmem:[#allocation8 + $0xa28] sm:$0xff]
        %v1987 = vld [vmem:[#allocation8 + $0xa30] sm:$0xff]
        %v1988 = vld [vmem:[#allocation8 + $0xa38] sm:$0xff]
        %v1989 = vld [vmem:[#allocation8 + $0xa40] sm:$0xff]
        %v1990 = vld [vmem:[#allocation8 + $0xa48] sm:$0xff]
        %v1991 = vld [vmem:[#allocation8 + $0xa50] sm:$0xff]
        %v1992 = vld [vmem:[#allocation8 + $0xa58] sm:$0xff]
        %v1993 = vld [vmem:[#allocation8 + $0xa60] sm:$0xff]
        %v1994 = vld [vmem:[#allocation8 + $0xa68] sm:$0xff]
        %v1995 = vld [vmem:[#allocation8 + $0xa70] sm:$0xff]
        %v1996 = vld [vmem:[#allocation8 + $0xa78] sm:$0xff]
        %v1997 = vld [vmem:[#allocation8 + $0xa80] sm:$0xff]
        %v1998 = vld [vmem:[#allocation8 + $0xa88] sm:$0xff]
        %v1999 = vld [vmem:[#allocation8 + $0xa90] sm:$0xff]
        %v2000 = vld [vmem:[#allocation8 + $0xa98] sm:$0xff]
        %v2001 = vld [vmem:[#allocation8 + $0xaa0] sm:$0xff]
        %v2002 = vld [vmem:[#allocation8 + $0xaa8] sm:$0xff]
        %v2003 = vld [vmem:[#allocation8 + $0xab0] sm:$0xff]
        %v2004 = vld [vmem:[#allocation8 + $0xab8] sm:$0xff]
        %v2005 = vld [vmem:[#allocation8 + $0xac0] sm:$0xff]
        %v2006 = vld [vmem:[#allocation8 + $0xac8] sm:$0xff]
        %v2007 = vld [vmem:[#allocation8 + $0xad0] sm:$0xff]
        %v2008 = vld [vmem:[#allocation8 + $0xad8] sm:$0xff]
        %v2009 = vld [vmem:[#allocation8 + $0xae0] sm:$0xff]
        %v2010 = vld [vmem:[#allocation8 + $0xae8] sm:$0xff]
        %v2011 = vld [vmem:[#allocation8 + $0xaf0] sm:$0xff]
        %v2012 = vld [vmem:[#allocation8 + $0xaf8] sm:$0xff]
        %v2013 = vld [vmem:[#allocation8 + $0xb00] sm:$0xff]
        %v2014 = vld [vmem:[#allocation8 + $0xb08] sm:$0xff]
        %v2015 = vld [vmem:[#allocation8 + $0xb10] sm:$0xff]
        %v2016 = vld [vmem:[#allocation8 + $0xb18] sm:$0xff]
        %v2017 = vld [vmem:[#allocation8 + $0xb20] sm:$0xff]
        %v2018 = vld [vmem:[#allocation8 + $0xb28] sm:$0xff]
        %v2019 = vld [vmem:[#allocation8 + $0xb30] sm:$0xff]
        %v2020 = vld [vmem:[#allocation8 + $0xb38] sm:$0xff]
        %v2021 = vld [vmem:[#allocation8 + $0xb40] sm:$0xff]
        %v2022 = vld [vmem:[#allocation8 + $0xb48] sm:$0xff]
        %v2023 = vld [vmem:[#allocation8 + $0xb50] sm:$0xff]
        %v2024 = vld [vmem:[#allocation8 + $0xb58] sm:$0xff]
        %v2025 = vld [vmem:[#allocation8 + $0xb60] sm:$0xff]
        %v2026 = vld [vmem:[#allocation8 + $0xb68] sm:$0xff]
        %v2027 = vld [vmem:[#allocation8 + $0xb70] sm:$0xff]
        %v2028 = vld [vmem:[#allocation8 + $0xb78] sm:$0xff]
        %v2029 = vld [vmem:[#allocation8 + $0xb80] sm:$0xff]
        %v2030 = vld [vmem:[#allocation8 + $0xb88] sm:$0xff]
        %v2031 = vld [vmem:[#allocation8 + $0xb90] sm:$0xff]
        %v2032 = vld [vmem:[#allocation8 + $0xb98] sm:$0xff]
        %v2033 = vld [vmem:[#allocation8 + $0xba0] sm:$0xff]
        %v2034 = vld [vmem:[#allocation8 + $0xba8] sm:$0xff]
        %v2035 = vld [vmem:[#allocation8 + $0xbb0] sm:$0xff]
        %v2036 = vld [vmem:[#allocation8 + $0xbb8] sm:$0xff]
        %v2037 = vld [vmem:[#allocation8 + $0xbc0] sm:$0xff]
        %v2038 = vld [vmem:[#allocation8 + $0xbc8] sm:$0xff]
        %v2039 = vld [vmem:[#allocation8 + $0xbd0] sm:$0xff]
        %v2040 = vld [vmem:[#allocation8 + $0xbd8] sm:$0xff]
        %v2041 = vld [vmem:[#allocation8 + $0xbe0] sm:$0xff]
        %v2042 = vld [vmem:[#allocation8 + $0xbe8] sm:$0xff]
        %v2043 = vld [vmem:[#allocation8 + $0xbf0] sm:$0xff]
        %v2044 = vld [vmem:[#allocation8 + $0xbf8] sm:$0xff]
        %v2045 = vld [vmem:[#allocation8 + $0xc00] sm:$0xff]
        %v2046 = vld [vmem:[#allocation8 + $0xc08] sm:$0xff]
        %v2047 = vld [vmem:[#allocation8 + $0xc10] sm:$0xff]
        %v2048 = vld [vmem:[#allocation8 + $0xc18] sm:$0xff]
        %v2049 = vld [vmem:[#allocation8 + $0xc20] sm:$0xff]
        %v2050 = vld [vmem:[#allocation8 + $0xc28] sm:$0xff]
        %v2051 = vld [vmem:[#allocation8 + $0xc30] sm:$0xff]
        %v2052 = vld [vmem:[#allocation8 + $0xc38] sm:$0xff]
        %v2053 = vld [vmem:[#allocation8 + $0xc40] sm:$0xff]
        %v2054 = vld [vmem:[#allocation8 + $0xc48] sm:$0xff]
        %v2055 = vld [vmem:[#allocation8 + $0xc50] sm:$0xff]
        %v2056 = vld [vmem:[#allocation8 + $0xc58] sm:$0xff]
        %v2057 = vld [vmem:[#allocation8 + $0xc60] sm:$0xff]
        %v2058 = vld [vmem:[#allocation8 + $0xc68] sm:$0xff]
        %v2059 = vld [vmem:[#allocation8 + $0xc70] sm:$0xff]
        %v2060 = vld [vmem:[#allocation8 + $0xc78] sm:$0xff]
        %v2061 = vld [vmem:[#allocation8 + $0xc80] sm:$0xff]
        %v2062 = vld [vmem:[#allocation8 + $0xc88] sm:$0xff]
        %v2063 = vld [vmem:[#allocation8 + $0xc90] sm:$0xff]
        %v2064 = vld [vmem:[#allocation8 + $0xc98] sm:$0xff]
        %v2065 = vld [vmem:[#allocation8 + $0xca0] sm:$0xff]
        %v2066 = vld [vmem:[#allocation8 + $0xca8] sm:$0xff]
        %v2067 = vld [vmem:[#allocation8 + $0xcb0] sm:$0xff]
        %v2068 = vld [vmem:[#allocation8 + $0xcb8] sm:$0xff]
        %v2069 = vld [vmem:[#allocation8 + $0xcc0] sm:$0xff]
        %v2070 = vld [vmem:[#allocation8 + $0xcc8] sm:$0xff]
        %v2071 = vld [vmem:[#allocation8 + $0xcd0] sm:$0xff]
        %v2072 = vld [vmem:[#allocation8 + $0xcd8] sm:$0xff]
        %v2073 = vld [vmem:[#allocation8 + $0xce0] sm:$0xff]
        %v2074 = vld [vmem:[#allocation8 + $0xce8] sm:$0xff]
        %v2075 = vld [vmem:[#allocation8 + $0xcf0] sm:$0xff]
        %v2076 = vld [vmem:[#allocation8 + $0xcf8] sm:$0xff]
        %v2077 = vld [vmem:[#allocation8 + $0xd00] sm:$0xff]
        %v2078 = vld [vmem:[#allocation8 + $0xd08] sm:$0xff]
        %v2079 = vld [vmem:[#allocation8 + $0xd10] sm:$0xff]
        %v2080 = vld [vmem:[#allocation8 + $0xd18] sm:$0xff]
        %v2081 = vld [vmem:[#allocation8 + $0xd20] sm:$0xff]
        %v2082 = vld [vmem:[#allocation8 + $0xd28] sm:$0xff]
        %v2083 = vld [vmem:[#allocation8 + $0xd30] sm:$0xff]
        %v2084 = vld [vmem:[#allocation8 + $0xd38] sm:$0xff]
        %v2085 = vld [vmem:[#allocation8 + $0xd40] sm:$0xff]
        %v2086 = vld [vmem:[#allocation8 + $0xd48] sm:$0xff]
        %v2087 = vld [vmem:[#allocation8 + $0xd50] sm:$0xff]
        %v2088 = vld [vmem:[#allocation8 + $0xd58] sm:$0xff]
        %v2089 = vld [vmem:[#allocation8 + $0xd60] sm:$0xff]
        %v2090 = vld [vmem:[#allocation8 + $0xd68] sm:$0xff]
        %v2091 = vld [vmem:[#allocation8 + $0xd70] sm:$0xff]
        %v2092 = vld [vmem:[#allocation8 + $0xd78] sm:$0xff]
        %v2093 = vld [vmem:[#allocation8 + $0xd80] sm:$0xff]
        %v2094 = vld [vmem:[#allocation8 + $0xd88] sm:$0xff]
        %v2095 = vld [vmem:[#allocation8 + $0xd90] sm:$0xff]
        %v2096 = vld [vmem:[#allocation8 + $0xd98] sm:$0xff]
        %v2097 = vld [vmem:[#allocation8 + $0xda0] sm:$0xff]
        %v2098 = vld [vmem:[#allocation8 + $0xda8] sm:$0xff]
        %v2099 = vld [vmem:[#allocation8 + $0xdb0] sm:$0xff]
        %v2100 = vld [vmem:[#allocation8 + $0xdb8] sm:$0xff]
        %v2101 = vld [vmem:[#allocation8 + $0xdc0] sm:$0xff]
        %v2102 = vld [vmem:[#allocation8 + $0xdc8] sm:$0xff]
        %v2103 = vld [vmem:[#allocation8 + $0xdd0] sm:$0xff]
        %v2104 = vld [vmem:[#allocation8 + $0xdd8] sm:$0xff]
        %v2105 = vld [vmem:[#allocation8 + $0xde0] sm:$0xff]
        %v2106 = vld [vmem:[#allocation8 + $0xde8] sm:$0xff]
        %v2107 = vld [vmem:[#allocation8 + $0xdf0] sm:$0xff]
        %v2108 = vld [vmem:[#allocation8 + $0xdf8] sm:$0xff]
        %v2109 = vld [vmem:[#allocation8 + $0xe00] sm:$0xff]
        %v2110 = vld [vmem:[#allocation8 + $0xe08] sm:$0xff]
        %v2111 = vld [vmem:[#allocation8 + $0xe10] sm:$0xff]
        %v2112 = vld [vmem:[#allocation8 + $0xe18] sm:$0xff]
        %v2113 = vld [vmem:[#allocation8 + $0xe20] sm:$0xff]
        %v2114 = vld [vmem:[#allocation8 + $0xe28] sm:$0xff]
        %v2115 = vld [vmem:[#allocation8 + $0xe30] sm:$0xff]
        %v2116 = vld [vmem:[#allocation8 + $0xe38] sm:$0xff]
        %v2117 = vld [vmem:[#allocation8 + $0xe40] sm:$0xff]
        %v2118 = vld [vmem:[#allocation8 + $0xe48] sm:$0xff]
        %v2119 = vld [vmem:[#allocation8 + $0xe50] sm:$0xff]
        %v2120 = vld [vmem:[#allocation8 + $0xe58] sm:$0xff]
        %v2121 = vld [vmem:[#allocation8 + $0xe60] sm:$0xff]
        %v2122 = vld [vmem:[#allocation8 + $0xe68] sm:$0xff]
        %v2123 = vld [vmem:[#allocation8 + $0xe70] sm:$0xff]
        %v2124 = vld [vmem:[#allocation8 + $0xe78] sm:$0xff]
        %v2125 = vld [vmem:[#allocation8 + $0xe80] sm:$0xff]
        %v2126 = vld [vmem:[#allocation8 + $0xe88] sm:$0xff]
        %v2127 = vld [vmem:[#allocation8 + $0xe90] sm:$0xff]
        %v2128 = vld [vmem:[#allocation8 + $0xe98] sm:$0xff]
        %v2129 = vld [vmem:[#allocation8 + $0xea0] sm:$0xff]
        %v2130 = vld [vmem:[#allocation8 + $0xea8] sm:$0xff]
        %v2131 = vld [vmem:[#allocation8 + $0xeb0] sm:$0xff]
        %v2132 = vld [vmem:[#allocation8 + $0xeb8] sm:$0xff]
        %v2133 = vld [vmem:[#allocation8 + $0xec0] sm:$0xff]
        %v2134 = vld [vmem:[#allocation8 + $0xec8] sm:$0xff]
        %v2135 = vld [vmem:[#allocation8 + $0xed0] sm:$0xff]
        %v2136 = vld [vmem:[#allocation8 + $0xed8] sm:$0xff]
        %v2137 = vld [vmem:[#allocation8 + $0xee0] sm:$0xff]
        %v2138 = vld [vmem:[#allocation8 + $0xee8] sm:$0xff]
        %v2139 = vld [vmem:[#allocation8 + $0xef0] sm:$0xff]
        %v2140 = vld [vmem:[#allocation8 + $0xef8] sm:$0xff]
        %v2141 = vld [vmem:[#allocation8 + $0xf00] sm:$0xff]
        %v2142 = vld [vmem:[#allocation8 + $0xf08] sm:$0xff]
        %v2143 = vld [vmem:[#allocation8 + $0xf10] sm:$0xff]
        %v2144 = vld [vmem:[#allocation8 + $0xf18] sm:$0xff]
        %v2145 = vld [vmem:[#allocation8 + $0xf20] sm:$0xff]
        %v2146 = vld [vmem:[#allocation8 + $0xf28] sm:$0xff]
        %v2147 = vld [vmem:[#allocation8 + $0xf30] sm:$0xff]
        %v2148 = vld [vmem:[#allocation8 + $0xf38] sm:$0xff]
        %v2149 = vld [vmem:[#allocation8 + $0xf40] sm:$0xff]
        %v2150 = vld [vmem:[#allocation8 + $0xf48] sm:$0xff]
        %v2151 = vld [vmem:[#allocation8 + $0xf50] sm:$0xff]
        %v2152 = vld [vmem:[#allocation8 + $0xf58] sm:$0xff]
        %v2153 = vld [vmem:[#allocation8 + $0xf60] sm:$0xff]
        %v2154 = vld [vmem:[#allocation8 + $0xf68] sm:$0xff]
        %v2155 = vld [vmem:[#allocation8 + $0xf70] sm:$0xff]
        %v2156 = vld [vmem:[#allocation8 + $0xf78] sm:$0xff]
        %v2157 = vld [vmem:[#allocation8 + $0xf80] sm:$0xff]
        %v2158 = vld [vmem:[#allocation8 + $0xf88] sm:$0xff]
        %v2159 = vld [vmem:[#allocation8 + $0xf90] sm:$0xff]
        %v2160 = vld [vmem:[#allocation8 + $0xf98] sm:$0xff]
        %v2161 = vld [vmem:[#allocation8 + $0xfa0] sm:$0xff]
        %v2162 = vld [vmem:[#allocation8 + $0xfa8] sm:$0xff]
        %v2163 = vld [vmem:[#allocation8 + $0xfb0] sm:$0xff]
        %v2164 = vld [vmem:[#allocation8 + $0xfb8] sm:$0xff]
        %v2165 = vld [vmem:[#allocation8 + $0xfc0] sm:$0xff]
        %v2166 = vld [vmem:[#allocation8 + $0xfc8] sm:$0xff]
        %v2167 = vld [vmem:[#allocation8 + $0xfd0] sm:$0xff]
        %v2168 = vld [vmem:[#allocation8 + $0xfd8] sm:$0xff]
        %v2169 = vld [vmem:[#allocation8 + $0xfe0] sm:$0xff]
        %v2170 = vld [vmem:[#allocation8 + $0xfe8] sm:$0xff]
        %v2171 = vld [vmem:[#allocation8 + $0xff0] sm:$0xff]
        %v2172 = vld [vmem:[#allocation8 + $0xff8] sm:$0xff]
        %v2173 = vld [vmem:[#allocation10] sm:$0xf]
        %v2175 = vlaneseq
        %v2176 = vshrl.u32 %v2175, 7
        %v2177 = vsub.s32 0, %v2176
        %v2178 = vrot.slane %v2173, %v2177
        %v2179 = vlaneseq
        %v2180 = vshrl.u32 %v2179, 7
        %v2181 = vsub.s32 1, %v2180
        %v2182 = vrot.slane %v2173, %v2181
        %v2183 = vlaneseq
        %v2184 = vshrl.u32 %v2183, 7
        %v2185 = vsub.s32 2, %v2184
        %v2186 = vrot.slane %v2173, %v2185
        %v2187 = vlaneseq
        %v2188 = vshrl.u32 %v2187, 7
        %v2189 = vsub.s32 3, %v2188
        %v2190 = vrot.slane %v2173, %v2189
        %v2707 = vunpack.c.l.b16 %v1661
        %v2708 = vunpack.c.h.b16 %v1661
        %v2709 = vunpack.c.l.b16 %v1662
        %v2710 = vunpack.c.h.b16 %v1662
        %v2711 = vunpack.c.l.b16 %v1663
        %v2712 = vunpack.c.h.b16 %v1663
        %v2713 = vunpack.c.l.b16 %v1664
        %v2714 = vunpack.c.h.b16 %v1664
        %v2715 = vunpack.c.l.b16 %v1665
        %v2716 = vunpack.c.h.b16 %v1665
        %v2717 = vunpack.c.l.b16 %v1666
        %v2718 = vunpack.c.h.b16 %v1666
        %v2719 = vunpack.c.l.b16 %v1667
        %v2720 = vunpack.c.h.b16 %v1667
        %v2721 = vunpack.c.l.b16 %v1668
        %v2722 = vunpack.c.h.b16 %v1668
        %v2723 = vunpack.c.l.b16 %v1669
        %v2724 = vunpack.c.h.b16 %v1669
        %v2725 = vunpack.c.l.b16 %v1670
        %v2726 = vunpack.c.h.b16 %v1670
        %v2727 = vunpack.c.l.b16 %v1671
        %v2728 = vunpack.c.h.b16 %v1671
        %v2729 = vunpack.c.l.b16 %v1672
        %v2730 = vunpack.c.h.b16 %v1672
        %v2731 = vunpack.c.l.b16 %v1673
        %v2732 = vunpack.c.h.b16 %v1673
        %v2733 = vunpack.c.l.b16 %v1674
        %v2734 = vunpack.c.h.b16 %v1674
        %v2735 = vunpack.c.l.b16 %v1675
        %v2736 = vunpack.c.h.b16 %v1675
        %v2737 = vunpack.c.l.b16 %v1676
        %v2738 = vunpack.c.h.b16 %v1676
        %v2739 = vunpack.c.l.b16 %v1677
        %v2740 = vunpack.c.h.b16 %v1677
        %v2741 = vunpack.c.l.b16 %v1678
        %v2742 = vunpack.c.h.b16 %v1678
        %v2743 = vunpack.c.l.b16 %v1679
        %v2744 = vunpack.c.h.b16 %v1679
        %v2745 = vunpack.c.l.b16 %v1680
        %v2746 = vunpack.c.h.b16 %v1680
        %v2747 = vunpack.c.l.b16 %v1681
        %v2748 = vunpack.c.h.b16 %v1681
        %v2749 = vunpack.c.l.b16 %v1682
        %v2750 = vunpack.c.h.b16 %v1682
        %v2751 = vunpack.c.l.b16 %v1683
        %v2752 = vunpack.c.h.b16 %v1683
        %v2753 = vunpack.c.l.b16 %v1684
        %v2754 = vunpack.c.h.b16 %v1684
        %v2755 = vunpack.c.l.b16 %v1685
        %v2756 = vunpack.c.h.b16 %v1685
        %v2757 = vunpack.c.l.b16 %v1686
        %v2758 = vunpack.c.h.b16 %v1686
        %v2759 = vunpack.c.l.b16 %v1687
        %v2760 = vunpack.c.h.b16 %v1687
        %v2761 = vunpack.c.l.b16 %v1688
        %v2762 = vunpack.c.h.b16 %v1688
        %v2763 = vunpack.c.l.b16 %v1689
        %v2764 = vunpack.c.h.b16 %v1689
        %v2765 = vunpack.c.l.b16 %v1690
        %v2766 = vunpack.c.h.b16 %v1690
        %v2767 = vunpack.c.l.b16 %v1691
        %v2768 = vunpack.c.h.b16 %v1691
        %v2769 = vunpack.c.l.b16 %v1692
        %v2770 = vunpack.c.h.b16 %v1692
        %v2771 = vunpack.c.l.b16 %v1693
        %v2772 = vunpack.c.h.b16 %v1693
        %v2773 = vunpack.c.l.b16 %v1694
        %v2774 = vunpack.c.h.b16 %v1694
        %v2775 = vunpack.c.l.b16 %v1695
        %v2776 = vunpack.c.h.b16 %v1695
        %v2777 = vunpack.c.l.b16 %v1696
        %v2778 = vunpack.c.h.b16 %v1696
        %v2779 = vunpack.c.l.b16 %v1697
        %v2780 = vunpack.c.h.b16 %v1697
        %v2781 = vunpack.c.l.b16 %v1698
        %v2782 = vunpack.c.h.b16 %v1698
        %v2783 = vunpack.c.l.b16 %v1699
        %v2784 = vunpack.c.h.b16 %v1699
        %v2785 = vunpack.c.l.b16 %v1700
        %v2786 = vunpack.c.h.b16 %v1700
        %v2787 = vunpack.c.l.b16 %v1701
        %v2788 = vunpack.c.h.b16 %v1701
        %v2789 = vunpack.c.l.b16 %v1702
        %v2790 = vunpack.c.h.b16 %v1702
        %v2791 = vunpack.c.l.b16 %v1703
        %v2792 = vunpack.c.h.b16 %v1703
        %v2793 = vunpack.c.l.b16 %v1704
        %v2794 = vunpack.c.h.b16 %v1704
        %v2795 = vunpack.c.l.b16 %v1705
        %v2796 = vunpack.c.h.b16 %v1705
        %v2797 = vunpack.c.l.b16 %v1706
        %v2798 = vunpack.c.h.b16 %v1706
        %v2799 = vunpack.c.l.b16 %v1707
        %v2800 = vunpack.c.h.b16 %v1707
        %v2801 = vunpack.c.l.b16 %v1708
        %v2802 = vunpack.c.h.b16 %v1708
        %v2803 = vunpack.c.l.b16 %v1709
        %v2804 = vunpack.c.h.b16 %v1709
        %v2805 = vunpack.c.l.b16 %v1710
        %v2806 = vunpack.c.h.b16 %v1710
        %v2807 = vunpack.c.l.b16 %v1711
        %v2808 = vunpack.c.h.b16 %v1711
        %v2809 = vunpack.c.l.b16 %v1712
        %v2810 = vunpack.c.h.b16 %v1712
        %v2811 = vunpack.c.l.b16 %v1713
        %v2812 = vunpack.c.h.b16 %v1713
        %v2813 = vunpack.c.l.b16 %v1714
        %v2814 = vunpack.c.h.b16 %v1714
        %v2815 = vunpack.c.l.b16 %v1715
        %v2816 = vunpack.c.h.b16 %v1715
        %v2817 = vunpack.c.l.b16 %v1716
        %v2818 = vunpack.c.h.b16 %v1716
        %v2819 = vunpack.c.l.b16 %v1717
        %v2820 = vunpack.c.h.b16 %v1717
        %v2821 = vunpack.c.l.b16 %v1718
        %v2822 = vunpack.c.h.b16 %v1718
        %v2823 = vunpack.c.l.b16 %v1719
        %v2824 = vunpack.c.h.b16 %v1719
        %v2825 = vunpack.c.l.b16 %v1720
        %v2826 = vunpack.c.h.b16 %v1720
        %v2827 = vunpack.c.l.b16 %v1721
        %v2828 = vunpack.c.h.b16 %v1721
        %v2829 = vunpack.c.l.b16 %v1722
        %v2830 = vunpack.c.h.b16 %v1722
        %v2831 = vunpack.c.l.b16 %v1723
        %v2832 = vunpack.c.h.b16 %v1723
        %v2833 = vunpack.c.l.b16 %v1724
        %v2834 = vunpack.c.h.b16 %v1724
        %v2835 = vunpack.c.l.b16 %v1725
        %v2836 = vunpack.c.h.b16 %v1725
        %v2837 = vunpack.c.l.b16 %v1726
        %v2838 = vunpack.c.h.b16 %v1726
        %v2839 = vunpack.c.l.b16 %v1727
        %v2840 = vunpack.c.h.b16 %v1727
        %v2841 = vunpack.c.l.b16 %v1728
        %v2842 = vunpack.c.h.b16 %v1728
        %v2843 = vunpack.c.l.b16 %v1729
        %v2844 = vunpack.c.h.b16 %v1729
        %v2845 = vunpack.c.l.b16 %v1730
        %v2846 = vunpack.c.h.b16 %v1730
        %v2847 = vunpack.c.l.b16 %v1731
        %v2848 = vunpack.c.h.b16 %v1731
        %v2849 = vunpack.c.l.b16 %v1732
        %v2850 = vunpack.c.h.b16 %v1732
        %v2851 = vunpack.c.l.b16 %v1733
        %v2852 = vunpack.c.h.b16 %v1733
        %v2853 = vunpack.c.l.b16 %v1734
        %v2854 = vunpack.c.h.b16 %v1734
        %v2855 = vunpack.c.l.b16 %v1735
        %v2856 = vunpack.c.h.b16 %v1735
        %v2857 = vunpack.c.l.b16 %v1736
        %v2858 = vunpack.c.h.b16 %v1736
        %v2859 = vunpack.c.l.b16 %v1737
        %v2860 = vunpack.c.h.b16 %v1737
        %v2861 = vunpack.c.l.b16 %v1738
        %v2862 = vunpack.c.h.b16 %v1738
        %v2863 = vunpack.c.l.b16 %v1739
        %v2864 = vunpack.c.h.b16 %v1739
        %v2865 = vunpack.c.l.b16 %v1740
        %v2866 = vunpack.c.h.b16 %v1740
        %v2867 = vunpack.c.l.b16 %v1741
        %v2868 = vunpack.c.h.b16 %v1741
        %v2869 = vunpack.c.l.b16 %v1742
        %v2870 = vunpack.c.h.b16 %v1742
        %v2871 = vunpack.c.l.b16 %v1743
        %v2872 = vunpack.c.h.b16 %v1743
        %v2873 = vunpack.c.l.b16 %v1744
        %v2874 = vunpack.c.h.b16 %v1744
        %v2875 = vunpack.c.l.b16 %v1745
        %v2876 = vunpack.c.h.b16 %v1745
        %v2877 = vunpack.c.l.b16 %v1746
        %v2878 = vunpack.c.h.b16 %v1746
        %v2879 = vunpack.c.l.b16 %v1747
        %v2880 = vunpack.c.h.b16 %v1747
        %v2881 = vunpack.c.l.b16 %v1748
        %v2882 = vunpack.c.h.b16 %v1748
        %v2883 = vunpack.c.l.b16 %v1749
        %v2884 = vunpack.c.h.b16 %v1749
        %v2885 = vunpack.c.l.b16 %v1750
        %v2886 = vunpack.c.h.b16 %v1750
        %v2887 = vunpack.c.l.b16 %v1751
        %v2888 = vunpack.c.h.b16 %v1751
        %v2889 = vunpack.c.l.b16 %v1752
        %v2890 = vunpack.c.h.b16 %v1752
        %v2891 = vunpack.c.l.b16 %v1753
        %v2892 = vunpack.c.h.b16 %v1753
        %v2893 = vunpack.c.l.b16 %v1754
        %v2894 = vunpack.c.h.b16 %v1754
        %v2895 = vunpack.c.l.b16 %v1755
        %v2896 = vunpack.c.h.b16 %v1755
        %v2897 = vunpack.c.l.b16 %v1756
        %v2898 = vunpack.c.h.b16 %v1756
        %v2899 = vunpack.c.l.b16 %v1757
        %v2900 = vunpack.c.h.b16 %v1757
        %v2901 = vunpack.c.l.b16 %v1758
        %v2902 = vunpack.c.h.b16 %v1758
        %v2903 = vunpack.c.l.b16 %v1759
        %v2904 = vunpack.c.h.b16 %v1759
        %v2905 = vunpack.c.l.b16 %v1760
        %v2906 = vunpack.c.h.b16 %v1760
        %v2907 = vunpack.c.l.b16 %v1761
        %v2908 = vunpack.c.h.b16 %v1761
        %v2909 = vunpack.c.l.b16 %v1762
        %v2910 = vunpack.c.h.b16 %v1762
        %v2911 = vunpack.c.l.b16 %v1763
        %v2912 = vunpack.c.h.b16 %v1763
        %v2913 = vunpack.c.l.b16 %v1764
        %v2914 = vunpack.c.h.b16 %v1764
        %v2915 = vunpack.c.l.b16 %v1765
        %v2916 = vunpack.c.h.b16 %v1765
        %v2917 = vunpack.c.l.b16 %v1766
        %v2918 = vunpack.c.h.b16 %v1766
        %v2919 = vunpack.c.l.b16 %v1767
        %v2920 = vunpack.c.h.b16 %v1767
        %v2921 = vunpack.c.l.b16 %v1768
        %v2922 = vunpack.c.h.b16 %v1768
        %v2923 = vunpack.c.l.b16 %v1769
        %v2924 = vunpack.c.h.b16 %v1769
        %v2925 = vunpack.c.l.b16 %v1770
        %v2926 = vunpack.c.h.b16 %v1770
        %v2927 = vunpack.c.l.b16 %v1771
        %v2928 = vunpack.c.h.b16 %v1771
        %v2929 = vunpack.c.l.b16 %v1772
        %v2930 = vunpack.c.h.b16 %v1772
        %v2931 = vunpack.c.l.b16 %v1773
        %v2932 = vunpack.c.h.b16 %v1773
        %v2933 = vunpack.c.l.b16 %v1774
        %v2934 = vunpack.c.h.b16 %v1774
        %v2935 = vunpack.c.l.b16 %v1775
        %v2936 = vunpack.c.h.b16 %v1775
        %v2937 = vunpack.c.l.b16 %v1776
        %v2938 = vunpack.c.h.b16 %v1776
        %v2939 = vunpack.c.l.b16 %v1777
        %v2940 = vunpack.c.h.b16 %v1777
        %v2941 = vunpack.c.l.b16 %v1778
        %v2942 = vunpack.c.h.b16 %v1778
        %v2943 = vunpack.c.l.b16 %v1779
        %v2944 = vunpack.c.h.b16 %v1779
        %v2945 = vunpack.c.l.b16 %v1780
        %v2946 = vunpack.c.h.b16 %v1780
        %v2947 = vunpack.c.l.b16 %v1781
        %v2948 = vunpack.c.h.b16 %v1781
        %v2949 = vunpack.c.l.b16 %v1782
        %v2950 = vunpack.c.h.b16 %v1782
        %v2951 = vunpack.c.l.b16 %v1783
        %v2952 = vunpack.c.h.b16 %v1783
        %v2953 = vunpack.c.l.b16 %v1784
        %v2954 = vunpack.c.h.b16 %v1784
        %v2955 = vunpack.c.l.b16 %v1785
        %v2956 = vunpack.c.h.b16 %v1785
        %v2957 = vunpack.c.l.b16 %v1786
        %v2958 = vunpack.c.h.b16 %v1786
        %v2959 = vunpack.c.l.b16 %v1787
        %v2960 = vunpack.c.h.b16 %v1787
        %v2961 = vunpack.c.l.b16 %v1788
        %v2962 = vunpack.c.h.b16 %v1788
        %v2963 = vunpack.c.l.b16 %v1789
        %v2964 = vunpack.c.h.b16 %v1789
        %v2965 = vunpack.c.l.b16 %v1790
        %v2966 = vunpack.c.h.b16 %v1790
        %v2967 = vunpack.c.l.b16 %v1791
        %v2968 = vunpack.c.h.b16 %v1791
        %v2969 = vunpack.c.l.b16 %v1792
        %v2970 = vunpack.c.h.b16 %v1792
        %v2971 = vunpack.c.l.b16 %v1793
        %v2972 = vunpack.c.h.b16 %v1793
        %v2973 = vunpack.c.l.b16 %v1794
        %v2974 = vunpack.c.h.b16 %v1794
        %v2975 = vunpack.c.l.b16 %v1795
        %v2976 = vunpack.c.h.b16 %v1795
        %v2977 = vunpack.c.l.b16 %v1796
        %v2978 = vunpack.c.h.b16 %v1796
        %v2979 = vunpack.c.l.b16 %v1797
        %v2980 = vunpack.c.h.b16 %v1797
        %v2981 = vunpack.c.l.b16 %v1798
        %v2982 = vunpack.c.h.b16 %v1798
        %v2983 = vunpack.c.l.b16 %v1799
        %v2984 = vunpack.c.h.b16 %v1799
        %v2985 = vunpack.c.l.b16 %v1800
        %v2986 = vunpack.c.h.b16 %v1800
        %v2987 = vunpack.c.l.b16 %v1801
        %v2988 = vunpack.c.h.b16 %v1801
        %v2989 = vunpack.c.l.b16 %v1802
        %v2990 = vunpack.c.h.b16 %v1802
        %v2991 = vunpack.c.l.b16 %v1803
        %v2992 = vunpack.c.h.b16 %v1803
        %v2993 = vunpack.c.l.b16 %v1804
        %v2994 = vunpack.c.h.b16 %v1804
        %v2995 = vunpack.c.l.b16 %v1805
        %v2996 = vunpack.c.h.b16 %v1805
        %v2997 = vunpack.c.l.b16 %v1806
        %v2998 = vunpack.c.h.b16 %v1806
        %v2999 = vunpack.c.l.b16 %v1807
        %v3000 = vunpack.c.h.b16 %v1807
        %v3001 = vunpack.c.l.b16 %v1808
        %v3002 = vunpack.c.h.b16 %v1808
        %v3003 = vunpack.c.l.b16 %v1809
        %v3004 = vunpack.c.h.b16 %v1809
        %v3005 = vunpack.c.l.b16 %v1810
        %v3006 = vunpack.c.h.b16 %v1810
        %v3007 = vunpack.c.l.b16 %v1811
        %v3008 = vunpack.c.h.b16 %v1811
        %v3009 = vunpack.c.l.b16 %v1812
        %v3010 = vunpack.c.h.b16 %v1812
        %v3011 = vunpack.c.l.b16 %v1813
        %v3012 = vunpack.c.h.b16 %v1813
        %v3013 = vunpack.c.l.b16 %v1814
        %v3014 = vunpack.c.h.b16 %v1814
        %v3015 = vunpack.c.l.b16 %v1815
        %v3016 = vunpack.c.h.b16 %v1815
        %v3017 = vunpack.c.l.b16 %v1816
        %v3018 = vunpack.c.h.b16 %v1816
        %v3019 = vunpack.c.l.b16 %v1817
        %v3020 = vunpack.c.h.b16 %v1817
        %v3021 = vunpack.c.l.b16 %v1818
        %v3022 = vunpack.c.h.b16 %v1818
        %v3023 = vunpack.c.l.b16 %v1819
        %v3024 = vunpack.c.h.b16 %v1819
        %v3025 = vunpack.c.l.b16 %v1820
        %v3026 = vunpack.c.h.b16 %v1820
        %v3027 = vunpack.c.l.b16 %v1821
        %v3028 = vunpack.c.h.b16 %v1821
        %v3029 = vunpack.c.l.b16 %v1822
        %v3030 = vunpack.c.h.b16 %v1822
        %v3031 = vunpack.c.l.b16 %v1823
        %v3032 = vunpack.c.h.b16 %v1823
        %v3033 = vunpack.c.l.b16 %v1824
        %v3034 = vunpack.c.h.b16 %v1824
        %v3035 = vunpack.c.l.b16 %v1825
        %v3036 = vunpack.c.h.b16 %v1825
        %v3037 = vunpack.c.l.b16 %v1826
        %v3038 = vunpack.c.h.b16 %v1826
        %v3039 = vunpack.c.l.b16 %v1827
        %v3040 = vunpack.c.h.b16 %v1827
        %v3041 = vunpack.c.l.b16 %v1828
        %v3042 = vunpack.c.h.b16 %v1828
        %v3043 = vunpack.c.l.b16 %v1829
        %v3044 = vunpack.c.h.b16 %v1829
        %v3045 = vunpack.c.l.b16 %v1830
        %v3046 = vunpack.c.h.b16 %v1830
        %v3047 = vunpack.c.l.b16 %v1831
        %v3048 = vunpack.c.h.b16 %v1831
        %v3049 = vunpack.c.l.b16 %v1832
        %v3050 = vunpack.c.h.b16 %v1832
        %v3051 = vunpack.c.l.b16 %v1833
        %v3052 = vunpack.c.h.b16 %v1833
        %v3053 = vunpack.c.l.b16 %v1834
        %v3054 = vunpack.c.h.b16 %v1834
        %v3055 = vunpack.c.l.b16 %v1835
        %v3056 = vunpack.c.h.b16 %v1835
        %v3057 = vunpack.c.l.b16 %v1836
        %v3058 = vunpack.c.h.b16 %v1836
        %v3059 = vunpack.c.l.b16 %v1837
        %v3060 = vunpack.c.h.b16 %v1837
        %v3061 = vunpack.c.l.b16 %v1838
        %v3062 = vunpack.c.h.b16 %v1838
        %v3063 = vunpack.c.l.b16 %v1839
        %v3064 = vunpack.c.h.b16 %v1839
        %v3065 = vunpack.c.l.b16 %v1840
        %v3066 = vunpack.c.h.b16 %v1840
        %v3067 = vunpack.c.l.b16 %v1841
        %v3068 = vunpack.c.h.b16 %v1841
        %v3069 = vunpack.c.l.b16 %v1842
        %v3070 = vunpack.c.h.b16 %v1842
        %v3071 = vunpack.c.l.b16 %v1843
        %v3072 = vunpack.c.h.b16 %v1843
        %v3073 = vunpack.c.l.b16 %v1844
        %v3074 = vunpack.c.h.b16 %v1844
        %v3075 = vunpack.c.l.b16 %v1845
        %v3076 = vunpack.c.h.b16 %v1845
        %v3077 = vunpack.c.l.b16 %v1846
        %v3078 = vunpack.c.h.b16 %v1846
        %v3079 = vunpack.c.l.b16 %v1847
        %v3080 = vunpack.c.h.b16 %v1847
        %v3081 = vunpack.c.l.b16 %v1848
        %v3082 = vunpack.c.h.b16 %v1848
        %v3083 = vunpack.c.l.b16 %v1849
        %v3084 = vunpack.c.h.b16 %v1849
        %v3085 = vunpack.c.l.b16 %v1850
        %v3086 = vunpack.c.h.b16 %v1850
        %v3087 = vunpack.c.l.b16 %v1851
        %v3088 = vunpack.c.h.b16 %v1851
        %v3089 = vunpack.c.l.b16 %v1852
        %v3090 = vunpack.c.h.b16 %v1852
        %v3091 = vunpack.c.l.b16 %v1853
        %v3092 = vunpack.c.h.b16 %v1853
        %v3093 = vunpack.c.l.b16 %v1854
        %v3094 = vunpack.c.h.b16 %v1854
        %v3095 = vunpack.c.l.b16 %v1855
        %v3096 = vunpack.c.h.b16 %v1855
        %v3097 = vunpack.c.l.b16 %v1856
        %v3098 = vunpack.c.h.b16 %v1856
        %v3099 = vunpack.c.l.b16 %v1857
        %v3100 = vunpack.c.h.b16 %v1857
        %v3101 = vunpack.c.l.b16 %v1858
        %v3102 = vunpack.c.h.b16 %v1858
        %v3103 = vunpack.c.l.b16 %v1859
        %v3104 = vunpack.c.h.b16 %v1859
        %v3105 = vunpack.c.l.b16 %v1860
        %v3106 = vunpack.c.h.b16 %v1860
        %v3107 = vunpack.c.l.b16 %v1861
        %v3108 = vunpack.c.h.b16 %v1861
        %v3109 = vunpack.c.l.b16 %v1862
        %v3110 = vunpack.c.h.b16 %v1862
        %v3111 = vunpack.c.l.b16 %v1863
        %v3112 = vunpack.c.h.b16 %v1863
        %v3113 = vunpack.c.l.b16 %v1864
        %v3114 = vunpack.c.h.b16 %v1864
        %v3115 = vunpack.c.l.b16 %v1865
        %v3116 = vunpack.c.h.b16 %v1865
        %v3117 = vunpack.c.l.b16 %v1866
        %v3118 = vunpack.c.h.b16 %v1866
        %v3119 = vunpack.c.l.b16 %v1867
        %v3120 = vunpack.c.h.b16 %v1867
        %v3121 = vunpack.c.l.b16 %v1868
        %v3122 = vunpack.c.h.b16 %v1868
        %v3123 = vunpack.c.l.b16 %v1869
        %v3124 = vunpack.c.h.b16 %v1869
        %v3125 = vunpack.c.l.b16 %v1870
        %v3126 = vunpack.c.h.b16 %v1870
        %v3127 = vunpack.c.l.b16 %v1871
        %v3128 = vunpack.c.h.b16 %v1871
        %v3129 = vunpack.c.l.b16 %v1872
        %v3130 = vunpack.c.h.b16 %v1872
        %v3131 = vunpack.c.l.b16 %v1873
        %v3132 = vunpack.c.h.b16 %v1873
        %v3133 = vunpack.c.l.b16 %v1874
        %v3134 = vunpack.c.h.b16 %v1874
        %v3135 = vunpack.c.l.b16 %v1875
        %v3136 = vunpack.c.h.b16 %v1875
        %v3137 = vunpack.c.l.b16 %v1876
        %v3138 = vunpack.c.h.b16 %v1876
        %v3139 = vunpack.c.l.b16 %v1877
        %v3140 = vunpack.c.h.b16 %v1877
        %v3141 = vunpack.c.l.b16 %v1878
        %v3142 = vunpack.c.h.b16 %v1878
        %v3143 = vunpack.c.l.b16 %v1879
        %v3144 = vunpack.c.h.b16 %v1879
        %v3145 = vunpack.c.l.b16 %v1880
        %v3146 = vunpack.c.h.b16 %v1880
        %v3147 = vunpack.c.l.b16 %v1881
        %v3148 = vunpack.c.h.b16 %v1881
        %v3149 = vunpack.c.l.b16 %v1882
        %v3150 = vunpack.c.h.b16 %v1882
        %v3151 = vunpack.c.l.b16 %v1883
        %v3152 = vunpack.c.h.b16 %v1883
        %v3153 = vunpack.c.l.b16 %v1884
        %v3154 = vunpack.c.h.b16 %v1884
        %v3155 = vunpack.c.l.b16 %v1885
        %v3156 = vunpack.c.h.b16 %v1885
        %v3157 = vunpack.c.l.b16 %v1886
        %v3158 = vunpack.c.h.b16 %v1886
        %v3159 = vunpack.c.l.b16 %v1887
        %v3160 = vunpack.c.h.b16 %v1887
        %v3161 = vunpack.c.l.b16 %v1888
        %v3162 = vunpack.c.h.b16 %v1888
        %v3163 = vunpack.c.l.b16 %v1889
        %v3164 = vunpack.c.h.b16 %v1889
        %v3165 = vunpack.c.l.b16 %v1890
        %v3166 = vunpack.c.h.b16 %v1890
        %v3167 = vunpack.c.l.b16 %v1891
        %v3168 = vunpack.c.h.b16 %v1891
        %v3169 = vunpack.c.l.b16 %v1892
        %v3170 = vunpack.c.h.b16 %v1892
        %v3171 = vunpack.c.l.b16 %v1893
        %v3172 = vunpack.c.h.b16 %v1893
        %v3173 = vunpack.c.l.b16 %v1894
        %v3174 = vunpack.c.h.b16 %v1894
        %v3175 = vunpack.c.l.b16 %v1895
        %v3176 = vunpack.c.h.b16 %v1895
        %v3177 = vunpack.c.l.b16 %v1896
        %v3178 = vunpack.c.h.b16 %v1896
        %v3179 = vunpack.c.l.b16 %v1897
        %v3180 = vunpack.c.h.b16 %v1897
        %v3181 = vunpack.c.l.b16 %v1898
        %v3182 = vunpack.c.h.b16 %v1898
        %v3183 = vunpack.c.l.b16 %v1899
        %v3184 = vunpack.c.h.b16 %v1899
        %v3185 = vunpack.c.l.b16 %v1900
        %v3186 = vunpack.c.h.b16 %v1900
        %v3187 = vunpack.c.l.b16 %v1901
        %v3188 = vunpack.c.h.b16 %v1901
        %v3189 = vunpack.c.l.b16 %v1902
        %v3190 = vunpack.c.h.b16 %v1902
        %v3191 = vunpack.c.l.b16 %v1903
        %v3192 = vunpack.c.h.b16 %v1903
        %v3193 = vunpack.c.l.b16 %v1904
        %v3194 = vunpack.c.h.b16 %v1904
        %v3195 = vunpack.c.l.b16 %v1905
        %v3196 = vunpack.c.h.b16 %v1905
        %v3197 = vunpack.c.l.b16 %v1906
        %v3198 = vunpack.c.h.b16 %v1906
        %v3199 = vunpack.c.l.b16 %v1907
        %v3200 = vunpack.c.h.b16 %v1907
        %v3201 = vunpack.c.l.b16 %v1908
        %v3202 = vunpack.c.h.b16 %v1908
        %v3203 = vunpack.c.l.b16 %v1909
        %v3204 = vunpack.c.h.b16 %v1909
        %v3205 = vunpack.c.l.b16 %v1910
        %v3206 = vunpack.c.h.b16 %v1910
        %v3207 = vunpack.c.l.b16 %v1911
        %v3208 = vunpack.c.h.b16 %v1911
        %v3209 = vunpack.c.l.b16 %v1912
        %v3210 = vunpack.c.h.b16 %v1912
        %v3211 = vunpack.c.l.b16 %v1913
        %v3212 = vunpack.c.h.b16 %v1913
        %v3213 = vunpack.c.l.b16 %v1914
        %v3214 = vunpack.c.h.b16 %v1914
        %v3215 = vunpack.c.l.b16 %v1915
        %v3216 = vunpack.c.h.b16 %v1915
        %v3217 = vunpack.c.l.b16 %v1916
        %v3218 = vunpack.c.h.b16 %v1916
        %v3219 = vunpack.c.l.b16 %v1917
        %v3220 = vunpack.c.h.b16 %v1917
        %v3221 = vunpack.c.l.b16 %v1918
        %v3222 = vunpack.c.h.b16 %v1918
        %v3223 = vunpack.c.l.b16 %v1919
        %v3224 = vunpack.c.h.b16 %v1919
        %v3225 = vunpack.c.l.b16 %v1920
        %v3226 = vunpack.c.h.b16 %v1920
        %v3227 = vunpack.c.l.b16 %v1921
        %v3228 = vunpack.c.h.b16 %v1921
        %v3229 = vunpack.c.l.b16 %v1922
        %v3230 = vunpack.c.h.b16 %v1922
        %v3231 = vunpack.c.l.b16 %v1923
        %v3232 = vunpack.c.h.b16 %v1923
        %v3233 = vunpack.c.l.b16 %v1924
        %v3234 = vunpack.c.h.b16 %v1924
        %v3235 = vunpack.c.l.b16 %v1925
        %v3236 = vunpack.c.h.b16 %v1925
        %v3237 = vunpack.c.l.b16 %v1926
        %v3238 = vunpack.c.h.b16 %v1926
        %v3239 = vunpack.c.l.b16 %v1927
        %v3240 = vunpack.c.h.b16 %v1927
        %v3241 = vunpack.c.l.b16 %v1928
        %v3242 = vunpack.c.h.b16 %v1928
        %v3243 = vunpack.c.l.b16 %v1929
        %v3244 = vunpack.c.h.b16 %v1929
        %v3245 = vunpack.c.l.b16 %v1930
        %v3246 = vunpack.c.h.b16 %v1930
        %v3247 = vunpack.c.l.b16 %v1931
        %v3248 = vunpack.c.h.b16 %v1931
        %v3249 = vunpack.c.l.b16 %v1932
        %v3250 = vunpack.c.h.b16 %v1932
        %v3251 = vunpack.c.l.b16 %v1933
        %v3252 = vunpack.c.h.b16 %v1933
        %v3253 = vunpack.c.l.b16 %v1934
        %v3254 = vunpack.c.h.b16 %v1934
        %v3255 = vunpack.c.l.b16 %v1935
        %v3256 = vunpack.c.h.b16 %v1935
        %v3257 = vunpack.c.l.b16 %v1936
        %v3258 = vunpack.c.h.b16 %v1936
        %v3259 = vunpack.c.l.b16 %v1937
        %v3260 = vunpack.c.h.b16 %v1937
        %v3261 = vunpack.c.l.b16 %v1938
        %v3262 = vunpack.c.h.b16 %v1938
        %v3263 = vunpack.c.l.b16 %v1939
        %v3264 = vunpack.c.h.b16 %v1939
        %v3265 = vunpack.c.l.b16 %v1940
        %v3266 = vunpack.c.h.b16 %v1940
        %v3267 = vunpack.c.l.b16 %v1941
        %v3268 = vunpack.c.h.b16 %v1941
        %v3269 = vunpack.c.l.b16 %v1942
        %v3270 = vunpack.c.h.b16 %v1942
        %v3271 = vunpack.c.l.b16 %v1943
        %v3272 = vunpack.c.h.b16 %v1943
        %v3273 = vunpack.c.l.b16 %v1944
        %v3274 = vunpack.c.h.b16 %v1944
        %v3275 = vunpack.c.l.b16 %v1945
        %v3276 = vunpack.c.h.b16 %v1945
        %v3277 = vunpack.c.l.b16 %v1946
        %v3278 = vunpack.c.h.b16 %v1946
        %v3279 = vunpack.c.l.b16 %v1947
        %v3280 = vunpack.c.h.b16 %v1947
        %v3281 = vunpack.c.l.b16 %v1948
        %v3282 = vunpack.c.h.b16 %v1948
        %v3283 = vunpack.c.l.b16 %v1949
        %v3284 = vunpack.c.h.b16 %v1949
        %v3285 = vunpack.c.l.b16 %v1950
        %v3286 = vunpack.c.h.b16 %v1950
        %v3287 = vunpack.c.l.b16 %v1951
        %v3288 = vunpack.c.h.b16 %v1951
        %v3289 = vunpack.c.l.b16 %v1952
        %v3290 = vunpack.c.h.b16 %v1952
        %v3291 = vunpack.c.l.b16 %v1953
        %v3292 = vunpack.c.h.b16 %v1953
        %v3293 = vunpack.c.l.b16 %v1954
        %v3294 = vunpack.c.h.b16 %v1954
        %v3295 = vunpack.c.l.b16 %v1955
        %v3296 = vunpack.c.h.b16 %v1955
        %v3297 = vunpack.c.l.b16 %v1956
        %v3298 = vunpack.c.h.b16 %v1956
        %v3299 = vunpack.c.l.b16 %v1957
        %v3300 = vunpack.c.h.b16 %v1957
        %v3301 = vunpack.c.l.b16 %v1958
        %v3302 = vunpack.c.h.b16 %v1958
        %v3303 = vunpack.c.l.b16 %v1959
        %v3304 = vunpack.c.h.b16 %v1959
        %v3305 = vunpack.c.l.b16 %v1960
        %v3306 = vunpack.c.h.b16 %v1960
        %v3307 = vunpack.c.l.b16 %v1961
        %v3308 = vunpack.c.h.b16 %v1961
        %v3309 = vunpack.c.l.b16 %v1962
        %v3310 = vunpack.c.h.b16 %v1962
        %v3311 = vunpack.c.l.b16 %v1963
        %v3312 = vunpack.c.h.b16 %v1963
        %v3313 = vunpack.c.l.b16 %v1964
        %v3314 = vunpack.c.h.b16 %v1964
        %v3315 = vunpack.c.l.b16 %v1965
        %v3316 = vunpack.c.h.b16 %v1965
        %v3317 = vunpack.c.l.b16 %v1966
        %v3318 = vunpack.c.h.b16 %v1966
        %v3319 = vunpack.c.l.b16 %v1967
        %v3320 = vunpack.c.h.b16 %v1967
        %v3321 = vunpack.c.l.b16 %v1968
        %v3322 = vunpack.c.h.b16 %v1968
        %v3323 = vunpack.c.l.b16 %v1969
        %v3324 = vunpack.c.h.b16 %v1969
        %v3325 = vunpack.c.l.b16 %v1970
        %v3326 = vunpack.c.h.b16 %v1970
        %v3327 = vunpack.c.l.b16 %v1971
        %v3328 = vunpack.c.h.b16 %v1971
        %v3329 = vunpack.c.l.b16 %v1972
        %v3330 = vunpack.c.h.b16 %v1972
        %v3331 = vunpack.c.l.b16 %v1973
        %v3332 = vunpack.c.h.b16 %v1973
        %v3333 = vunpack.c.l.b16 %v1974
        %v3334 = vunpack.c.h.b16 %v1974
        %v3335 = vunpack.c.l.b16 %v1975
        %v3336 = vunpack.c.h.b16 %v1975
        %v3337 = vunpack.c.l.b16 %v1976
        %v3338 = vunpack.c.h.b16 %v1976
        %v3339 = vunpack.c.l.b16 %v1977
        %v3340 = vunpack.c.h.b16 %v1977
        %v3341 = vunpack.c.l.b16 %v1978
        %v3342 = vunpack.c.h.b16 %v1978
        %v3343 = vunpack.c.l.b16 %v1979
        %v3344 = vunpack.c.h.b16 %v1979
        %v3345 = vunpack.c.l.b16 %v1980
        %v3346 = vunpack.c.h.b16 %v1980
        %v3347 = vunpack.c.l.b16 %v1981
        %v3348 = vunpack.c.h.b16 %v1981
        %v3349 = vunpack.c.l.b16 %v1982
        %v3350 = vunpack.c.h.b16 %v1982
        %v3351 = vunpack.c.l.b16 %v1983
        %v3352 = vunpack.c.h.b16 %v1983
        %v3353 = vunpack.c.l.b16 %v1984
        %v3354 = vunpack.c.h.b16 %v1984
        %v3355 = vunpack.c.l.b16 %v1985
        %v3356 = vunpack.c.h.b16 %v1985
        %v3357 = vunpack.c.l.b16 %v1986
        %v3358 = vunpack.c.h.b16 %v1986
        %v3359 = vunpack.c.l.b16 %v1987
        %v3360 = vunpack.c.h.b16 %v1987
        %v3361 = vunpack.c.l.b16 %v1988
        %v3362 = vunpack.c.h.b16 %v1988
        %v3363 = vunpack.c.l.b16 %v1989
        %v3364 = vunpack.c.h.b16 %v1989
        %v3365 = vunpack.c.l.b16 %v1990
        %v3366 = vunpack.c.h.b16 %v1990
        %v3367 = vunpack.c.l.b16 %v1991
        %v3368 = vunpack.c.h.b16 %v1991
        %v3369 = vunpack.c.l.b16 %v1992
        %v3370 = vunpack.c.h.b16 %v1992
        %v3371 = vunpack.c.l.b16 %v1993
        %v3372 = vunpack.c.h.b16 %v1993
        %v3373 = vunpack.c.l.b16 %v1994
        %v3374 = vunpack.c.h.b16 %v1994
        %v3375 = vunpack.c.l.b16 %v1995
        %v3376 = vunpack.c.h.b16 %v1995
        %v3377 = vunpack.c.l.b16 %v1996
        %v3378 = vunpack.c.h.b16 %v1996
        %v3379 = vunpack.c.l.b16 %v1997
        %v3380 = vunpack.c.h.b16 %v1997
        %v3381 = vunpack.c.l.b16 %v1998
        %v3382 = vunpack.c.h.b16 %v1998
        %v3383 = vunpack.c.l.b16 %v1999
        %v3384 = vunpack.c.h.b16 %v1999
        %v3385 = vunpack.c.l.b16 %v2000
        %v3386 = vunpack.c.h.b16 %v2000
        %v3387 = vunpack.c.l.b16 %v2001
        %v3388 = vunpack.c.h.b16 %v2001
        %v3389 = vunpack.c.l.b16 %v2002
        %v3390 = vunpack.c.h.b16 %v2002
        %v3391 = vunpack.c.l.b16 %v2003
        %v3392 = vunpack.c.h.b16 %v2003
        %v3393 = vunpack.c.l.b16 %v2004
        %v3394 = vunpack.c.h.b16 %v2004
        %v3395 = vunpack.c.l.b16 %v2005
        %v3396 = vunpack.c.h.b16 %v2005
        %v3397 = vunpack.c.l.b16 %v2006
        %v3398 = vunpack.c.h.b16 %v2006
        %v3399 = vunpack.c.l.b16 %v2007
        %v3400 = vunpack.c.h.b16 %v2007
        %v3401 = vunpack.c.l.b16 %v2008
        %v3402 = vunpack.c.h.b16 %v2008
        %v3403 = vunpack.c.l.b16 %v2009
        %v3404 = vunpack.c.h.b16 %v2009
        %v3405 = vunpack.c.l.b16 %v2010
        %v3406 = vunpack.c.h.b16 %v2010
        %v3407 = vunpack.c.l.b16 %v2011
        %v3408 = vunpack.c.h.b16 %v2011
        %v3409 = vunpack.c.l.b16 %v2012
        %v3410 = vunpack.c.h.b16 %v2012
        %v3411 = vunpack.c.l.b16 %v2013
        %v3412 = vunpack.c.h.b16 %v2013
        %v3413 = vunpack.c.l.b16 %v2014
        %v3414 = vunpack.c.h.b16 %v2014
        %v3415 = vunpack.c.l.b16 %v2015
        %v3416 = vunpack.c.h.b16 %v2015
        %v3417 = vunpack.c.l.b16 %v2016
        %v3418 = vunpack.c.h.b16 %v2016
        %v3419 = vunpack.c.l.b16 %v2017
        %v3420 = vunpack.c.h.b16 %v2017
        %v3421 = vunpack.c.l.b16 %v2018
        %v3422 = vunpack.c.h.b16 %v2018
        %v3423 = vunpack.c.l.b16 %v2019
        %v3424 = vunpack.c.h.b16 %v2019
        %v3425 = vunpack.c.l.b16 %v2020
        %v3426 = vunpack.c.h.b16 %v2020
        %v3427 = vunpack.c.l.b16 %v2021
        %v3428 = vunpack.c.h.b16 %v2021
        %v3429 = vunpack.c.l.b16 %v2022
        %v3430 = vunpack.c.h.b16 %v2022
        %v3431 = vunpack.c.l.b16 %v2023
        %v3432 = vunpack.c.h.b16 %v2023
        %v3433 = vunpack.c.l.b16 %v2024
        %v3434 = vunpack.c.h.b16 %v2024
        %v3435 = vunpack.c.l.b16 %v2025
        %v3436 = vunpack.c.h.b16 %v2025
        %v3437 = vunpack.c.l.b16 %v2026
        %v3438 = vunpack.c.h.b16 %v2026
        %v3439 = vunpack.c.l.b16 %v2027
        %v3440 = vunpack.c.h.b16 %v2027
        %v3441 = vunpack.c.l.b16 %v2028
        %v3442 = vunpack.c.h.b16 %v2028
        %v3443 = vunpack.c.l.b16 %v2029
        %v3444 = vunpack.c.h.b16 %v2029
        %v3445 = vunpack.c.l.b16 %v2030
        %v3446 = vunpack.c.h.b16 %v2030
        %v3447 = vunpack.c.l.b16 %v2031
        %v3448 = vunpack.c.h.b16 %v2031
        %v3449 = vunpack.c.l.b16 %v2032
        %v3450 = vunpack.c.h.b16 %v2032
        %v3451 = vunpack.c.l.b16 %v2033
        %v3452 = vunpack.c.h.b16 %v2033
        %v3453 = vunpack.c.l.b16 %v2034
        %v3454 = vunpack.c.h.b16 %v2034
        %v3455 = vunpack.c.l.b16 %v2035
        %v3456 = vunpack.c.h.b16 %v2035
        %v3457 = vunpack.c.l.b16 %v2036
        %v3458 = vunpack.c.h.b16 %v2036
        %v3459 = vunpack.c.l.b16 %v2037
        %v3460 = vunpack.c.h.b16 %v2037
        %v3461 = vunpack.c.l.b16 %v2038
        %v3462 = vunpack.c.h.b16 %v2038
        %v3463 = vunpack.c.l.b16 %v2039
        %v3464 = vunpack.c.h.b16 %v2039
        %v3465 = vunpack.c.l.b16 %v2040
        %v3466 = vunpack.c.h.b16 %v2040
        %v3467 = vunpack.c.l.b16 %v2041
        %v3468 = vunpack.c.h.b16 %v2041
        %v3469 = vunpack.c.l.b16 %v2042
        %v3470 = vunpack.c.h.b16 %v2042
        %v3471 = vunpack.c.l.b16 %v2043
        %v3472 = vunpack.c.h.b16 %v2043
        %v3473 = vunpack.c.l.b16 %v2044
        %v3474 = vunpack.c.h.b16 %v2044
        %v3475 = vunpack.c.l.b16 %v2045
        %v3476 = vunpack.c.h.b16 %v2045
        %v3477 = vunpack.c.l.b16 %v2046
        %v3478 = vunpack.c.h.b16 %v2046
        %v3479 = vunpack.c.l.b16 %v2047
        %v3480 = vunpack.c.h.b16 %v2047
        %v3481 = vunpack.c.l.b16 %v2048
        %v3482 = vunpack.c.h.b16 %v2048
        %v3483 = vunpack.c.l.b16 %v2049
        %v3484 = vunpack.c.h.b16 %v2049
        %v3485 = vunpack.c.l.b16 %v2050
        %v3486 = vunpack.c.h.b16 %v2050
        %v3487 = vunpack.c.l.b16 %v2051
        %v3488 = vunpack.c.h.b16 %v2051
        %v3489 = vunpack.c.l.b16 %v2052
        %v3490 = vunpack.c.h.b16 %v2052
        %v3491 = vunpack.c.l.b16 %v2053
        %v3492 = vunpack.c.h.b16 %v2053
        %v3493 = vunpack.c.l.b16 %v2054
        %v3494 = vunpack.c.h.b16 %v2054
        %v3495 = vunpack.c.l.b16 %v2055
        %v3496 = vunpack.c.h.b16 %v2055
        %v3497 = vunpack.c.l.b16 %v2056
        %v3498 = vunpack.c.h.b16 %v2056
        %v3499 = vunpack.c.l.b16 %v2057
        %v3500 = vunpack.c.h.b16 %v2057
        %v3501 = vunpack.c.l.b16 %v2058
        %v3502 = vunpack.c.h.b16 %v2058
        %v3503 = vunpack.c.l.b16 %v2059
        %v3504 = vunpack.c.h.b16 %v2059
        %v3505 = vunpack.c.l.b16 %v2060
        %v3506 = vunpack.c.h.b16 %v2060
        %v3507 = vunpack.c.l.b16 %v2061
        %v3508 = vunpack.c.h.b16 %v2061
        %v3509 = vunpack.c.l.b16 %v2062
        %v3510 = vunpack.c.h.b16 %v2062
        %v3511 = vunpack.c.l.b16 %v2063
        %v3512 = vunpack.c.h.b16 %v2063
        %v3513 = vunpack.c.l.b16 %v2064
        %v3514 = vunpack.c.h.b16 %v2064
        %v3515 = vunpack.c.l.b16 %v2065
        %v3516 = vunpack.c.h.b16 %v2065
        %v3517 = vunpack.c.l.b16 %v2066
        %v3518 = vunpack.c.h.b16 %v2066
        %v3519 = vunpack.c.l.b16 %v2067
        %v3520 = vunpack.c.h.b16 %v2067
        %v3521 = vunpack.c.l.b16 %v2068
        %v3522 = vunpack.c.h.b16 %v2068
        %v3523 = vunpack.c.l.b16 %v2069
        %v3524 = vunpack.c.h.b16 %v2069
        %v3525 = vunpack.c.l.b16 %v2070
        %v3526 = vunpack.c.h.b16 %v2070
        %v3527 = vunpack.c.l.b16 %v2071
        %v3528 = vunpack.c.h.b16 %v2071
        %v3529 = vunpack.c.l.b16 %v2072
        %v3530 = vunpack.c.h.b16 %v2072
        %v3531 = vunpack.c.l.b16 %v2073
        %v3532 = vunpack.c.h.b16 %v2073
        %v3533 = vunpack.c.l.b16 %v2074
        %v3534 = vunpack.c.h.b16 %v2074
        %v3535 = vunpack.c.l.b16 %v2075
        %v3536 = vunpack.c.h.b16 %v2075
        %v3537 = vunpack.c.l.b16 %v2076
        %v3538 = vunpack.c.h.b16 %v2076
        %v3539 = vunpack.c.l.b16 %v2077
        %v3540 = vunpack.c.h.b16 %v2077
        %v3541 = vunpack.c.l.b16 %v2078
        %v3542 = vunpack.c.h.b16 %v2078
        %v3543 = vunpack.c.l.b16 %v2079
        %v3544 = vunpack.c.h.b16 %v2079
        %v3545 = vunpack.c.l.b16 %v2080
        %v3546 = vunpack.c.h.b16 %v2080
        %v3547 = vunpack.c.l.b16 %v2081
        %v3548 = vunpack.c.h.b16 %v2081
        %v3549 = vunpack.c.l.b16 %v2082
        %v3550 = vunpack.c.h.b16 %v2082
        %v3551 = vunpack.c.l.b16 %v2083
        %v3552 = vunpack.c.h.b16 %v2083
        %v3553 = vunpack.c.l.b16 %v2084
        %v3554 = vunpack.c.h.b16 %v2084
        %v3555 = vunpack.c.l.b16 %v2085
        %v3556 = vunpack.c.h.b16 %v2085
        %v3557 = vunpack.c.l.b16 %v2086
        %v3558 = vunpack.c.h.b16 %v2086
        %v3559 = vunpack.c.l.b16 %v2087
        %v3560 = vunpack.c.h.b16 %v2087
        %v3561 = vunpack.c.l.b16 %v2088
        %v3562 = vunpack.c.h.b16 %v2088
        %v3563 = vunpack.c.l.b16 %v2089
        %v3564 = vunpack.c.h.b16 %v2089
        %v3565 = vunpack.c.l.b16 %v2090
        %v3566 = vunpack.c.h.b16 %v2090
        %v3567 = vunpack.c.l.b16 %v2091
        %v3568 = vunpack.c.h.b16 %v2091
        %v3569 = vunpack.c.l.b16 %v2092
        %v3570 = vunpack.c.h.b16 %v2092
        %v3571 = vunpack.c.l.b16 %v2093
        %v3572 = vunpack.c.h.b16 %v2093
        %v3573 = vunpack.c.l.b16 %v2094
        %v3574 = vunpack.c.h.b16 %v2094
        %v3575 = vunpack.c.l.b16 %v2095
        %v3576 = vunpack.c.h.b16 %v2095
        %v3577 = vunpack.c.l.b16 %v2096
        %v3578 = vunpack.c.h.b16 %v2096
        %v3579 = vunpack.c.l.b16 %v2097
        %v3580 = vunpack.c.h.b16 %v2097
        %v3581 = vunpack.c.l.b16 %v2098
        %v3582 = vunpack.c.h.b16 %v2098
        %v3583 = vunpack.c.l.b16 %v2099
        %v3584 = vunpack.c.h.b16 %v2099
        %v3585 = vunpack.c.l.b16 %v2100
        %v3586 = vunpack.c.h.b16 %v2100
        %v3587 = vunpack.c.l.b16 %v2101
        %v3588 = vunpack.c.h.b16 %v2101
        %v3589 = vunpack.c.l.b16 %v2102
        %v3590 = vunpack.c.h.b16 %v2102
        %v3591 = vunpack.c.l.b16 %v2103
        %v3592 = vunpack.c.h.b16 %v2103
        %v3593 = vunpack.c.l.b16 %v2104
        %v3594 = vunpack.c.h.b16 %v2104
        %v3595 = vunpack.c.l.b16 %v2105
        %v3596 = vunpack.c.h.b16 %v2105
        %v3597 = vunpack.c.l.b16 %v2106
        %v3598 = vunpack.c.h.b16 %v2106
        %v3599 = vunpack.c.l.b16 %v2107
        %v3600 = vunpack.c.h.b16 %v2107
        %v3601 = vunpack.c.l.b16 %v2108
        %v3602 = vunpack.c.h.b16 %v2108
        %v3603 = vunpack.c.l.b16 %v2109
        %v3604 = vunpack.c.h.b16 %v2109
        %v3605 = vunpack.c.l.b16 %v2110
        %v3606 = vunpack.c.h.b16 %v2110
        %v3607 = vunpack.c.l.b16 %v2111
        %v3608 = vunpack.c.h.b16 %v2111
        %v3609 = vunpack.c.l.b16 %v2112
        %v3610 = vunpack.c.h.b16 %v2112
        %v3611 = vunpack.c.l.b16 %v2113
        %v3612 = vunpack.c.h.b16 %v2113
        %v3613 = vunpack.c.l.b16 %v2114
        %v3614 = vunpack.c.h.b16 %v2114
        %v3615 = vunpack.c.l.b16 %v2115
        %v3616 = vunpack.c.h.b16 %v2115
        %v3617 = vunpack.c.l.b16 %v2116
        %v3618 = vunpack.c.h.b16 %v2116
        %v3619 = vunpack.c.l.b16 %v2117
        %v3620 = vunpack.c.h.b16 %v2117
        %v3621 = vunpack.c.l.b16 %v2118
        %v3622 = vunpack.c.h.b16 %v2118
        %v3623 = vunpack.c.l.b16 %v2119
        %v3624 = vunpack.c.h.b16 %v2119
        %v3625 = vunpack.c.l.b16 %v2120
        %v3626 = vunpack.c.h.b16 %v2120
        %v3627 = vunpack.c.l.b16 %v2121
        %v3628 = vunpack.c.h.b16 %v2121
        %v3629 = vunpack.c.l.b16 %v2122
        %v3630 = vunpack.c.h.b16 %v2122
        %v3631 = vunpack.c.l.b16 %v2123
        %v3632 = vunpack.c.h.b16 %v2123
        %v3633 = vunpack.c.l.b16 %v2124
        %v3634 = vunpack.c.h.b16 %v2124
        %v3635 = vunpack.c.l.b16 %v2125
        %v3636 = vunpack.c.h.b16 %v2125
        %v3637 = vunpack.c.l.b16 %v2126
        %v3638 = vunpack.c.h.b16 %v2126
        %v3639 = vunpack.c.l.b16 %v2127
        %v3640 = vunpack.c.h.b16 %v2127
        %v3641 = vunpack.c.l.b16 %v2128
        %v3642 = vunpack.c.h.b16 %v2128
        %v3643 = vunpack.c.l.b16 %v2129
        %v3644 = vunpack.c.h.b16 %v2129
        %v3645 = vunpack.c.l.b16 %v2130
        %v3646 = vunpack.c.h.b16 %v2130
        %v3647 = vunpack.c.l.b16 %v2131
        %v3648 = vunpack.c.h.b16 %v2131
        %v3649 = vunpack.c.l.b16 %v2132
        %v3650 = vunpack.c.h.b16 %v2132
        %v3651 = vunpack.c.l.b16 %v2133
        %v3652 = vunpack.c.h.b16 %v2133
        %v3653 = vunpack.c.l.b16 %v2134
        %v3654 = vunpack.c.h.b16 %v2134
        %v3655 = vunpack.c.l.b16 %v2135
        %v3656 = vunpack.c.h.b16 %v2135
        %v3657 = vunpack.c.l.b16 %v2136
        %v3658 = vunpack.c.h.b16 %v2136
        %v3659 = vunpack.c.l.b16 %v2137
        %v3660 = vunpack.c.h.b16 %v2137
        %v3661 = vunpack.c.l.b16 %v2138
        %v3662 = vunpack.c.h.b16 %v2138
        %v3663 = vunpack.c.l.b16 %v2139
        %v3664 = vunpack.c.h.b16 %v2139
        %v3665 = vunpack.c.l.b16 %v2140
        %v3666 = vunpack.c.h.b16 %v2140
        %v3667 = vunpack.c.l.b16 %v2141
        %v3668 = vunpack.c.h.b16 %v2141
        %v3669 = vunpack.c.l.b16 %v2142
        %v3670 = vunpack.c.h.b16 %v2142
        %v3671 = vunpack.c.l.b16 %v2143
        %v3672 = vunpack.c.h.b16 %v2143
        %v3673 = vunpack.c.l.b16 %v2144
        %v3674 = vunpack.c.h.b16 %v2144
        %v3675 = vunpack.c.l.b16 %v2145
        %v3676 = vunpack.c.h.b16 %v2145
        %v3677 = vunpack.c.l.b16 %v2146
        %v3678 = vunpack.c.h.b16 %v2146
        %v3679 = vunpack.c.l.b16 %v2147
        %v3680 = vunpack.c.h.b16 %v2147
        %v3681 = vunpack.c.l.b16 %v2148
        %v3682 = vunpack.c.h.b16 %v2148
        %v3683 = vunpack.c.l.b16 %v2149
        %v3684 = vunpack.c.h.b16 %v2149
        %v3685 = vunpack.c.l.b16 %v2150
        %v3686 = vunpack.c.h.b16 %v2150
        %v3687 = vunpack.c.l.b16 %v2151
        %v3688 = vunpack.c.h.b16 %v2151
        %v3689 = vunpack.c.l.b16 %v2152
        %v3690 = vunpack.c.h.b16 %v2152
        %v3691 = vunpack.c.l.b16 %v2153
        %v3692 = vunpack.c.h.b16 %v2153
        %v3693 = vunpack.c.l.b16 %v2154
        %v3694 = vunpack.c.h.b16 %v2154
        %v3695 = vunpack.c.l.b16 %v2155
        %v3696 = vunpack.c.h.b16 %v2155
        %v3697 = vunpack.c.l.b16 %v2156
        %v3698 = vunpack.c.h.b16 %v2156
        %v3699 = vunpack.c.l.b16 %v2157
        %v3700 = vunpack.c.h.b16 %v2157
        %v3701 = vunpack.c.l.b16 %v2158
        %v3702 = vunpack.c.h.b16 %v2158
        %v3703 = vunpack.c.l.b16 %v2159
        %v3704 = vunpack.c.h.b16 %v2159
        %v3705 = vunpack.c.l.b16 %v2160
        %v3706 = vunpack.c.h.b16 %v2160
        %v3707 = vunpack.c.l.b16 %v2161
        %v3708 = vunpack.c.h.b16 %v2161
        %v3709 = vunpack.c.l.b16 %v2162
        %v3710 = vunpack.c.h.b16 %v2162
        %v3711 = vunpack.c.l.b16 %v2163
        %v3712 = vunpack.c.h.b16 %v2163
        %v3713 = vunpack.c.l.b16 %v2164
        %v3714 = vunpack.c.h.b16 %v2164
        %v3715 = vunpack.c.l.b16 %v2165
        %v3716 = vunpack.c.h.b16 %v2165
        %v3717 = vunpack.c.l.b16 %v2166
        %v3718 = vunpack.c.h.b16 %v2166
        %v3719 = vunpack.c.l.b16 %v2167
        %v3720 = vunpack.c.h.b16 %v2167
        %v3721 = vunpack.c.l.b16 %v2168
        %v3722 = vunpack.c.h.b16 %v2168
        %v3723 = vunpack.c.l.b16 %v2169
        %v3724 = vunpack.c.h.b16 %v2169
        %v3725 = vunpack.c.l.b16 %v2170
        %v3726 = vunpack.c.h.b16 %v2170
        %v3727 = vunpack.c.l.b16 %v2171
        %v3728 = vunpack.c.h.b16 %v2171
        %v3729 = vunpack.c.l.b16 %v2172
        %v3730 = vunpack.c.h.b16 %v2172
        %v3731 = vpack.c.b16 %v2711, %v2707
        %v3732 = vpack.c.b16 %v2712, %v2708
        %v3733 = vpack.c.b16 %v2713, %v2709
        %v3734 = vpack.c.b16 %v2714, %v2710
        %v3735 = vpack.c.b16 %v2719, %v2715
        %v3736 = vpack.c.b16 %v2720, %v2716
        %v3737 = vpack.c.b16 %v2721, %v2717
        %v3738 = vpack.c.b16 %v2722, %v2718
        %v3739 = vpack.c.b16 %v2727, %v2723
        %v3740 = vpack.c.b16 %v2728, %v2724
        %v3741 = vpack.c.b16 %v2729, %v2725
        %v3742 = vpack.c.b16 %v2730, %v2726
        %v3743 = vpack.c.b16 %v2735, %v2731
        %v3744 = vpack.c.b16 %v2736, %v2732
        %v3745 = vpack.c.b16 %v2737, %v2733
        %v3746 = vpack.c.b16 %v2738, %v2734
        %v3747 = vpack.c.b16 %v2743, %v2739
        %v3748 = vpack.c.b16 %v2744, %v2740
        %v3749 = vpack.c.b16 %v2745, %v2741
        %v3750 = vpack.c.b16 %v2746, %v2742
        %v3751 = vpack.c.b16 %v2751, %v2747
        %v3752 = vpack.c.b16 %v2752, %v2748
        %v3753 = vpack.c.b16 %v2753, %v2749
        %v3754 = vpack.c.b16 %v2754, %v2750
        %v3755 = vpack.c.b16 %v2759, %v2755
        %v3756 = vpack.c.b16 %v2760, %v2756
        %v3757 = vpack.c.b16 %v2761, %v2757
        %v3758 = vpack.c.b16 %v2762, %v2758
        %v3759 = vpack.c.b16 %v2767, %v2763
        %v3760 = vpack.c.b16 %v2768, %v2764
        %v3761 = vpack.c.b16 %v2769, %v2765
        %v3762 = vpack.c.b16 %v2770, %v2766
        %v3763 = vpack.c.b16 %v2775, %v2771
        %v3764 = vpack.c.b16 %v2776, %v2772
        %v3765 = vpack.c.b16 %v2777, %v2773
        %v3766 = vpack.c.b16 %v2778, %v2774
        %v3767 = vpack.c.b16 %v2783, %v2779
        %v3768 = vpack.c.b16 %v2784, %v2780
        %v3769 = vpack.c.b16 %v2785, %v2781
        %v3770 = vpack.c.b16 %v2786, %v2782
        %v3771 = vpack.c.b16 %v2791, %v2787
        %v3772 = vpack.c.b16 %v2792, %v2788
        %v3773 = vpack.c.b16 %v2793, %v2789
        %v3774 = vpack.c.b16 %v2794, %v2790
        %v3775 = vpack.c.b16 %v2799, %v2795
        %v3776 = vpack.c.b16 %v2800, %v2796
        %v3777 = vpack.c.b16 %v2801, %v2797
        %v3778 = vpack.c.b16 %v2802, %v2798
        %v3779 = vpack.c.b16 %v2807, %v2803
        %v3780 = vpack.c.b16 %v2808, %v2804
        %v3781 = vpack.c.b16 %v2809, %v2805
        %v3782 = vpack.c.b16 %v2810, %v2806
        %v3783 = vpack.c.b16 %v2815, %v2811
        %v3784 = vpack.c.b16 %v2816, %v2812
        %v3785 = vpack.c.b16 %v2817, %v2813
        %v3786 = vpack.c.b16 %v2818, %v2814
        %v3787 = vpack.c.b16 %v2823, %v2819
        %v3788 = vpack.c.b16 %v2824, %v2820
        %v3789 = vpack.c.b16 %v2825, %v2821
        %v3790 = vpack.c.b16 %v2826, %v2822
        %v3791 = vpack.c.b16 %v2831, %v2827
        %v3792 = vpack.c.b16 %v2832, %v2828
        %v3793 = vpack.c.b16 %v2833, %v2829
        %v3794 = vpack.c.b16 %v2834, %v2830
        %v3795 = vpack.c.b16 %v2839, %v2835
        %v3796 = vpack.c.b16 %v2840, %v2836
        %v3797 = vpack.c.b16 %v2841, %v2837
        %v3798 = vpack.c.b16 %v2842, %v2838
        %v3799 = vpack.c.b16 %v2847, %v2843
        %v3800 = vpack.c.b16 %v2848, %v2844
        %v3801 = vpack.c.b16 %v2849, %v2845
        %v3802 = vpack.c.b16 %v2850, %v2846
        %v3803 = vpack.c.b16 %v2855, %v2851
        %v3804 = vpack.c.b16 %v2856, %v2852
        %v3805 = vpack.c.b16 %v2857, %v2853
        %v3806 = vpack.c.b16 %v2858, %v2854
        %v3807 = vpack.c.b16 %v2863, %v2859
        %v3808 = vpack.c.b16 %v2864, %v2860
        %v3809 = vpack.c.b16 %v2865, %v2861
        %v3810 = vpack.c.b16 %v2866, %v2862
        %v3811 = vpack.c.b16 %v2871, %v2867
        %v3812 = vpack.c.b16 %v2872, %v2868
        %v3813 = vpack.c.b16 %v2873, %v2869
        %v3814 = vpack.c.b16 %v2874, %v2870
        %v3815 = vpack.c.b16 %v2879, %v2875
        %v3816 = vpack.c.b16 %v2880, %v2876
        %v3817 = vpack.c.b16 %v2881, %v2877
        %v3818 = vpack.c.b16 %v2882, %v2878
        %v3819 = vpack.c.b16 %v2887, %v2883
        %v3820 = vpack.c.b16 %v2888, %v2884
        %v3821 = vpack.c.b16 %v2889, %v2885
        %v3822 = vpack.c.b16 %v2890, %v2886
        %v3823 = vpack.c.b16 %v2895, %v2891
        %v3824 = vpack.c.b16 %v2896, %v2892
        %v3825 = vpack.c.b16 %v2897, %v2893
        %v3826 = vpack.c.b16 %v2898, %v2894
        %v3827 = vpack.c.b16 %v2903, %v2899
        %v3828 = vpack.c.b16 %v2904, %v2900
        %v3829 = vpack.c.b16 %v2905, %v2901
        %v3830 = vpack.c.b16 %v2906, %v2902
        %v3831 = vpack.c.b16 %v2911, %v2907
        %v3832 = vpack.c.b16 %v2912, %v2908
        %v3833 = vpack.c.b16 %v2913, %v2909
        %v3834 = vpack.c.b16 %v2914, %v2910
        %v3835 = vpack.c.b16 %v2919, %v2915
        %v3836 = vpack.c.b16 %v2920, %v2916
        %v3837 = vpack.c.b16 %v2921, %v2917
        %v3838 = vpack.c.b16 %v2922, %v2918
        %v3839 = vpack.c.b16 %v2927, %v2923
        %v3840 = vpack.c.b16 %v2928, %v2924
        %v3841 = vpack.c.b16 %v2929, %v2925
        %v3842 = vpack.c.b16 %v2930, %v2926
        %v3843 = vpack.c.b16 %v2935, %v2931
        %v3844 = vpack.c.b16 %v2936, %v2932
        %v3845 = vpack.c.b16 %v2937, %v2933
        %v3846 = vpack.c.b16 %v2938, %v2934
        %v3847 = vpack.c.b16 %v2943, %v2939
        %v3848 = vpack.c.b16 %v2944, %v2940
        %v3849 = vpack.c.b16 %v2945, %v2941
        %v3850 = vpack.c.b16 %v2946, %v2942
        %v3851 = vpack.c.b16 %v2951, %v2947
        %v3852 = vpack.c.b16 %v2952, %v2948
        %v3853 = vpack.c.b16 %v2953, %v2949
        %v3854 = vpack.c.b16 %v2954, %v2950
        %v3855 = vpack.c.b16 %v2959, %v2955
        %v3856 = vpack.c.b16 %v2960, %v2956
        %v3857 = vpack.c.b16 %v2961, %v2957
        %v3858 = vpack.c.b16 %v2962, %v2958
        %v3859 = vpack.c.b16 %v2967, %v2963
        %v3860 = vpack.c.b16 %v2968, %v2964
        %v3861 = vpack.c.b16 %v2969, %v2965
        %v3862 = vpack.c.b16 %v2970, %v2966
        %v3863 = vpack.c.b16 %v2975, %v2971
        %v3864 = vpack.c.b16 %v2976, %v2972
        %v3865 = vpack.c.b16 %v2977, %v2973
        %v3866 = vpack.c.b16 %v2978, %v2974
        %v3867 = vpack.c.b16 %v2983, %v2979
        %v3868 = vpack.c.b16 %v2984, %v2980
        %v3869 = vpack.c.b16 %v2985, %v2981
        %v3870 = vpack.c.b16 %v2986, %v2982
        %v3871 = vpack.c.b16 %v2991, %v2987
        %v3872 = vpack.c.b16 %v2992, %v2988
        %v3873 = vpack.c.b16 %v2993, %v2989
        %v3874 = vpack.c.b16 %v2994, %v2990
        %v3875 = vpack.c.b16 %v2999, %v2995
        %v3876 = vpack.c.b16 %v3000, %v2996
        %v3877 = vpack.c.b16 %v3001, %v2997
        %v3878 = vpack.c.b16 %v3002, %v2998
        %v3879 = vpack.c.b16 %v3007, %v3003
        %v3880 = vpack.c.b16 %v3008, %v3004
        %v3881 = vpack.c.b16 %v3009, %v3005
        %v3882 = vpack.c.b16 %v3010, %v3006
        %v3883 = vpack.c.b16 %v3015, %v3011
        %v3884 = vpack.c.b16 %v3016, %v3012
        %v3885 = vpack.c.b16 %v3017, %v3013
        %v3886 = vpack.c.b16 %v3018, %v3014
        %v3887 = vpack.c.b16 %v3023, %v3019
        %v3888 = vpack.c.b16 %v3024, %v3020
        %v3889 = vpack.c.b16 %v3025, %v3021
        %v3890 = vpack.c.b16 %v3026, %v3022
        %v3891 = vpack.c.b16 %v3031, %v3027
        %v3892 = vpack.c.b16 %v3032, %v3028
        %v3893 = vpack.c.b16 %v3033, %v3029
        %v3894 = vpack.c.b16 %v3034, %v3030
        %v3895 = vpack.c.b16 %v3039, %v3035
        %v3896 = vpack.c.b16 %v3040, %v3036
        %v3897 = vpack.c.b16 %v3041, %v3037
        %v3898 = vpack.c.b16 %v3042, %v3038
        %v3899 = vpack.c.b16 %v3047, %v3043
        %v3900 = vpack.c.b16 %v3048, %v3044
        %v3901 = vpack.c.b16 %v3049, %v3045
        %v3902 = vpack.c.b16 %v3050, %v3046
        %v3903 = vpack.c.b16 %v3055, %v3051
        %v3904 = vpack.c.b16 %v3056, %v3052
        %v3905 = vpack.c.b16 %v3057, %v3053
        %v3906 = vpack.c.b16 %v3058, %v3054
        %v3907 = vpack.c.b16 %v3063, %v3059
        %v3908 = vpack.c.b16 %v3064, %v3060
        %v3909 = vpack.c.b16 %v3065, %v3061
        %v3910 = vpack.c.b16 %v3066, %v3062
        %v3911 = vpack.c.b16 %v3071, %v3067
        %v3912 = vpack.c.b16 %v3072, %v3068
        %v3913 = vpack.c.b16 %v3073, %v3069
        %v3914 = vpack.c.b16 %v3074, %v3070
        %v3915 = vpack.c.b16 %v3079, %v3075
        %v3916 = vpack.c.b16 %v3080, %v3076
        %v3917 = vpack.c.b16 %v3081, %v3077
        %v3918 = vpack.c.b16 %v3082, %v3078
        %v3919 = vpack.c.b16 %v3087, %v3083
        %v3920 = vpack.c.b16 %v3088, %v3084
        %v3921 = vpack.c.b16 %v3089, %v3085
        %v3922 = vpack.c.b16 %v3090, %v3086
        %v3923 = vpack.c.b16 %v3095, %v3091
        %v3924 = vpack.c.b16 %v3096, %v3092
        %v3925 = vpack.c.b16 %v3097, %v3093
        %v3926 = vpack.c.b16 %v3098, %v3094
        %v3927 = vpack.c.b16 %v3103, %v3099
        %v3928 = vpack.c.b16 %v3104, %v3100
        %v3929 = vpack.c.b16 %v3105, %v3101
        %v3930 = vpack.c.b16 %v3106, %v3102
        %v3931 = vpack.c.b16 %v3111, %v3107
        %v3932 = vpack.c.b16 %v3112, %v3108
        %v3933 = vpack.c.b16 %v3113, %v3109
        %v3934 = vpack.c.b16 %v3114, %v3110
        %v3935 = vpack.c.b16 %v3119, %v3115
        %v3936 = vpack.c.b16 %v3120, %v3116
        %v3937 = vpack.c.b16 %v3121, %v3117
        %v3938 = vpack.c.b16 %v3122, %v3118
        %v3939 = vpack.c.b16 %v3127, %v3123
        %v3940 = vpack.c.b16 %v3128, %v3124
        %v3941 = vpack.c.b16 %v3129, %v3125
        %v3942 = vpack.c.b16 %v3130, %v3126
        %v3943 = vpack.c.b16 %v3135, %v3131
        %v3944 = vpack.c.b16 %v3136, %v3132
        %v3945 = vpack.c.b16 %v3137, %v3133
        %v3946 = vpack.c.b16 %v3138, %v3134
        %v3947 = vpack.c.b16 %v3143, %v3139
        %v3948 = vpack.c.b16 %v3144, %v3140
        %v3949 = vpack.c.b16 %v3145, %v3141
        %v3950 = vpack.c.b16 %v3146, %v3142
        %v3951 = vpack.c.b16 %v3151, %v3147
        %v3952 = vpack.c.b16 %v3152, %v3148
        %v3953 = vpack.c.b16 %v3153, %v3149
        %v3954 = vpack.c.b16 %v3154, %v3150
        %v3955 = vpack.c.b16 %v3159, %v3155
        %v3956 = vpack.c.b16 %v3160, %v3156
        %v3957 = vpack.c.b16 %v3161, %v3157
        %v3958 = vpack.c.b16 %v3162, %v3158
        %v3959 = vpack.c.b16 %v3167, %v3163
        %v3960 = vpack.c.b16 %v3168, %v3164
        %v3961 = vpack.c.b16 %v3169, %v3165
        %v3962 = vpack.c.b16 %v3170, %v3166
        %v3963 = vpack.c.b16 %v3175, %v3171
        %v3964 = vpack.c.b16 %v3176, %v3172
        %v3965 = vpack.c.b16 %v3177, %v3173
        %v3966 = vpack.c.b16 %v3178, %v3174
        %v3967 = vpack.c.b16 %v3183, %v3179
        %v3968 = vpack.c.b16 %v3184, %v3180
        %v3969 = vpack.c.b16 %v3185, %v3181
        %v3970 = vpack.c.b16 %v3186, %v3182
        %v3971 = vpack.c.b16 %v3191, %v3187
        %v3972 = vpack.c.b16 %v3192, %v3188
        %v3973 = vpack.c.b16 %v3193, %v3189
        %v3974 = vpack.c.b16 %v3194, %v3190
        %v3975 = vpack.c.b16 %v3199, %v3195
        %v3976 = vpack.c.b16 %v3200, %v3196
        %v3977 = vpack.c.b16 %v3201, %v3197
        %v3978 = vpack.c.b16 %v3202, %v3198
        %v3979 = vpack.c.b16 %v3207, %v3203
        %v3980 = vpack.c.b16 %v3208, %v3204
        %v3981 = vpack.c.b16 %v3209, %v3205
        %v3982 = vpack.c.b16 %v3210, %v3206
        %v3983 = vpack.c.b16 %v3215, %v3211
        %v3984 = vpack.c.b16 %v3216, %v3212
        %v3985 = vpack.c.b16 %v3217, %v3213
        %v3986 = vpack.c.b16 %v3218, %v3214
        %v3987 = vpack.c.b16 %v3223, %v3219
        %v3988 = vpack.c.b16 %v3224, %v3220
        %v3989 = vpack.c.b16 %v3225, %v3221
        %v3990 = vpack.c.b16 %v3226, %v3222
        %v3991 = vpack.c.b16 %v3231, %v3227
        %v3992 = vpack.c.b16 %v3232, %v3228
        %v3993 = vpack.c.b16 %v3233, %v3229
        %v3994 = vpack.c.b16 %v3234, %v3230
        %v3995 = vpack.c.b16 %v3239, %v3235
        %v3996 = vpack.c.b16 %v3240, %v3236
        %v3997 = vpack.c.b16 %v3241, %v3237
        %v3998 = vpack.c.b16 %v3242, %v3238
        %v3999 = vpack.c.b16 %v3247, %v3243
        %v4000 = vpack.c.b16 %v3248, %v3244
        %v4001 = vpack.c.b16 %v3249, %v3245
        %v4002 = vpack.c.b16 %v3250, %v3246
        %v4003 = vpack.c.b16 %v3255, %v3251
        %v4004 = vpack.c.b16 %v3256, %v3252
        %v4005 = vpack.c.b16 %v3257, %v3253
        %v4006 = vpack.c.b16 %v3258, %v3254
        %v4007 = vpack.c.b16 %v3263, %v3259
        %v4008 = vpack.c.b16 %v3264, %v3260
        %v4009 = vpack.c.b16 %v3265, %v3261
        %v4010 = vpack.c.b16 %v3266, %v3262
        %v4011 = vpack.c.b16 %v3271, %v3267
        %v4012 = vpack.c.b16 %v3272, %v3268
        %v4013 = vpack.c.b16 %v3273, %v3269
        %v4014 = vpack.c.b16 %v3274, %v3270
        %v4015 = vpack.c.b16 %v3279, %v3275
        %v4016 = vpack.c.b16 %v3280, %v3276
        %v4017 = vpack.c.b16 %v3281, %v3277
        %v4018 = vpack.c.b16 %v3282, %v3278
        %v4019 = vpack.c.b16 %v3287, %v3283
        %v4020 = vpack.c.b16 %v3288, %v3284
        %v4021 = vpack.c.b16 %v3289, %v3285
        %v4022 = vpack.c.b16 %v3290, %v3286
        %v4023 = vpack.c.b16 %v3295, %v3291
        %v4024 = vpack.c.b16 %v3296, %v3292
        %v4025 = vpack.c.b16 %v3297, %v3293
        %v4026 = vpack.c.b16 %v3298, %v3294
        %v4027 = vpack.c.b16 %v3303, %v3299
        %v4028 = vpack.c.b16 %v3304, %v3300
        %v4029 = vpack.c.b16 %v3305, %v3301
        %v4030 = vpack.c.b16 %v3306, %v3302
        %v4031 = vpack.c.b16 %v3311, %v3307
        %v4032 = vpack.c.b16 %v3312, %v3308
        %v4033 = vpack.c.b16 %v3313, %v3309
        %v4034 = vpack.c.b16 %v3314, %v3310
        %v4035 = vpack.c.b16 %v3319, %v3315
        %v4036 = vpack.c.b16 %v3320, %v3316
        %v4037 = vpack.c.b16 %v3321, %v3317
        %v4038 = vpack.c.b16 %v3322, %v3318
        %v4039 = vpack.c.b16 %v3327, %v3323
        %v4040 = vpack.c.b16 %v3328, %v3324
        %v4041 = vpack.c.b16 %v3329, %v3325
        %v4042 = vpack.c.b16 %v3330, %v3326
        %v4043 = vpack.c.b16 %v3335, %v3331
        %v4044 = vpack.c.b16 %v3336, %v3332
        %v4045 = vpack.c.b16 %v3337, %v3333
        %v4046 = vpack.c.b16 %v3338, %v3334
        %v4047 = vpack.c.b16 %v3343, %v3339
        %v4048 = vpack.c.b16 %v3344, %v3340
        %v4049 = vpack.c.b16 %v3345, %v3341
        %v4050 = vpack.c.b16 %v3346, %v3342
        %v4051 = vpack.c.b16 %v3351, %v3347
        %v4052 = vpack.c.b16 %v3352, %v3348
        %v4053 = vpack.c.b16 %v3353, %v3349
        %v4054 = vpack.c.b16 %v3354, %v3350
        %v4055 = vpack.c.b16 %v3359, %v3355
        %v4056 = vpack.c.b16 %v3360, %v3356
        %v4057 = vpack.c.b16 %v3361, %v3357
        %v4058 = vpack.c.b16 %v3362, %v3358
        %v4059 = vpack.c.b16 %v3367, %v3363
        %v4060 = vpack.c.b16 %v3368, %v3364
        %v4061 = vpack.c.b16 %v3369, %v3365
        %v4062 = vpack.c.b16 %v3370, %v3366
        %v4063 = vpack.c.b16 %v3375, %v3371
        %v4064 = vpack.c.b16 %v3376, %v3372
        %v4065 = vpack.c.b16 %v3377, %v3373
        %v4066 = vpack.c.b16 %v3378, %v3374
        %v4067 = vpack.c.b16 %v3383, %v3379
        %v4068 = vpack.c.b16 %v3384, %v3380
        %v4069 = vpack.c.b16 %v3385, %v3381
        %v4070 = vpack.c.b16 %v3386, %v3382
        %v4071 = vpack.c.b16 %v3391, %v3387
        %v4072 = vpack.c.b16 %v3392, %v3388
        %v4073 = vpack.c.b16 %v3393, %v3389
        %v4074 = vpack.c.b16 %v3394, %v3390
        %v4075 = vpack.c.b16 %v3399, %v3395
        %v4076 = vpack.c.b16 %v3400, %v3396
        %v4077 = vpack.c.b16 %v3401, %v3397
        %v4078 = vpack.c.b16 %v3402, %v3398
        %v4079 = vpack.c.b16 %v3407, %v3403
        %v4080 = vpack.c.b16 %v3408, %v3404
        %v4081 = vpack.c.b16 %v3409, %v3405
        %v4082 = vpack.c.b16 %v3410, %v3406
        %v4083 = vpack.c.b16 %v3415, %v3411
        %v4084 = vpack.c.b16 %v3416, %v3412
        %v4085 = vpack.c.b16 %v3417, %v3413
        %v4086 = vpack.c.b16 %v3418, %v3414
        %v4087 = vpack.c.b16 %v3423, %v3419
        %v4088 = vpack.c.b16 %v3424, %v3420
        %v4089 = vpack.c.b16 %v3425, %v3421
        %v4090 = vpack.c.b16 %v3426, %v3422
        %v4091 = vpack.c.b16 %v3431, %v3427
        %v4092 = vpack.c.b16 %v3432, %v3428
        %v4093 = vpack.c.b16 %v3433, %v3429
        %v4094 = vpack.c.b16 %v3434, %v3430
        %v4095 = vpack.c.b16 %v3439, %v3435
        %v4096 = vpack.c.b16 %v3440, %v3436
        %v4097 = vpack.c.b16 %v3441, %v3437
        %v4098 = vpack.c.b16 %v3442, %v3438
        %v4099 = vpack.c.b16 %v3447, %v3443
        %v4100 = vpack.c.b16 %v3448, %v3444
        %v4101 = vpack.c.b16 %v3449, %v3445
        %v4102 = vpack.c.b16 %v3450, %v3446
        %v4103 = vpack.c.b16 %v3455, %v3451
        %v4104 = vpack.c.b16 %v3456, %v3452
        %v4105 = vpack.c.b16 %v3457, %v3453
        %v4106 = vpack.c.b16 %v3458, %v3454
        %v4107 = vpack.c.b16 %v3463, %v3459
        %v4108 = vpack.c.b16 %v3464, %v3460
        %v4109 = vpack.c.b16 %v3465, %v3461
        %v4110 = vpack.c.b16 %v3466, %v3462
        %v4111 = vpack.c.b16 %v3471, %v3467
        %v4112 = vpack.c.b16 %v3472, %v3468
        %v4113 = vpack.c.b16 %v3473, %v3469
        %v4114 = vpack.c.b16 %v3474, %v3470
        %v4115 = vpack.c.b16 %v3479, %v3475
        %v4116 = vpack.c.b16 %v3480, %v3476
        %v4117 = vpack.c.b16 %v3481, %v3477
        %v4118 = vpack.c.b16 %v3482, %v3478
        %v4119 = vpack.c.b16 %v3487, %v3483
        %v4120 = vpack.c.b16 %v3488, %v3484
        %v4121 = vpack.c.b16 %v3489, %v3485
        %v4122 = vpack.c.b16 %v3490, %v3486
        %v4123 = vpack.c.b16 %v3495, %v3491
        %v4124 = vpack.c.b16 %v3496, %v3492
        %v4125 = vpack.c.b16 %v3497, %v3493
        %v4126 = vpack.c.b16 %v3498, %v3494
        %v4127 = vpack.c.b16 %v3503, %v3499
        %v4128 = vpack.c.b16 %v3504, %v3500
        %v4129 = vpack.c.b16 %v3505, %v3501
        %v4130 = vpack.c.b16 %v3506, %v3502
        %v4131 = vpack.c.b16 %v3511, %v3507
        %v4132 = vpack.c.b16 %v3512, %v3508
        %v4133 = vpack.c.b16 %v3513, %v3509
        %v4134 = vpack.c.b16 %v3514, %v3510
        %v4135 = vpack.c.b16 %v3519, %v3515
        %v4136 = vpack.c.b16 %v3520, %v3516
        %v4137 = vpack.c.b16 %v3521, %v3517
        %v4138 = vpack.c.b16 %v3522, %v3518
        %v4139 = vpack.c.b16 %v3527, %v3523
        %v4140 = vpack.c.b16 %v3528, %v3524
        %v4141 = vpack.c.b16 %v3529, %v3525
        %v4142 = vpack.c.b16 %v3530, %v3526
        %v4143 = vpack.c.b16 %v3535, %v3531
        %v4144 = vpack.c.b16 %v3536, %v3532
        %v4145 = vpack.c.b16 %v3537, %v3533
        %v4146 = vpack.c.b16 %v3538, %v3534
        %v4147 = vpack.c.b16 %v3543, %v3539
        %v4148 = vpack.c.b16 %v3544, %v3540
        %v4149 = vpack.c.b16 %v3545, %v3541
        %v4150 = vpack.c.b16 %v3546, %v3542
        %v4151 = vpack.c.b16 %v3551, %v3547
        %v4152 = vpack.c.b16 %v3552, %v3548
        %v4153 = vpack.c.b16 %v3553, %v3549
        %v4154 = vpack.c.b16 %v3554, %v3550
        %v4155 = vpack.c.b16 %v3559, %v3555
        %v4156 = vpack.c.b16 %v3560, %v3556
        %v4157 = vpack.c.b16 %v3561, %v3557
        %v4158 = vpack.c.b16 %v3562, %v3558
        %v4159 = vpack.c.b16 %v3567, %v3563
        %v4160 = vpack.c.b16 %v3568, %v3564
        %v4161 = vpack.c.b16 %v3569, %v3565
        %v4162 = vpack.c.b16 %v3570, %v3566
        %v4163 = vpack.c.b16 %v3575, %v3571
        %v4164 = vpack.c.b16 %v3576, %v3572
        %v4165 = vpack.c.b16 %v3577, %v3573
        %v4166 = vpack.c.b16 %v3578, %v3574
        %v4167 = vpack.c.b16 %v3583, %v3579
        %v4168 = vpack.c.b16 %v3584, %v3580
        %v4169 = vpack.c.b16 %v3585, %v3581
        %v4170 = vpack.c.b16 %v3586, %v3582
        %v4171 = vpack.c.b16 %v3591, %v3587
        %v4172 = vpack.c.b16 %v3592, %v3588
        %v4173 = vpack.c.b16 %v3593, %v3589
        %v4174 = vpack.c.b16 %v3594, %v3590
        %v4175 = vpack.c.b16 %v3599, %v3595
        %v4176 = vpack.c.b16 %v3600, %v3596
        %v4177 = vpack.c.b16 %v3601, %v3597
        %v4178 = vpack.c.b16 %v3602, %v3598
        %v4179 = vpack.c.b16 %v3607, %v3603
        %v4180 = vpack.c.b16 %v3608, %v3604
        %v4181 = vpack.c.b16 %v3609, %v3605
        %v4182 = vpack.c.b16 %v3610, %v3606
        %v4183 = vpack.c.b16 %v3615, %v3611
        %v4184 = vpack.c.b16 %v3616, %v3612
        %v4185 = vpack.c.b16 %v3617, %v3613
        %v4186 = vpack.c.b16 %v3618, %v3614
        %v4187 = vpack.c.b16 %v3623, %v3619
        %v4188 = vpack.c.b16 %v3624, %v3620
        %v4189 = vpack.c.b16 %v3625, %v3621
        %v4190 = vpack.c.b16 %v3626, %v3622
        %v4191 = vpack.c.b16 %v3631, %v3627
        %v4192 = vpack.c.b16 %v3632, %v3628
        %v4193 = vpack.c.b16 %v3633, %v3629
        %v4194 = vpack.c.b16 %v3634, %v3630
        %v4195 = vpack.c.b16 %v3639, %v3635
        %v4196 = vpack.c.b16 %v3640, %v3636
        %v4197 = vpack.c.b16 %v3641, %v3637
        %v4198 = vpack.c.b16 %v3642, %v3638
        %v4199 = vpack.c.b16 %v3647, %v3643
        %v4200 = vpack.c.b16 %v3648, %v3644
        %v4201 = vpack.c.b16 %v3649, %v3645
        %v4202 = vpack.c.b16 %v3650, %v3646
        %v4203 = vpack.c.b16 %v3655, %v3651
        %v4204 = vpack.c.b16 %v3656, %v3652
        %v4205 = vpack.c.b16 %v3657, %v3653
        %v4206 = vpack.c.b16 %v3658, %v3654
        %v4207 = vpack.c.b16 %v3663, %v3659
        %v4208 = vpack.c.b16 %v3664, %v3660
        %v4209 = vpack.c.b16 %v3665, %v3661
        %v4210 = vpack.c.b16 %v3666, %v3662
        %v4211 = vpack.c.b16 %v3671, %v3667
        %v4212 = vpack.c.b16 %v3672, %v3668
        %v4213 = vpack.c.b16 %v3673, %v3669
        %v4214 = vpack.c.b16 %v3674, %v3670
        %v4215 = vpack.c.b16 %v3679, %v3675
        %v4216 = vpack.c.b16 %v3680, %v3676
        %v4217 = vpack.c.b16 %v3681, %v3677
        %v4218 = vpack.c.b16 %v3682, %v3678
        %v4219 = vpack.c.b16 %v3687, %v3683
        %v4220 = vpack.c.b16 %v3688, %v3684
        %v4221 = vpack.c.b16 %v3689, %v3685
        %v4222 = vpack.c.b16 %v3690, %v3686
        %v4223 = vpack.c.b16 %v3695, %v3691
        %v4224 = vpack.c.b16 %v3696, %v3692
        %v4225 = vpack.c.b16 %v3697, %v3693
        %v4226 = vpack.c.b16 %v3698, %v3694
        %v4227 = vpack.c.b16 %v3703, %v3699
        %v4228 = vpack.c.b16 %v3704, %v3700
        %v4229 = vpack.c.b16 %v3705, %v3701
        %v4230 = vpack.c.b16 %v3706, %v3702
        %v4231 = vpack.c.b16 %v3711, %v3707
        %v4232 = vpack.c.b16 %v3712, %v3708
        %v4233 = vpack.c.b16 %v3713, %v3709
        %v4234 = vpack.c.b16 %v3714, %v3710
        %v4235 = vpack.c.b16 %v3719, %v3715
        %v4236 = vpack.c.b16 %v3720, %v3716
        %v4237 = vpack.c.b16 %v3721, %v3717
        %v4238 = vpack.c.b16 %v3722, %v3718
        %v4239 = vpack.c.b16 %v3727, %v3723
        %v4240 = vpack.c.b16 %v3728, %v3724
        %v4241 = vpack.c.b16 %v3729, %v3725
        %v4242 = vpack.c.b16 %v3730, %v3726
        %4755 = vmatprep.subr.bf16.mxu0 %v3760
        %4756 = vmatpush1.bf16.msra.mxu0 %v3759
        %4757 = vmatprep.subr.bf16.mxu0 %v3756
        %4758 = vmatpush1.bf16.msra.mxu0 %v3755
        %4759 = vmatprep.subr.bf16.mxu0 %v3752
        %4760 = vmatpush1.bf16.msra.mxu0 %v3751
        %4761 = vmatprep.subr.bf16.mxu0 %v3748
        %4762 = vmatpush1.bf16.msra.mxu0 %v3747
        %4763 = vmatprep.subr.bf16.mxu0 %v3744
        %4764 = vmatpush1.bf16.msra.mxu0 %v3743
        %4765 = vmatprep.subr.bf16.mxu0 %v3740
        %4766 = vmatpush1.bf16.msra.mxu0 %v3739
        %4767 = vmatprep.subr.bf16.mxu0 %v3736
        %4768 = vmatpush1.bf16.msra.mxu0 %v3735
        %4769 = vmatprep.subr.bf16.mxu0 %v3732
        %4770 = vmatpush1.bf16.msra.mxu0 %v3731
        %4771 = vmatprep.subr.bf16.mxu0 %v3792
        %4772 = vmatpush2.bf16.msra.mxu0 %v3791
        %4773 = vmatprep.subr.bf16.mxu0 %v3788
        %4774 = vmatpush2.bf16.msra.mxu0 %v3787
        %4775 = vmatprep.subr.bf16.mxu0 %v3784
        %4776 = vmatpush2.bf16.msra.mxu0 %v3783
        %4777 = vmatprep.subr.bf16.mxu0 %v3780
        %4778 = vmatpush2.bf16.msra.mxu0 %v3779
        %4779 = vmatprep.subr.bf16.mxu0 %v3776
        %4780 = vmatpush2.bf16.msra.mxu0 %v3775
        %4781 = vmatprep.subr.bf16.mxu0 %v3772
        %4782 = vmatpush2.bf16.msra.mxu0 %v3771
        %4783 = vmatprep.subr.bf16.mxu0 %v3768
        %4784 = vmatpush2.bf16.msra.mxu0 %v3767
        %4785 = vmatprep.subr.bf16.mxu0 %v3764
        %4786 = vmatpush2.bf16.msra.mxu0 %v3763
        %4787 = vmatprep.mubr.bf16.mxu0 %v1646
        %4788 = vmatmul.mubr.bf16.gmra.mxu0 %v1645
        %v4789 = vpop.f32.mrf.mxu0
        %v4790 = vadd.f32 %v2178, %v4789
        %v4791 = vpop.f32.mrf.mxu0
        %v4792 = vadd.f32 %v2182, %v4791
        %v4793 = vpop.f32.mrf.mxu0
        %v4794 = vpop.f32.mrf.mxu0
        %4795 = vdwg.mxu0
        %4796 = vmatprep.subr.bf16.mxu0 %v3824
        %4797 = vmatpush1.bf16.msra.mxu0 %v3823
        %4798 = vmatprep.subr.bf16.mxu0 %v3820
        %4799 = vmatpush1.bf16.msra.mxu0 %v3819
        %4800 = vmatprep.subr.bf16.mxu0 %v3816
        %4801 = vmatpush1.bf16.msra.mxu0 %v3815
        %4802 = vmatprep.subr.bf16.mxu0 %v3812
        %4803 = vmatpush1.bf16.msra.mxu0 %v3811
        %4804 = vmatprep.subr.bf16.mxu0 %v3808
        %4805 = vmatpush1.bf16.msra.mxu0 %v3807
        %4806 = vmatprep.subr.bf16.mxu0 %v3804
        %4807 = vmatpush1.bf16.msra.mxu0 %v3803
        %4808 = vmatprep.subr.bf16.mxu0 %v3800
        %4809 = vmatpush1.bf16.msra.mxu0 %v3799
        %4810 = vmatprep.subr.bf16.mxu0 %v3796
        %4811 = vmatpush1.bf16.msra.mxu0 %v3795
        %4812 = vmatprep.subr.bf16.mxu0 %v3856
        %4813 = vmatpush2.bf16.msra.mxu0 %v3855
        %4814 = vmatprep.subr.bf16.mxu0 %v3852
        %4815 = vmatpush2.bf16.msra.mxu0 %v3851
        %4816 = vmatprep.subr.bf16.mxu0 %v3848
        %4817 = vmatpush2.bf16.msra.mxu0 %v3847
        %4818 = vmatprep.subr.bf16.mxu0 %v3844
        %4819 = vmatpush2.bf16.msra.mxu0 %v3843
        %4820 = vmatprep.subr.bf16.mxu0 %v3840
        %4821 = vmatpush2.bf16.msra.mxu0 %v3839
        %4822 = vmatprep.subr.bf16.mxu0 %v3836
        %4823 = vmatpush2.bf16.msra.mxu0 %v3835
        %4824 = vmatprep.subr.bf16.mxu0 %v3832
        %4825 = vmatpush2.bf16.msra.mxu0 %v3831
        %4826 = vmatprep.subr.bf16.mxu0 %v3828
        %4827 = vmatpush2.bf16.msra.mxu0 %v3827
        %4828 = vmatprep.mubr.bf16.mxu0 %v1648
        %4829 = vmatmul.mubr.bf16.gmra.mxu0 %v1647
        %v4830 = vpop.f32.mrf.mxu0
        %v4831 = vadd.f32 %v4790, %v4830
        %v4832 = vpop.f32.mrf.mxu0
        %v4833 = vadd.f32 %v4792, %v4832
        %v4834 = vpop.f32.mrf.mxu0
        %v4835 = vpop.f32.mrf.mxu0
        %4836 = vdwg.mxu0
        %4837 = vmatprep.subr.bf16.mxu0 %v3888
        %4838 = vmatpush1.bf16.msra.mxu0 %v3887
        %4839 = vmatprep.subr.bf16.mxu0 %v3884
        %4840 = vmatpush1.bf16.msra.mxu0 %v3883
        %4841 = vmatprep.subr.bf16.mxu0 %v3880
        %4842 = vmatpush1.bf16.msra.mxu0 %v3879
        %4843 = vmatprep.subr.bf16.mxu0 %v3876
        %4844 = vmatpush1.bf16.msra.mxu0 %v3875
        %4845 = vmatprep.subr.bf16.mxu0 %v3872
        %4846 = vmatpush1.bf16.msra.mxu0 %v3871
        %4847 = vmatprep.subr.bf16.mxu0 %v3868
        %4848 = vmatpush1.bf16.msra.mxu0 %v3867
        %4849 = vmatprep.subr.bf16.mxu0 %v3864
        %4850 = vmatpush1.bf16.msra.mxu0 %v3863
        %4851 = vmatprep.subr.bf16.mxu0 %v3860
        %4852 = vmatpush1.bf16.msra.mxu0 %v3859
        %4853 = vmatprep.subr.bf16.mxu0 %v3920
        %4854 = vmatpush2.bf16.msra.mxu0 %v3919
        %4855 = vmatprep.subr.bf16.mxu0 %v3916
        %4856 = vmatpush2.bf16.msra.mxu0 %v3915
        %4857 = vmatprep.subr.bf16.mxu0 %v3912
        %4858 = vmatpush2.bf16.msra.mxu0 %v3911
        %4859 = vmatprep.subr.bf16.mxu0 %v3908
        %4860 = vmatpush2.bf16.msra.mxu0 %v3907
        %4861 = vmatprep.subr.bf16.mxu0 %v3904
        %4862 = vmatpush2.bf16.msra.mxu0 %v3903
        %4863 = vmatprep.subr.bf16.mxu0 %v3900
        %4864 = vmatpush2.bf16.msra.mxu0 %v3899
        %4865 = vmatprep.subr.bf16.mxu0 %v3896
        %4866 = vmatpush2.bf16.msra.mxu0 %v3895
        %4867 = vmatprep.subr.bf16.mxu0 %v3892
        %4868 = vmatpush2.bf16.msra.mxu0 %v3891
        %4869 = vmatprep.mubr.bf16.mxu0 %v1650
        %4870 = vmatmul.mubr.bf16.gmra.mxu0 %v1649
        %v4871 = vpop.f32.mrf.mxu0
        %v4872 = vadd.f32 %v4831, %v4871
        %v4873 = vpop.f32.mrf.mxu0
        %v4874 = vadd.f32 %v4833, %v4873
        %v4875 = vpop.f32.mrf.mxu0
        %v4876 = vpop.f32.mrf.mxu0
        %4877 = vdwg.mxu0
        %4878 = vmatprep.subr.bf16.mxu0 %v3952
        %4879 = vmatpush1.bf16.msra.mxu0 %v3951
        %4880 = vmatprep.subr.bf16.mxu0 %v3948
        %4881 = vmatpush1.bf16.msra.mxu0 %v3947
        %4882 = vmatprep.subr.bf16.mxu0 %v3944
        %4883 = vmatpush1.bf16.msra.mxu0 %v3943
        %4884 = vmatprep.subr.bf16.mxu0 %v3940
        %4885 = vmatpush1.bf16.msra.mxu0 %v3939
        %4886 = vmatprep.subr.bf16.mxu0 %v3936
        %4887 = vmatpush1.bf16.msra.mxu0 %v3935
        %4888 = vmatprep.subr.bf16.mxu0 %v3932
        %4889 = vmatpush1.bf16.msra.mxu0 %v3931
        %4890 = vmatprep.subr.bf16.mxu0 %v3928
        %4891 = vmatpush1.bf16.msra.mxu0 %v3927
        %4892 = vmatprep.subr.bf16.mxu0 %v3924
        %4893 = vmatpush1.bf16.msra.mxu0 %v3923
        %4894 = vmatprep.subr.bf16.mxu0 %v3984
        %4895 = vmatpush2.bf16.msra.mxu0 %v3983
        %4896 = vmatprep.subr.bf16.mxu0 %v3980
        %4897 = vmatpush2.bf16.msra.mxu0 %v3979
        %4898 = vmatprep.subr.bf16.mxu0 %v3976
        %4899 = vmatpush2.bf16.msra.mxu0 %v3975
        %4900 = vmatprep.subr.bf16.mxu0 %v3972
        %4901 = vmatpush2.bf16.msra.mxu0 %v3971
        %4902 = vmatprep.subr.bf16.mxu0 %v3968
        %4903 = vmatpush2.bf16.msra.mxu0 %v3967
        %4904 = vmatprep.subr.bf16.mxu0 %v3964
        %4905 = vmatpush2.bf16.msra.mxu0 %v3963
        %4906 = vmatprep.subr.bf16.mxu0 %v3960
        %4907 = vmatpush2.bf16.msra.mxu0 %v3959
        %4908 = vmatprep.subr.bf16.mxu0 %v3956
        %4909 = vmatpush2.bf16.msra.mxu0 %v3955
        %4910 = vmatprep.mubr.bf16.mxu0 %v1652
        %4911 = vmatmul.mubr.bf16.gmra.mxu0 %v1651
        %v4912 = vpop.f32.mrf.mxu0
        %v4913 = vadd.f32 %v4872, %v4912
        %v4914 = vpop.f32.mrf.mxu0
        %v4915 = vadd.f32 %v4874, %v4914
        %v4916 = vpop.f32.mrf.mxu0
        %v4917 = vpop.f32.mrf.mxu0
        %4918 = vdwg.mxu0
        %4919 = vmatprep.subr.bf16.mxu0 %v4016
        %4920 = vmatpush1.bf16.msra.mxu0 %v4015
        %4921 = vmatprep.subr.bf16.mxu0 %v4012
        %4922 = vmatpush1.bf16.msra.mxu0 %v4011
        %4923 = vmatprep.subr.bf16.mxu0 %v4008
        %4924 = vmatpush1.bf16.msra.mxu0 %v4007
        %4925 = vmatprep.subr.bf16.mxu0 %v4004
        %4926 = vmatpush1.bf16.msra.mxu0 %v4003
        %4927 = vmatprep.subr.bf16.mxu0 %v4000
        %4928 = vmatpush1.bf16.msra.mxu0 %v3999
        %4929 = vmatprep.subr.bf16.mxu0 %v3996
        %4930 = vmatpush1.bf16.msra.mxu0 %v3995
        %4931 = vmatprep.subr.bf16.mxu0 %v3992
        %4932 = vmatpush1.bf16.msra.mxu0 %v3991
        %4933 = vmatprep.subr.bf16.mxu0 %v3988
        %4934 = vmatpush1.bf16.msra.mxu0 %v3987
        %4935 = vmatprep.subr.bf16.mxu0 %v4048
        %4936 = vmatpush2.bf16.msra.mxu0 %v4047
        %4937 = vmatprep.subr.bf16.mxu0 %v4044
        %4938 = vmatpush2.bf16.msra.mxu0 %v4043
        %4939 = vmatprep.subr.bf16.mxu0 %v4040
        %4940 = vmatpush2.bf16.msra.mxu0 %v4039
        %4941 = vmatprep.subr.bf16.mxu0 %v4036
        %4942 = vmatpush2.bf16.msra.mxu0 %v4035
        %4943 = vmatprep.subr.bf16.mxu0 %v4032
        %4944 = vmatpush2.bf16.msra.mxu0 %v4031
        %4945 = vmatprep.subr.bf16.mxu0 %v4028
        %4946 = vmatpush2.bf16.msra.mxu0 %v4027
        %4947 = vmatprep.subr.bf16.mxu0 %v4024
        %4948 = vmatpush2.bf16.msra.mxu0 %v4023
        %4949 = vmatprep.subr.bf16.mxu0 %v4020
        %4950 = vmatpush2.bf16.msra.mxu0 %v4019
        %4951 = vmatprep.mubr.bf16.mxu0 %v1654
        %4952 = vmatmul.mubr.bf16.gmra.mxu0 %v1653
        %v4953 = vpop.f32.mrf.mxu0
        %v4954 = vadd.f32 %v4913, %v4953
        %v4955 = vpop.f32.mrf.mxu0
        %v4956 = vadd.f32 %v4915, %v4955
        %v4957 = vpop.f32.mrf.mxu0
        %v4958 = vpop.f32.mrf.mxu0
        %4959 = vdwg.mxu0
        %4960 = vmatprep.subr.bf16.mxu0 %v4080
        %4961 = vmatpush1.bf16.msra.mxu0 %v4079
        %4962 = vmatprep.subr.bf16.mxu0 %v4076
        %4963 = vmatpush1.bf16.msra.mxu0 %v4075
        %4964 = vmatprep.subr.bf16.mxu0 %v4072
        %4965 = vmatpush1.bf16.msra.mxu0 %v4071
        %4966 = vmatprep.subr.bf16.mxu0 %v4068
        %4967 = vmatpush1.bf16.msra.mxu0 %v4067
        %4968 = vmatprep.subr.bf16.mxu0 %v4064
        %4969 = vmatpush1.bf16.msra.mxu0 %v4063
        %4970 = vmatprep.subr.bf16.mxu0 %v4060
        %4971 = vmatpush1.bf16.msra.mxu0 %v4059
        %4972 = vmatprep.subr.bf16.mxu0 %v4056
        %4973 = vmatpush1.bf16.msra.mxu0 %v4055
        %4974 = vmatprep.subr.bf16.mxu0 %v4052
        %4975 = vmatpush1.bf16.msra.mxu0 %v4051
        %4976 = vmatprep.subr.bf16.mxu0 %v4112
        %4977 = vmatpush2.bf16.msra.mxu0 %v4111
        %4978 = vmatprep.subr.bf16.mxu0 %v4108
        %4979 = vmatpush2.bf16.msra.mxu0 %v4107
        %4980 = vmatprep.subr.bf16.mxu0 %v4104
        %4981 = vmatpush2.bf16.msra.mxu0 %v4103
        %4982 = vmatprep.subr.bf16.mxu0 %v4100
        %4983 = vmatpush2.bf16.msra.mxu0 %v4099
        %4984 = vmatprep.subr.bf16.mxu0 %v4096
        %4985 = vmatpush2.bf16.msra.mxu0 %v4095
        %4986 = vmatprep.subr.bf16.mxu0 %v4092
        %4987 = vmatpush2.bf16.msra.mxu0 %v4091
        %4988 = vmatprep.subr.bf16.mxu0 %v4088
        %4989 = vmatpush2.bf16.msra.mxu0 %v4087
        %4990 = vmatprep.subr.bf16.mxu0 %v4084
        %4991 = vmatpush2.bf16.msra.mxu0 %v4083
        %4992 = vmatprep.mubr.bf16.mxu0 %v1656
        %4993 = vmatmul.mubr.bf16.gmra.mxu0 %v1655
        %v4994 = vpop.f32.mrf.mxu0
        %v4995 = vadd.f32 %v4954, %v4994
        %v4996 = vpop.f32.mrf.mxu0
        %v4997 = vadd.f32 %v4956, %v4996
        %v4998 = vpop.f32.mrf.mxu0
        %v4999 = vpop.f32.mrf.mxu0
        %5000 = vdwg.mxu0
        %5001 = vmatprep.subr.bf16.mxu0 %v4144
        %5002 = vmatpush1.bf16.msra.mxu0 %v4143
        %5003 = vmatprep.subr.bf16.mxu0 %v4140
        %5004 = vmatpush1.bf16.msra.mxu0 %v4139
        %5005 = vmatprep.subr.bf16.mxu0 %v4136
        %5006 = vmatpush1.bf16.msra.mxu0 %v4135
        %5007 = vmatprep.subr.bf16.mxu0 %v4132
        %5008 = vmatpush1.bf16.msra.mxu0 %v4131
        %5009 = vmatprep.subr.bf16.mxu0 %v4128
        %5010 = vmatpush1.bf16.msra.mxu0 %v4127
        %5011 = vmatprep.subr.bf16.mxu0 %v4124
        %5012 = vmatpush1.bf16.msra.mxu0 %v4123
        %5013 = vmatprep.subr.bf16.mxu0 %v4120
        %5014 = vmatpush1.bf16.msra.mxu0 %v4119
        %5015 = vmatprep.subr.bf16.mxu0 %v4116
        %5016 = vmatpush1.bf16.msra.mxu0 %v4115
        %5017 = vmatprep.subr.bf16.mxu0 %v4176
        %5018 = vmatpush2.bf16.msra.mxu0 %v4175
        %5019 = vmatprep.subr.bf16.mxu0 %v4172
        %5020 = vmatpush2.bf16.msra.mxu0 %v4171
        %5021 = vmatprep.subr.bf16.mxu0 %v4168
        %5022 = vmatpush2.bf16.msra.mxu0 %v4167
        %5023 = vmatprep.subr.bf16.mxu0 %v4164
        %5024 = vmatpush2.bf16.msra.mxu0 %v4163
        %5025 = vmatprep.subr.bf16.mxu0 %v4160
        %5026 = vmatpush2.bf16.msra.mxu0 %v4159
        %5027 = vmatprep.subr.bf16.mxu0 %v4156
        %5028 = vmatpush2.bf16.msra.mxu0 %v4155
        %5029 = vmatprep.subr.bf16.mxu0 %v4152
        %5030 = vmatpush2.bf16.msra.mxu0 %v4151
        %5031 = vmatprep.subr.bf16.mxu0 %v4148
        %5032 = vmatpush2.bf16.msra.mxu0 %v4147
        %5033 = vmatprep.mubr.bf16.mxu0 %v1658
        %5034 = vmatmul.mubr.bf16.gmra.mxu0 %v1657
        %v5035 = vpop.f32.mrf.mxu0
        %v5036 = vadd.f32 %v4995, %v5035
        %v5037 = vpop.f32.mrf.mxu0
        %v5038 = vadd.f32 %v4997, %v5037
        %v5039 = vpop.f32.mrf.mxu0
        %v5040 = vpop.f32.mrf.mxu0
        %5041 = vdwg.mxu0
        %5042 = vmatprep.subr.bf16.mxu0 %v4208
        %5043 = vmatpush1.bf16.msra.mxu0 %v4207
        %5044 = vmatprep.subr.bf16.mxu0 %v4204
        %5045 = vmatpush1.bf16.msra.mxu0 %v4203
        %5046 = vmatprep.subr.bf16.mxu0 %v4200
        %5047 = vmatpush1.bf16.msra.mxu0 %v4199
        %5048 = vmatprep.subr.bf16.mxu0 %v4196
        %5049 = vmatpush1.bf16.msra.mxu0 %v4195
        %5050 = vmatprep.subr.bf16.mxu0 %v4192
        %5051 = vmatpush1.bf16.msra.mxu0 %v4191
        %5052 = vmatprep.subr.bf16.mxu0 %v4188
        %5053 = vmatpush1.bf16.msra.mxu0 %v4187
        %5054 = vmatprep.subr.bf16.mxu0 %v4184
        %5055 = vmatpush1.bf16.msra.mxu0 %v4183
        %5056 = vmatprep.subr.bf16.mxu0 %v4180
        %5057 = vmatpush1.bf16.msra.mxu0 %v4179
        %5058 = vmatprep.subr.bf16.mxu0 %v4240
        %5059 = vmatpush2.bf16.msra.mxu0 %v4239
        %5060 = vmatprep.subr.bf16.mxu0 %v4236
        %5061 = vmatpush2.bf16.msra.mxu0 %v4235
        %5062 = vmatprep.subr.bf16.mxu0 %v4232
        %5063 = vmatpush2.bf16.msra.mxu0 %v4231
        %5064 = vmatprep.subr.bf16.mxu0 %v4228
        %5065 = vmatpush2.bf16.msra.mxu0 %v4227
        %5066 = vmatprep.subr.bf16.mxu0 %v4224
        %5067 = vmatpush2.bf16.msra.mxu0 %v4223
        %5068 = vmatprep.subr.bf16.mxu0 %v4220
        %5069 = vmatpush2.bf16.msra.mxu0 %v4219
        %5070 = vmatprep.subr.bf16.mxu0 %v4216
        %5071 = vmatpush2.bf16.msra.mxu0 %v4215
        %5072 = vmatprep.subr.bf16.mxu0 %v4212
        %5073 = vmatpush2.bf16.msra.mxu0 %v4211
        %5074 = vmatprep.mubr.bf16.mxu0 %v1660
        %5075 = vmatmul.mubr.bf16.gmra.mxu0 %v1659
        %v5076 = vpop.f32.mrf.mxu0
        %v5077 = vadd.f32 %v5036, %v5076
        %v5078 = vpop.f32.mrf.mxu0
        %v5079 = vadd.f32 %v5038, %v5078
        %v5080 = vpop.f32.mrf.mxu0
        %v5081 = vpop.f32.mrf.mxu0
        %5082 = vdwg.mxu0
        %5083 = vmatprep.subr.bf16.mxu0 %v3762
        %5084 = vmatpush1.bf16.msra.mxu0 %v3761
        %5085 = vmatprep.subr.bf16.mxu0 %v3758
        %5086 = vmatpush1.bf16.msra.mxu0 %v3757
        %5087 = vmatprep.subr.bf16.mxu0 %v3754
        %5088 = vmatpush1.bf16.msra.mxu0 %v3753
        %5089 = vmatprep.subr.bf16.mxu0 %v3750
        %5090 = vmatpush1.bf16.msra.mxu0 %v3749
        %5091 = vmatprep.subr.bf16.mxu0 %v3746
        %5092 = vmatpush1.bf16.msra.mxu0 %v3745
        %5093 = vmatprep.subr.bf16.mxu0 %v3742
        %5094 = vmatpush1.bf16.msra.mxu0 %v3741
        %5095 = vmatprep.subr.bf16.mxu0 %v3738
        %5096 = vmatpush1.bf16.msra.mxu0 %v3737
        %5097 = vmatprep.subr.bf16.mxu0 %v3734
        %5098 = vmatpush1.bf16.msra.mxu0 %v3733
        %5099 = vmatprep.subr.bf16.mxu0 %v3794
        %5100 = vmatpush2.bf16.msra.mxu0 %v3793
        %5101 = vmatprep.subr.bf16.mxu0 %v3790
        %5102 = vmatpush2.bf16.msra.mxu0 %v3789
        %5103 = vmatprep.subr.bf16.mxu0 %v3786
        %5104 = vmatpush2.bf16.msra.mxu0 %v3785
        %5105 = vmatprep.subr.bf16.mxu0 %v3782
        %5106 = vmatpush2.bf16.msra.mxu0 %v3781
        %5107 = vmatprep.subr.bf16.mxu0 %v3778
        %5108 = vmatpush2.bf16.msra.mxu0 %v3777
        %5109 = vmatprep.subr.bf16.mxu0 %v3774
        %5110 = vmatpush2.bf16.msra.mxu0 %v3773
        %5111 = vmatprep.subr.bf16.mxu0 %v3770
        %5112 = vmatpush2.bf16.msra.mxu0 %v3769
        %5113 = vmatprep.subr.bf16.mxu0 %v3766
        %5114 = vmatpush2.bf16.msra.mxu0 %v3765
        %5115 = vmatprep.mubr.bf16.mxu0 %v1646
        %5116 = vmatmul.mubr.bf16.gmra.mxu0 %v1645
        %v5117 = vpop.f32.mrf.mxu0
        %v5118 = vadd.f32 %v2186, %v5117
        %v5119 = vpop.f32.mrf.mxu0
        %v5120 = vadd.f32 %v2190, %v5119
        %v5121 = vpop.f32.mrf.mxu0
        %v5122 = vpop.f32.mrf.mxu0
        %5123 = vdwg.mxu0
        %5124 = vmatprep.subr.bf16.mxu0 %v3826
        %5125 = vmatpush1.bf16.msra.mxu0 %v3825
        %5126 = vmatprep.subr.bf16.mxu0 %v3822
        %5127 = vmatpush1.bf16.msra.mxu0 %v3821
        %5128 = vmatprep.subr.bf16.mxu0 %v3818
        %5129 = vmatpush1.bf16.msra.mxu0 %v3817
        %5130 = vmatprep.subr.bf16.mxu0 %v3814
        %5131 = vmatpush1.bf16.msra.mxu0 %v3813
        %5132 = vmatprep.subr.bf16.mxu0 %v3810
        %5133 = vmatpush1.bf16.msra.mxu0 %v3809
        %5134 = vmatprep.subr.bf16.mxu0 %v3806
        %5135 = vmatpush1.bf16.msra.mxu0 %v3805
        %5136 = vmatprep.subr.bf16.mxu0 %v3802
        %5137 = vmatpush1.bf16.msra.mxu0 %v3801
        %5138 = vmatprep.subr.bf16.mxu0 %v3798
        %5139 = vmatpush1.bf16.msra.mxu0 %v3797
        %5140 = vmatprep.subr.bf16.mxu0 %v3858
        %5141 = vmatpush2.bf16.msra.mxu0 %v3857
        %5142 = vmatprep.subr.bf16.mxu0 %v3854
        %5143 = vmatpush2.bf16.msra.mxu0 %v3853
        %5144 = vmatprep.subr.bf16.mxu0 %v3850
        %5145 = vmatpush2.bf16.msra.mxu0 %v3849
        %5146 = vmatprep.subr.bf16.mxu0 %v3846
        %5147 = vmatpush2.bf16.msra.mxu0 %v3845
        %5148 = vmatprep.subr.bf16.mxu0 %v3842
        %5149 = vmatpush2.bf16.msra.mxu0 %v3841
        %5150 = vmatprep.subr.bf16.mxu0 %v3838
        %5151 = vmatpush2.bf16.msra.mxu0 %v3837
        %5152 = vmatprep.subr.bf16.mxu0 %v3834
        %5153 = vmatpush2.bf16.msra.mxu0 %v3833
        %5154 = vmatprep.subr.bf16.mxu0 %v3830
        %5155 = vmatpush2.bf16.msra.mxu0 %v3829
        %5156 = vmatprep.mubr.bf16.mxu0 %v1648
        %5157 = vmatmul.mubr.bf16.gmra.mxu0 %v1647
        %v5158 = vpop.f32.mrf.mxu0
        %v5159 = vadd.f32 %v5118, %v5158
        %v5160 = vpop.f32.mrf.mxu0
        %v5161 = vadd.f32 %v5120, %v5160
        %v5162 = vpop.f32.mrf.mxu0
        %v5163 = vpop.f32.mrf.mxu0
        %5164 = vdwg.mxu0
        %5165 = vmatprep.subr.bf16.mxu0 %v3890
        %5166 = vmatpush1.bf16.msra.mxu0 %v3889
        %5167 = vmatprep.subr.bf16.mxu0 %v3886
        %5168 = vmatpush1.bf16.msra.mxu0 %v3885
        %5169 = vmatprep.subr.bf16.mxu0 %v3882
        %5170 = vmatpush1.bf16.msra.mxu0 %v3881
        %5171 = vmatprep.subr.bf16.mxu0 %v3878
        %5172 = vmatpush1.bf16.msra.mxu0 %v3877
        %5173 = vmatprep.subr.bf16.mxu0 %v3874
        %5174 = vmatpush1.bf16.msra.mxu0 %v3873
        %5175 = vmatprep.subr.bf16.mxu0 %v3870
        %5176 = vmatpush1.bf16.msra.mxu0 %v3869
        %5177 = vmatprep.subr.bf16.mxu0 %v3866
        %5178 = vmatpush1.bf16.msra.mxu0 %v3865
        %5179 = vmatprep.subr.bf16.mxu0 %v3862
        %5180 = vmatpush1.bf16.msra.mxu0 %v3861
        %5181 = vmatprep.subr.bf16.mxu0 %v3922
        %5182 = vmatpush2.bf16.msra.mxu0 %v3921
        %5183 = vmatprep.subr.bf16.mxu0 %v3918
        %5184 = vmatpush2.bf16.msra.mxu0 %v3917
        %5185 = vmatprep.subr.bf16.mxu0 %v3914
        %5186 = vmatpush2.bf16.msra.mxu0 %v3913
        %5187 = vmatprep.subr.bf16.mxu0 %v3910
        %5188 = vmatpush2.bf16.msra.mxu0 %v3909
        %5189 = vmatprep.subr.bf16.mxu0 %v3906
        %5190 = vmatpush2.bf16.msra.mxu0 %v3905
        %5191 = vmatprep.subr.bf16.mxu0 %v3902
        %5192 = vmatpush2.bf16.msra.mxu0 %v3901
        %5193 = vmatprep.subr.bf16.mxu0 %v3898
        %5194 = vmatpush2.bf16.msra.mxu0 %v3897
        %5195 = vmatprep.subr.bf16.mxu0 %v3894
        %5196 = vmatpush2.bf16.msra.mxu0 %v3893
        %5197 = vmatprep.mubr.bf16.mxu0 %v1650
        %5198 = vmatmul.mubr.bf16.gmra.mxu0 %v1649
        %v5199 = vpop.f32.mrf.mxu0
        %v5200 = vadd.f32 %v5159, %v5199
        %v5201 = vpop.f32.mrf.mxu0
        %v5202 = vadd.f32 %v5161, %v5201
        %v5203 = vpop.f32.mrf.mxu0
        %v5204 = vpop.f32.mrf.mxu0
        %5205 = vdwg.mxu0
        %5206 = vmatprep.subr.bf16.mxu0 %v3954
        %5207 = vmatpush1.bf16.msra.mxu0 %v3953
        %5208 = vmatprep.subr.bf16.mxu0 %v3950
        %5209 = vmatpush1.bf16.msra.mxu0 %v3949
        %5210 = vmatprep.subr.bf16.mxu0 %v3946
        %5211 = vmatpush1.bf16.msra.mxu0 %v3945
        %5212 = vmatprep.subr.bf16.mxu0 %v3942
        %5213 = vmatpush1.bf16.msra.mxu0 %v3941
        %5214 = vmatprep.subr.bf16.mxu0 %v3938
        %5215 = vmatpush1.bf16.msra.mxu0 %v3937
        %5216 = vmatprep.subr.bf16.mxu0 %v3934
        %5217 = vmatpush1.bf16.msra.mxu0 %v3933
        %5218 = vmatprep.subr.bf16.mxu0 %v3930
        %5219 = vmatpush1.bf16.msra.mxu0 %v3929
        %5220 = vmatprep.subr.bf16.mxu0 %v3926
        %5221 = vmatpush1.bf16.msra.mxu0 %v3925
        %5222 = vmatprep.subr.bf16.mxu0 %v3986
        %5223 = vmatpush2.bf16.msra.mxu0 %v3985
        %5224 = vmatprep.subr.bf16.mxu0 %v3982
        %5225 = vmatpush2.bf16.msra.mxu0 %v3981
        %5226 = vmatprep.subr.bf16.mxu0 %v3978
        %5227 = vmatpush2.bf16.msra.mxu0 %v3977
        %5228 = vmatprep.subr.bf16.mxu0 %v3974
        %5229 = vmatpush2.bf16.msra.mxu0 %v3973
        %5230 = vmatprep.subr.bf16.mxu0 %v3970
        %5231 = vmatpush2.bf16.msra.mxu0 %v3969
        %5232 = vmatprep.subr.bf16.mxu0 %v3966
        %5233 = vmatpush2.bf16.msra.mxu0 %v3965
        %5234 = vmatprep.subr.bf16.mxu0 %v3962
        %5235 = vmatpush2.bf16.msra.mxu0 %v3961
        %5236 = vmatprep.subr.bf16.mxu0 %v3958
        %5237 = vmatpush2.bf16.msra.mxu0 %v3957
        %5238 = vmatprep.mubr.bf16.mxu0 %v1652
        %5239 = vmatmul.mubr.bf16.gmra.mxu0 %v1651
        %v5240 = vpop.f32.mrf.mxu0
        %v5241 = vadd.f32 %v5200, %v5240
        %v5242 = vpop.f32.mrf.mxu0
        %v5243 = vadd.f32 %v5202, %v5242
        %v5244 = vpop.f32.mrf.mxu0
        %v5245 = vpop.f32.mrf.mxu0
        %5246 = vdwg.mxu0
        %5247 = vmatprep.subr.bf16.mxu0 %v4018
        %5248 = vmatpush1.bf16.msra.mxu0 %v4017
        %5249 = vmatprep.subr.bf16.mxu0 %v4014
        %5250 = vmatpush1.bf16.msra.mxu0 %v4013
        %5251 = vmatprep.subr.bf16.mxu0 %v4010
        %5252 = vmatpush1.bf16.msra.mxu0 %v4009
        %5253 = vmatprep.subr.bf16.mxu0 %v4006
        %5254 = vmatpush1.bf16.msra.mxu0 %v4005
        %5255 = vmatprep.subr.bf16.mxu0 %v4002
        %5256 = vmatpush1.bf16.msra.mxu0 %v4001
        %5257 = vmatprep.subr.bf16.mxu0 %v3998
        %5258 = vmatpush1.bf16.msra.mxu0 %v3997
        %5259 = vmatprep.subr.bf16.mxu0 %v3994
        %5260 = vmatpush1.bf16.msra.mxu0 %v3993
        %5261 = vmatprep.subr.bf16.mxu0 %v3990
        %5262 = vmatpush1.bf16.msra.mxu0 %v3989
        %5263 = vmatprep.subr.bf16.mxu0 %v4050
        %5264 = vmatpush2.bf16.msra.mxu0 %v4049
        %5265 = vmatprep.subr.bf16.mxu0 %v4046
        %5266 = vmatpush2.bf16.msra.mxu0 %v4045
        %5267 = vmatprep.subr.bf16.mxu0 %v4042
        %5268 = vmatpush2.bf16.msra.mxu0 %v4041
        %5269 = vmatprep.subr.bf16.mxu0 %v4038
        %5270 = vmatpush2.bf16.msra.mxu0 %v4037
        %5271 = vmatprep.subr.bf16.mxu0 %v4034
        %5272 = vmatpush2.bf16.msra.mxu0 %v4033
        %5273 = vmatprep.subr.bf16.mxu0 %v4030
        %5274 = vmatpush2.bf16.msra.mxu0 %v4029
        %5275 = vmatprep.subr.bf16.mxu0 %v4026
        %5276 = vmatpush2.bf16.msra.mxu0 %v4025
        %5277 = vmatprep.subr.bf16.mxu0 %v4022
        %5278 = vmatpush2.bf16.msra.mxu0 %v4021
        %5279 = vmatprep.mubr.bf16.mxu0 %v1654
        %5280 = vmatmul.mubr.bf16.gmra.mxu0 %v1653
        %v5281 = vpop.f32.mrf.mxu0
        %v5282 = vadd.f32 %v5241, %v5281
        %v5283 = vpop.f32.mrf.mxu0
        %v5284 = vadd.f32 %v5243, %v5283
        %v5285 = vpop.f32.mrf.mxu0
        %v5286 = vpop.f32.mrf.mxu0
        %5287 = vdwg.mxu0
        %5288 = vmatprep.subr.bf16.mxu0 %v4082
        %5289 = vmatpush1.bf16.msra.mxu0 %v4081
        %5290 = vmatprep.subr.bf16.mxu0 %v4078
        %5291 = vmatpush1.bf16.msra.mxu0 %v4077
        %5292 = vmatprep.subr.bf16.mxu0 %v4074
        %5293 = vmatpush1.bf16.msra.mxu0 %v4073
        %5294 = vmatprep.subr.bf16.mxu0 %v4070
        %5295 = vmatpush1.bf16.msra.mxu0 %v4069
        %5296 = vmatprep.subr.bf16.mxu0 %v4066
        %5297 = vmatpush1.bf16.msra.mxu0 %v4065
        %5298 = vmatprep.subr.bf16.mxu0 %v4062
        %5299 = vmatpush1.bf16.msra.mxu0 %v4061
        %5300 = vmatprep.subr.bf16.mxu0 %v4058
        %5301 = vmatpush1.bf16.msra.mxu0 %v4057
        %5302 = vmatprep.subr.bf16.mxu0 %v4054
        %5303 = vmatpush1.bf16.msra.mxu0 %v4053
        %5304 = vmatprep.subr.bf16.mxu0 %v4114
        %5305 = vmatpush2.bf16.msra.mxu0 %v4113
        %5306 = vmatprep.subr.bf16.mxu0 %v4110
        %5307 = vmatpush2.bf16.msra.mxu0 %v4109
        %5308 = vmatprep.subr.bf16.mxu0 %v4106
        %5309 = vmatpush2.bf16.msra.mxu0 %v4105
        %5310 = vmatprep.subr.bf16.mxu0 %v4102
        %5311 = vmatpush2.bf16.msra.mxu0 %v4101
        %5312 = vmatprep.subr.bf16.mxu0 %v4098
        %5313 = vmatpush2.bf16.msra.mxu0 %v4097
        %5314 = vmatprep.subr.bf16.mxu0 %v4094
        %5315 = vmatpush2.bf16.msra.mxu0 %v4093
        %5316 = vmatprep.subr.bf16.mxu0 %v4090
        %5317 = vmatpush2.bf16.msra.mxu0 %v4089
        %5318 = vmatprep.subr.bf16.mxu0 %v4086
        %5319 = vmatpush2.bf16.msra.mxu0 %v4085
        %5320 = vmatprep.mubr.bf16.mxu0 %v1656
        %5321 = vmatmul.mubr.bf16.gmra.mxu0 %v1655
        %v5322 = vpop.f32.mrf.mxu0
        %v5323 = vadd.f32 %v5282, %v5322
        %v5324 = vpop.f32.mrf.mxu0
        %v5325 = vadd.f32 %v5284, %v5324
        %v5326 = vpop.f32.mrf.mxu0
        %v5327 = vpop.f32.mrf.mxu0
        %5328 = vdwg.mxu0
        %5329 = vmatprep.subr.bf16.mxu0 %v4146
        %5330 = vmatpush1.bf16.msra.mxu0 %v4145
        %5331 = vmatprep.subr.bf16.mxu0 %v4142
        %5332 = vmatpush1.bf16.msra.mxu0 %v4141
        %5333 = vmatprep.subr.bf16.mxu0 %v4138
        %5334 = vmatpush1.bf16.msra.mxu0 %v4137
        %5335 = vmatprep.subr.bf16.mxu0 %v4134
        %5336 = vmatpush1.bf16.msra.mxu0 %v4133
        %5337 = vmatprep.subr.bf16.mxu0 %v4130
        %5338 = vmatpush1.bf16.msra.mxu0 %v4129
        %5339 = vmatprep.subr.bf16.mxu0 %v4126
        %5340 = vmatpush1.bf16.msra.mxu0 %v4125
        %5341 = vmatprep.subr.bf16.mxu0 %v4122
        %5342 = vmatpush1.bf16.msra.mxu0 %v4121
        %5343 = vmatprep.subr.bf16.mxu0 %v4118
        %5344 = vmatpush1.bf16.msra.mxu0 %v4117
        %5345 = vmatprep.subr.bf16.mxu0 %v4178
        %5346 = vmatpush2.bf16.msra.mxu0 %v4177
        %5347 = vmatprep.subr.bf16.mxu0 %v4174
        %5348 = vmatpush2.bf16.msra.mxu0 %v4173
        %5349 = vmatprep.subr.bf16.mxu0 %v4170
        %5350 = vmatpush2.bf16.msra.mxu0 %v4169
        %5351 = vmatprep.subr.bf16.mxu0 %v4166
        %5352 = vmatpush2.bf16.msra.mxu0 %v4165
        %5353 = vmatprep.subr.bf16.mxu0 %v4162
        %5354 = vmatpush2.bf16.msra.mxu0 %v4161
        %5355 = vmatprep.subr.bf16.mxu0 %v4158
        %5356 = vmatpush2.bf16.msra.mxu0 %v4157
        %5357 = vmatprep.subr.bf16.mxu0 %v4154
        %5358 = vmatpush2.bf16.msra.mxu0 %v4153
        %5359 = vmatprep.subr.bf16.mxu0 %v4150
        %5360 = vmatpush2.bf16.msra.mxu0 %v4149
        %5361 = vmatprep.mubr.bf16.mxu0 %v1658
        %5362 = vmatmul.mubr.bf16.gmra.mxu0 %v1657
        %v5363 = vpop.f32.mrf.mxu0
        %v5364 = vadd.f32 %v5323, %v5363
        %v5365 = vpop.f32.mrf.mxu0
        %v5366 = vadd.f32 %v5325, %v5365
        %v5367 = vpop.f32.mrf.mxu0
        %v5368 = vpop.f32.mrf.mxu0
        %5369 = vdwg.mxu0
        %5370 = vmatprep.subr.bf16.mxu0 %v4210
        %5371 = vmatpush1.bf16.msra.mxu0 %v4209
        %5372 = vmatprep.subr.bf16.mxu0 %v4206
        %5373 = vmatpush1.bf16.msra.mxu0 %v4205
        %5374 = vmatprep.subr.bf16.mxu0 %v4202
        %5375 = vmatpush1.bf16.msra.mxu0 %v4201
        %5376 = vmatprep.subr.bf16.mxu0 %v4198
        %5377 = vmatpush1.bf16.msra.mxu0 %v4197
        %5378 = vmatprep.subr.bf16.mxu0 %v4194
        %5379 = vmatpush1.bf16.msra.mxu0 %v4193
        %5380 = vmatprep.subr.bf16.mxu0 %v4190
        %5381 = vmatpush1.bf16.msra.mxu0 %v4189
        %5382 = vmatprep.subr.bf16.mxu0 %v4186
        %5383 = vmatpush1.bf16.msra.mxu0 %v4185
        %5384 = vmatprep.subr.bf16.mxu0 %v4182
        %5385 = vmatpush1.bf16.msra.mxu0 %v4181
        %5386 = vmatprep.subr.bf16.mxu0 %v4242
        %5387 = vmatpush2.bf16.msra.mxu0 %v4241
        %5388 = vmatprep.subr.bf16.mxu0 %v4238
        %5389 = vmatpush2.bf16.msra.mxu0 %v4237
        %5390 = vmatprep.subr.bf16.mxu0 %v4234
        %5391 = vmatpush2.bf16.msra.mxu0 %v4233
        %5392 = vmatprep.subr.bf16.mxu0 %v4230
        %5393 = vmatpush2.bf16.msra.mxu0 %v4229
        %5394 = vmatprep.subr.bf16.mxu0 %v4226
        %5395 = vmatpush2.bf16.msra.mxu0 %v4225
        %5396 = vmatprep.subr.bf16.mxu0 %v4222
        %5397 = vmatpush2.bf16.msra.mxu0 %v4221
        %5398 = vmatprep.subr.bf16.mxu0 %v4218
        %5399 = vmatpush2.bf16.msra.mxu0 %v4217
        %5400 = vmatprep.subr.bf16.mxu0 %v4214
        %5401 = vmatpush2.bf16.msra.mxu0 %v4213
        %5402 = vmatprep.mubr.bf16.mxu0 %v1660
        %5403 = vmatmul.mubr.bf16.gmra.mxu0 %v1659
        %v5404 = vpop.f32.mrf.mxu0
        %v5405 = vadd.f32 %v5364, %v5404
        %v5406 = vpop.f32.mrf.mxu0
        %v5407 = vadd.f32 %v5366, %v5406
        %v5408 = vpop.f32.mrf.mxu0
        %v5409 = vpop.f32.mrf.mxu0
        %5410 = vdwg.mxu0
        %v5411 = vpack.c.bf16 %v5077, %v5077
        %v5412 = vpack.c.bf16 %v5079, %v5079
        %v5413 = vpack.c.bf16 %v5405, %v5405
        %v5414 = vpack.c.bf16 %v5407, %v5407
        %v5415 = vmax.bf16 %v5411, 0
        %v5416 = vmax.bf16 %v5412, 0
        %v5417 = vmax.bf16 %v5413, 0
        %v5418 = vmax.bf16 %v5414, 0
        %v5419 = vld [vmem:[#allocation11] sm:$0xf]
        %v5420 = vld [vmem:[#allocation11 + $0x4] sm:$0xf]
        %v5421 = vld [vmem:[#allocation11 + $0x8] sm:$0xf]
        %v5422 = vld [vmem:[#allocation11 + $0xc] sm:$0xf]
        %v5423 = vld [vmem:[#allocation11 + $0x10] sm:$0xf]
        %v5424 = vld [vmem:[#allocation11 + $0x14] sm:$0xf]
        %v5425 = vld [vmem:[#allocation11 + $0x18] sm:$0xf]
        %v5426 = vld [vmem:[#allocation11 + $0x1c] sm:$0xf]
        %v5427 = vld [vmem:[#allocation11 + $0x20] sm:$0xf]
        %v5428 = vld [vmem:[#allocation11 + $0x24] sm:$0xf]
        %v5429 = vld [vmem:[#allocation11 + $0x28] sm:$0xf]
        %v5430 = vld [vmem:[#allocation11 + $0x2c] sm:$0xf]
        %v5431 = vld [vmem:[#allocation11 + $0x30] sm:$0xf]
        %v5432 = vld [vmem:[#allocation11 + $0x34] sm:$0xf]
        %v5433 = vld [vmem:[#allocation11 + $0x38] sm:$0xf]
        %v5434 = vld [vmem:[#allocation11 + $0x3c] sm:$0xf]
        %v5435 = vld [vmem:[#allocation11 + $0x40] sm:$0xf]
        %v5436 = vld [vmem:[#allocation11 + $0x44] sm:$0xf]
        %v5437 = vld [vmem:[#allocation11 + $0x48] sm:$0xf]
        %v5438 = vld [vmem:[#allocation11 + $0x4c] sm:$0xf]
        %v5439 = vld [vmem:[#allocation11 + $0x50] sm:$0xf]
        %v5440 = vld [vmem:[#allocation11 + $0x54] sm:$0xf]
        %v5441 = vld [vmem:[#allocation11 + $0x58] sm:$0xf]
        %v5442 = vld [vmem:[#allocation11 + $0x5c] sm:$0xf]
        %v5443 = vld [vmem:[#allocation11 + $0x60] sm:$0xf]
        %v5444 = vld [vmem:[#allocation11 + $0x64] sm:$0xf]
        %v5445 = vld [vmem:[#allocation11 + $0x68] sm:$0xf]
        %v5446 = vld [vmem:[#allocation11 + $0x6c] sm:$0xf]
        %v5447 = vld [vmem:[#allocation11 + $0x70] sm:$0xf]
        %v5448 = vld [vmem:[#allocation11 + $0x74] sm:$0xf]
        %v5449 = vld [vmem:[#allocation11 + $0x78] sm:$0xf]
        %v5450 = vld [vmem:[#allocation11 + $0x7c] sm:$0xf]
        %v5451 = vld [vmem:[#allocation11 + $0x80] sm:$0xf]
        %v5452 = vld [vmem:[#allocation11 + $0x84] sm:$0xf]
        %v5453 = vld [vmem:[#allocation11 + $0x88] sm:$0xf]
        %v5454 = vld [vmem:[#allocation11 + $0x8c] sm:$0xf]
        %v5455 = vld [vmem:[#allocation11 + $0x90] sm:$0xf]
        %v5456 = vld [vmem:[#allocation11 + $0x94] sm:$0xf]
        %v5457 = vld [vmem:[#allocation11 + $0x98] sm:$0xf]
        %v5458 = vld [vmem:[#allocation11 + $0x9c] sm:$0xf]
        %v5459 = vld [vmem:[#allocation11 + $0xa0] sm:$0xf]
        %v5460 = vld [vmem:[#allocation11 + $0xa4] sm:$0xf]
        %v5461 = vld [vmem:[#allocation11 + $0xa8] sm:$0xf]
        %v5462 = vld [vmem:[#allocation11 + $0xac] sm:$0xf]
        %v5463 = vld [vmem:[#allocation11 + $0xb0] sm:$0xf]
        %v5464 = vld [vmem:[#allocation11 + $0xb4] sm:$0xf]
        %v5465 = vld [vmem:[#allocation11 + $0xb8] sm:$0xf]
        %v5466 = vld [vmem:[#allocation11 + $0xbc] sm:$0xf]
        %v5467 = vld [vmem:[#allocation11 + $0xc0] sm:$0xf]
        %v5468 = vld [vmem:[#allocation11 + $0xc4] sm:$0xf]
        %v5469 = vld [vmem:[#allocation11 + $0xc8] sm:$0xf]
        %v5470 = vld [vmem:[#allocation11 + $0xcc] sm:$0xf]
        %v5471 = vld [vmem:[#allocation11 + $0xd0] sm:$0xf]
        %v5472 = vld [vmem:[#allocation11 + $0xd4] sm:$0xf]
        %v5473 = vld [vmem:[#allocation11 + $0xd8] sm:$0xf]
        %v5474 = vld [vmem:[#allocation11 + $0xdc] sm:$0xf]
        %v5475 = vld [vmem:[#allocation11 + $0xe0] sm:$0xf]
        %v5476 = vld [vmem:[#allocation11 + $0xe4] sm:$0xf]
        %v5477 = vld [vmem:[#allocation11 + $0xe8] sm:$0xf]
        %v5478 = vld [vmem:[#allocation11 + $0xec] sm:$0xf]
        %v5479 = vld [vmem:[#allocation11 + $0xf0] sm:$0xf]
        %v5480 = vld [vmem:[#allocation11 + $0xf4] sm:$0xf]
        %v5481 = vld [vmem:[#allocation11 + $0xf8] sm:$0xf]
        %v5482 = vld [vmem:[#allocation11 + $0xfc] sm:$0xf]
        %v5483 = vld [vmem:[#allocation13] sm:$0x1]
        %v5485 = vlaneseq
        %v5486 = vshrl.u32 %v5485, 7
        %v5487 = vsub.s32 0, %v5486
        %v5488 = vrot.slane %v5483, %v5487
        %v5554 = vunpack.c.l.b16 %v5419
        %v5555 = vunpack.c.l.b16 %v5420
        %v5556 = vunpack.c.l.b16 %v5421
        %v5557 = vunpack.c.l.b16 %v5422
        %v5558 = vunpack.c.l.b16 %v5423
        %v5559 = vunpack.c.l.b16 %v5424
        %v5560 = vunpack.c.l.b16 %v5425
        %v5561 = vunpack.c.l.b16 %v5426
        %v5562 = vunpack.c.l.b16 %v5427
        %v5563 = vunpack.c.l.b16 %v5428
        %v5564 = vunpack.c.l.b16 %v5429
        %v5565 = vunpack.c.l.b16 %v5430
        %v5566 = vunpack.c.l.b16 %v5431
        %v5567 = vunpack.c.l.b16 %v5432
        %v5568 = vunpack.c.l.b16 %v5433
        %v5569 = vunpack.c.l.b16 %v5434
        %v5570 = vunpack.c.l.b16 %v5435
        %v5571 = vunpack.c.l.b16 %v5436
        %v5572 = vunpack.c.l.b16 %v5437
        %v5573 = vunpack.c.l.b16 %v5438
        %v5574 = vunpack.c.l.b16 %v5439
        %v5575 = vunpack.c.l.b16 %v5440
        %v5576 = vunpack.c.l.b16 %v5441
        %v5577 = vunpack.c.l.b16 %v5442
        %v5578 = vunpack.c.l.b16 %v5443
        %v5579 = vunpack.c.l.b16 %v5444
        %v5580 = vunpack.c.l.b16 %v5445
        %v5581 = vunpack.c.l.b16 %v5446
        %v5582 = vunpack.c.l.b16 %v5447
        %v5583 = vunpack.c.l.b16 %v5448
        %v5584 = vunpack.c.l.b16 %v5449
        %v5585 = vunpack.c.l.b16 %v5450
        %v5586 = vunpack.c.l.b16 %v5451
        %v5587 = vunpack.c.l.b16 %v5452
        %v5588 = vunpack.c.l.b16 %v5453
        %v5589 = vunpack.c.l.b16 %v5454
        %v5590 = vunpack.c.l.b16 %v5455
        %v5591 = vunpack.c.l.b16 %v5456
        %v5592 = vunpack.c.l.b16 %v5457
        %v5593 = vunpack.c.l.b16 %v5458
        %v5594 = vunpack.c.l.b16 %v5459
        %v5595 = vunpack.c.l.b16 %v5460
        %v5596 = vunpack.c.l.b16 %v5461
        %v5597 = vunpack.c.l.b16 %v5462
        %v5598 = vunpack.c.l.b16 %v5463
        %v5599 = vunpack.c.l.b16 %v5464
        %v5600 = vunpack.c.l.b16 %v5465
        %v5601 = vunpack.c.l.b16 %v5466
        %v5602 = vunpack.c.l.b16 %v5467
        %v5603 = vunpack.c.l.b16 %v5468
        %v5604 = vunpack.c.l.b16 %v5469
        %v5605 = vunpack.c.l.b16 %v5470
        %v5606 = vunpack.c.l.b16 %v5471
        %v5607 = vunpack.c.l.b16 %v5472
        %v5608 = vunpack.c.l.b16 %v5473
        %v5609 = vunpack.c.l.b16 %v5474
        %v5610 = vunpack.c.l.b16 %v5475
        %v5611 = vunpack.c.l.b16 %v5476
        %v5612 = vunpack.c.l.b16 %v5477
        %v5613 = vunpack.c.l.b16 %v5478
        %v5614 = vunpack.c.l.b16 %v5479
        %v5615 = vunpack.c.l.b16 %v5480
        %v5616 = vunpack.c.l.b16 %v5481
        %v5617 = vunpack.c.l.b16 %v5482
        %v5618 = vpack.c.b16 %v5555, %v5554
        %v5619 = vpack.c.b16 %v5557, %v5556
        %v5620 = vpack.c.b16 %v5559, %v5558
        %v5621 = vpack.c.b16 %v5561, %v5560
        %v5622 = vpack.c.b16 %v5563, %v5562
        %v5623 = vpack.c.b16 %v5565, %v5564
        %v5624 = vpack.c.b16 %v5567, %v5566
        %v5625 = vpack.c.b16 %v5569, %v5568
        %v5626 = vpack.c.b16 %v5571, %v5570
        %v5627 = vpack.c.b16 %v5573, %v5572
        %v5628 = vpack.c.b16 %v5575, %v5574
        %v5629 = vpack.c.b16 %v5577, %v5576
        %v5630 = vpack.c.b16 %v5579, %v5578
        %v5631 = vpack.c.b16 %v5581, %v5580
        %v5632 = vpack.c.b16 %v5583, %v5582
        %v5633 = vpack.c.b16 %v5585, %v5584
        %v5634 = vpack.c.b16 %v5587, %v5586
        %v5635 = vpack.c.b16 %v5589, %v5588
        %v5636 = vpack.c.b16 %v5591, %v5590
        %v5637 = vpack.c.b16 %v5593, %v5592
        %v5638 = vpack.c.b16 %v5595, %v5594
        %v5639 = vpack.c.b16 %v5597, %v5596
        %v5640 = vpack.c.b16 %v5599, %v5598
        %v5641 = vpack.c.b16 %v5601, %v5600
        %v5642 = vpack.c.b16 %v5603, %v5602
        %v5643 = vpack.c.b16 %v5605, %v5604
        %v5644 = vpack.c.b16 %v5607, %v5606
        %v5645 = vpack.c.b16 %v5609, %v5608
        %v5646 = vpack.c.b16 %v5611, %v5610
        %v5647 = vpack.c.b16 %v5613, %v5612
        %v5648 = vpack.c.b16 %v5615, %v5614
        %v5649 = vpack.c.b16 %v5617, %v5616
        %5682 = vmatprep.subr.bf16.mxu0 0
        %5683 = vmatpush1.bf16.msra.mxu0 %v5625
        %5684 = vmatprep.subr.bf16.mxu0 0
        %5685 = vmatpush1.bf16.msra.mxu0 %v5624
        %5686 = vmatprep.subr.bf16.mxu0 0
        %5687 = vmatpush1.bf16.msra.mxu0 %v5623
        %5688 = vmatprep.subr.bf16.mxu0 0
        %5689 = vmatpush1.bf16.msra.mxu0 %v5622
        %5690 = vmatprep.subr.bf16.mxu0 0
        %5691 = vmatpush1.bf16.msra.mxu0 %v5621
        %5692 = vmatprep.subr.bf16.mxu0 0
        %5693 = vmatpush1.bf16.msra.mxu0 %v5620
        %5694 = vmatprep.subr.bf16.mxu0 0
        %5695 = vmatpush1.bf16.msra.mxu0 %v5619
        %5696 = vmatprep.subr.bf16.mxu0 0
        %5697 = vmatpush1.bf16.msra.mxu0 %v5618
        %5698 = vmatprep.subr.bf16.mxu0 0
        %5699 = vmatpush2.bf16.msra.mxu0 %v5633
        %5700 = vmatprep.subr.bf16.mxu0 0
        %5701 = vmatpush2.bf16.msra.mxu0 %v5632
        %5702 = vmatprep.subr.bf16.mxu0 0
        %5703 = vmatpush2.bf16.msra.mxu0 %v5631
        %5704 = vmatprep.subr.bf16.mxu0 0
        %5705 = vmatpush2.bf16.msra.mxu0 %v5630
        %5706 = vmatprep.subr.bf16.mxu0 0
        %5707 = vmatpush2.bf16.msra.mxu0 %v5629
        %5708 = vmatprep.subr.bf16.mxu0 0
        %5709 = vmatpush2.bf16.msra.mxu0 %v5628
        %5710 = vmatprep.subr.bf16.mxu0 0
        %5711 = vmatpush2.bf16.msra.mxu0 %v5627
        %5712 = vmatprep.subr.bf16.mxu0 0
        %5713 = vmatpush2.bf16.msra.mxu0 %v5626
        %5714 = vmatprep.mubr.bf16.mxu0 %v5416
        %5715 = vmatmul.mubr.bf16.gmra.mxu0 %v5415
        %v5716 = vpop.f32.mrf.mxu0
        %v5717 = vadd.f32 %v5488, %v5716
        %v5718 = vpop.f32.mrf.mxu0
        %v5719 = vpop.f32.mrf.mxu0
        %v5720 = vpop.f32.mrf.mxu0
        %5721 = vdwg.mxu0
        %5722 = vmatprep.subr.bf16.mxu0 0
        %5723 = vmatpush1.bf16.msra.mxu0 %v5641
        %5724 = vmatprep.subr.bf16.mxu0 0
        %5725 = vmatpush1.bf16.msra.mxu0 %v5640
        %5726 = vmatprep.subr.bf16.mxu0 0
        %5727 = vmatpush1.bf16.msra.mxu0 %v5639
        %5728 = vmatprep.subr.bf16.mxu0 0
        %5729 = vmatpush1.bf16.msra.mxu0 %v5638
        %5730 = vmatprep.subr.bf16.mxu0 0
        %5731 = vmatpush1.bf16.msra.mxu0 %v5637
        %5732 = vmatprep.subr.bf16.mxu0 0
        %5733 = vmatpush1.bf16.msra.mxu0 %v5636
        %5734 = vmatprep.subr.bf16.mxu0 0
        %5735 = vmatpush1.bf16.msra.mxu0 %v5635
        %5736 = vmatprep.subr.bf16.mxu0 0
        %5737 = vmatpush1.bf16.msra.mxu0 %v5634
        %5738 = vmatprep.subr.bf16.mxu0 0
        %5739 = vmatpush2.bf16.msra.mxu0 %v5649
        %5740 = vmatprep.subr.bf16.mxu0 0
        %5741 = vmatpush2.bf16.msra.mxu0 %v5648
        %5742 = vmatprep.subr.bf16.mxu0 0
        %5743 = vmatpush2.bf16.msra.mxu0 %v5647
        %5744 = vmatprep.subr.bf16.mxu0 0
        %5745 = vmatpush2.bf16.msra.mxu0 %v5646
        %5746 = vmatprep.subr.bf16.mxu0 0
        %5747 = vmatpush2.bf16.msra.mxu0 %v5645
        %5748 = vmatprep.subr.bf16.mxu0 0
        %5749 = vmatpush2.bf16.msra.mxu0 %v5644
        %5750 = vmatprep.subr.bf16.mxu0 0
        %5751 = vmatpush2.bf16.msra.mxu0 %v5643
        %5752 = vmatprep.subr.bf16.mxu0 0
        %5753 = vmatpush2.bf16.msra.mxu0 %v5642
        %5754 = vmatprep.mubr.bf16.mxu0 %v5418
        %5755 = vmatmul.mubr.bf16.gmra.mxu0 %v5417
        %v5756 = vpop.f32.mrf.mxu0
        %v5757 = vadd.f32 %v5717, %v5756
        %v5758 = vpop.f32.mrf.mxu0
        %v5759 = vpop.f32.mrf.mxu0
        %v5760 = vpop.f32.mrf.mxu0
        %5761 = vdwg.mxu0
        %v5762 = vpack.c.bf16 %v5757, %v5757
        %v5763 = vmax.bf16 %v5762, 0
        %v5764 = vld [vmem:[#allocation14] sm:$0xf]
        %v5765 = vld [vmem:[#allocation14 + $0x4] sm:$0xf]
        %v5766 = vld [vmem:[#allocation14 + $0x8] sm:$0xf]
        %v5767 = vld [vmem:[#allocation14 + $0xc] sm:$0xf]
        %v5768 = vld [vmem:[#allocation14 + $0x10] sm:$0xf]
        %v5769 = vld [vmem:[#allocation14 + $0x14] sm:$0xf]
        %v5770 = vld [vmem:[#allocation14 + $0x18] sm:$0xf]
        %v5771 = vld [vmem:[#allocation14 + $0x1c] sm:$0xf]
        %v5772 = vld [vmem:[#allocation14 + $0x20] sm:$0xf]
        %v5773 = vld [vmem:[#allocation14 + $0x24] sm:$0xf]
        %v5774 = vld [vmem:[#allocation14 + $0x28] sm:$0xf]
        %v5775 = vld [vmem:[#allocation14 + $0x2c] sm:$0xf]
        %v5776 = vld [vmem:[#allocation14 + $0x30] sm:$0xf]
        %v5777 = vld [vmem:[#allocation14 + $0x34] sm:$0xf]
        %v5778 = vld [vmem:[#allocation14 + $0x38] sm:$0xf]
        %v5779 = vld [vmem:[#allocation14 + $0x3c] sm:$0xf]
        %v5780 = vld [vmem:[#allocation16] sm:$0x1]
        %v5782 = vlaneseq
        %v5783 = vshrl.u32 %v5782, 7
        %v5784 = vsub.s32 0, %v5783
        %v5785 = vrot.slane %v5780, %v5784
        %v5803 = vunpack.c.l.b16 %v5764
        %v5804 = vunpack.c.l.b16 %v5765
        %v5805 = vunpack.c.l.b16 %v5766
        %v5806 = vunpack.c.l.b16 %v5767
        %v5807 = vunpack.c.l.b16 %v5768
        %v5808 = vunpack.c.l.b16 %v5769
        %v5809 = vunpack.c.l.b16 %v5770
        %v5810 = vunpack.c.l.b16 %v5771
        %v5811 = vunpack.c.l.b16 %v5772
        %v5812 = vunpack.c.l.b16 %v5773
        %v5813 = vunpack.c.l.b16 %v5774
        %v5814 = vunpack.c.l.b16 %v5775
        %v5815 = vunpack.c.l.b16 %v5776
        %v5816 = vunpack.c.l.b16 %v5777
        %v5817 = vunpack.c.l.b16 %v5778
        %v5818 = vunpack.c.l.b16 %v5779
        %v5819 = vpack.c.b16 %v5804, %v5803
        %v5820 = vpack.c.b16 %v5806, %v5805
        %v5821 = vpack.c.b16 %v5808, %v5807
        %v5822 = vpack.c.b16 %v5810, %v5809
        %v5823 = vpack.c.b16 %v5812, %v5811
        %v5824 = vpack.c.b16 %v5814, %v5813
        %v5825 = vpack.c.b16 %v5816, %v5815
        %v5826 = vpack.c.b16 %v5818, %v5817
        %5835 = vmatprep.subr.bf16.mxu0 0
        %5836 = vmatpush1.bf16.msra.mxu0 %v5826
        %5837 = vmatprep.subr.bf16.mxu0 0
        %5838 = vmatpush1.bf16.msra.mxu0 %v5825
        %5839 = vmatprep.subr.bf16.mxu0 0
        %5840 = vmatpush1.bf16.msra.mxu0 %v5824
        %5841 = vmatprep.subr.bf16.mxu0 0
        %5842 = vmatpush1.bf16.msra.mxu0 %v5823
        %5843 = vmatprep.subr.bf16.mxu0 0
        %5844 = vmatpush1.bf16.msra.mxu0 %v5822
        %5845 = vmatprep.subr.bf16.mxu0 0
        %5846 = vmatpush1.bf16.msra.mxu0 %v5821
        %5847 = vmatprep.subr.bf16.mxu0 0
        %5848 = vmatpush1.bf16.msra.mxu0 %v5820
        %5849 = vmatprep.subr.bf16.mxu0 0
        %5850 = vmatpush1.bf16.msra.mxu0 %v5819
        %5851 = vmatprep.subr.bf16.mxu0 0
        %5852 = vmatpush2.bf16.msra.mxu0 0
        %5853 = vmatprep.subr.bf16.mxu0 0
        %5854 = vmatpush2.bf16.msra.mxu0 0
        %5855 = vmatprep.subr.bf16.mxu0 0
        %5856 = vmatpush2.bf16.msra.mxu0 0
        %5857 = vmatprep.subr.bf16.mxu0 0
        %5858 = vmatpush2.bf16.msra.mxu0 0
        %5859 = vmatprep.subr.bf16.mxu0 0
        %5860 = vmatpush2.bf16.msra.mxu0 0
        %5861 = vmatprep.subr.bf16.mxu0 0
        %5862 = vmatpush2.bf16.msra.mxu0 0
        %5863 = vmatprep.subr.bf16.mxu0 0
        %5864 = vmatpush2.bf16.msra.mxu0 0
        %5865 = vmatprep.subr.bf16.mxu0 0
        %5866 = vmatpush2.bf16.msra.mxu0 0
        %5867 = vmatprep.mubr.bf16.mxu0 0
        %5868 = vmatmul.mubr.bf16.gmra.mxu0 %v5763
        %v5869 = vpop.f32.mrf.mxu0
        %v5870 = vadd.f32 %v5785, %v5869
        %v5871 = vpop.f32.mrf.mxu0
        %v5872 = vpop.f32.mrf.mxu0
        %v5873 = vpop.f32.mrf.mxu0
        %5874 = vdwg.mxu0
        %v5875 = vpack.c.bf16 %v5870, %v5870
        %v5876 = vmax.bf16 %v5875, 0
        %v5877 = vld [vmem:[#allocation17] sm:$0xf]
        %v5878 = vld [vmem:[#allocation17 + $0x4] sm:$0xf]
        %v5879 = vld [vmem:[#allocation17 + $0x8] sm:$0xf]
        %v5880 = vld [vmem:[#allocation17 + $0xc] sm:$0xf]
        %v5881 = vld [vmem:[#allocation17 + $0x10] sm:$0xf]
        %v5882 = vld [vmem:[#allocation17 + $0x14] sm:$0xf]
        %v5883 = vld [vmem:[#allocation17 + $0x18] sm:$0xf]
        %v5884 = vld [vmem:[#allocation17 + $0x1c] sm:$0xf]
        %v5885 = vld [vmem:[#allocation17 + $0x20] sm:$0xf]
        %v5886 = vld [vmem:[#allocation17 + $0x24] sm:$0xf]
        %v5887 = vld [vmem:[#allocation17 + $0x28] sm:$0xf]
        %v5888 = vld [vmem:[#allocation17 + $0x2c] sm:$0xf]
        %v5889 = vld [vmem:[#allocation17 + $0x30] sm:$0xf]
        %v5890 = vld [vmem:[#allocation17 + $0x34] sm:$0xf]
        %v5891 = vld [vmem:[#allocation17 + $0x38] sm:$0xf]
        %v5892 = vld [vmem:[#allocation17 + $0x3c] sm:$0xf]
        %v5893 = vld [vmem:[#allocation19] sm:$0x1]
        %v5895 = vlaneseq
        %v5896 = vshrl.u32 %v5895, 7
        %v5897 = vsub.s32 0, %v5896
        %v5898 = vrot.slane %v5893, %v5897
        %v5916 = vunpack.c.l.b16 %v5877
        %v5917 = vunpack.c.l.b16 %v5878
        %v5918 = vunpack.c.l.b16 %v5879
        %v5919 = vunpack.c.l.b16 %v5880
        %v5920 = vunpack.c.l.b16 %v5881
        %v5921 = vunpack.c.l.b16 %v5882
        %v5922 = vunpack.c.l.b16 %v5883
        %v5923 = vunpack.c.l.b16 %v5884
        %v5924 = vunpack.c.l.b16 %v5885
        %v5925 = vunpack.c.l.b16 %v5886
        %v5926 = vunpack.c.l.b16 %v5887
        %v5927 = vunpack.c.l.b16 %v5888
        %v5928 = vunpack.c.l.b16 %v5889
        %v5929 = vunpack.c.l.b16 %v5890
        %v5930 = vunpack.c.l.b16 %v5891
        %v5931 = vunpack.c.l.b16 %v5892
        %v5932 = vpack.c.b16 %v5917, %v5916
        %v5933 = vpack.c.b16 %v5919, %v5918
        %v5934 = vpack.c.b16 %v5921, %v5920
        %v5935 = vpack.c.b16 %v5923, %v5922
        %v5936 = vpack.c.b16 %v5925, %v5924
        %v5937 = vpack.c.b16 %v5927, %v5926
        %v5938 = vpack.c.b16 %v5929, %v5928
        %v5939 = vpack.c.b16 %v5931, %v5930
        %5948 = vmatprep.subr.bf16.mxu0 0
        %5949 = vmatpush1.bf16.msra.mxu0 %v5939
        %5950 = vmatprep.subr.bf16.mxu0 0
        %5951 = vmatpush1.bf16.msra.mxu0 %v5938
        %5952 = vmatprep.subr.bf16.mxu0 0
        %5953 = vmatpush1.bf16.msra.mxu0 %v5937
        %5954 = vmatprep.subr.bf16.mxu0 0
        %5955 = vmatpush1.bf16.msra.mxu0 %v5936
        %5956 = vmatprep.subr.bf16.mxu0 0
        %5957 = vmatpush1.bf16.msra.mxu0 %v5935
        %5958 = vmatprep.subr.bf16.mxu0 0
        %5959 = vmatpush1.bf16.msra.mxu0 %v5934
        %5960 = vmatprep.subr.bf16.mxu0 0
        %5961 = vmatpush1.bf16.msra.mxu0 %v5933
        %5962 = vmatprep.subr.bf16.mxu0 0
        %5963 = vmatpush1.bf16.msra.mxu0 %v5932
        %5964 = vmatprep.subr.bf16.mxu0 0
        %5965 = vmatpush2.bf16.msra.mxu0 0
        %5966 = vmatprep.subr.bf16.mxu0 0
        %5967 = vmatpush2.bf16.msra.mxu0 0
        %5968 = vmatprep.subr.bf16.mxu0 0
        %5969 = vmatpush2.bf16.msra.mxu0 0
        %5970 = vmatprep.subr.bf16.mxu0 0
        %5971 = vmatpush2.bf16.msra.mxu0 0
        %5972 = vmatprep.subr.bf16.mxu0 0
        %5973 = vmatpush2.bf16.msra.mxu0 0
        %5974 = vmatprep.subr.bf16.mxu0 0
        %5975 = vmatpush2.bf16.msra.mxu0 0
        %5976 = vmatprep.subr.bf16.mxu0 0
        %5977 = vmatpush2.bf16.msra.mxu0 0
        %5978 = vmatprep.subr.bf16.mxu0 0
        %5979 = vmatpush2.bf16.msra.mxu0 0
        %5980 = vmatprep.mubr.bf16.mxu0 0
        %5981 = vmatmul.mubr.bf16.gmra.mxu0 %v5876
        %v5982 = vpop.f32.mrf.mxu0
        %v5983 = vadd.f32 %v5898, %v5982
        %v5984 = vpop.f32.mrf.mxu0
        %v5985 = vpop.f32.mrf.mxu0
        %v5986 = vpop.f32.mrf.mxu0
        %5987 = vdwg.mxu0
        %5988 = vmax.xlane.f32.xlu0 %v5983
        %v5989 = vpop.xlane.xlu0 %5988
        %v5990 = vsub.f32 %v5983, %v5989
        %v5991 = vmul.f32 %v5990, 1.442695
        %v5992 = vpow.pop %v5991
        %5993 = vadd.xlane.f32.xlu0 %v5992
        %v5994 = vpop.xlane.xlu0 %5993
        %v5995 = vrcp.pop %v5994
        %v5996 = vmul.f32 %v5992, %v5995
        %5997 = vst [vmem:[%s536] sm:$0xff] %v5996
        %s5998 = sand.u32 %s277, 1
        %s5999 = scalar_lea.sflag [#allocation4], %s5998
        %s6000 = sand.u32 %s277, 1
        %s6001 = smul.addr %s6000, 8
        %s6002 = scalar_lea.vmem [#allocation20], %s6001
        // Predicated region
        $region109: #{tpu_custom_call.1} parent=63 // pred_check
          %p6003 = pneg %p287
        $region110: #{tpu_custom_call.1} parent=63 // pred_check_branch
          %6005 = sbr.rel (%p6003) target = $region112
        $region111: #{tpu_custom_call.1} parent=63 // pred_region
          %s6007 = ssub.s32 128, 128
          %6008 = vsyncadd %s5999, %s6007
          %s6009 = smul.addr %s33, 128
          %s6010 = scalar_lea.hbm %s11, %s6009
          %s6012 = sshll.u32 %s6002, 4
          %s6013 = int_to_ptr.vmem [resolvable:$true] %s6012
          %6015 = dma.vmem_to_hbm [thread:$0]  %s6013, 128, %s6010, %s5999
        $region112: #{tpu_custom_call.1} parent=63 // pred_fallthru
          _
      $region64: #{tpu_custom_call.1} parent=5 // pred_fallthru
        _
      %p6016 = scmp.le.s32.totalorder 2, %s28
      // Predicated region
      $region113: #{tpu_custom_call.1} parent=5 // pred_check
        %p6017 = pneg %p6016
      $region114: #{tpu_custom_call.1} parent=5 // pred_check_branch
        %6019 = sbr.rel (%p6017) target = $region116
      $region115: #{tpu_custom_call.1} parent=5 // pred_region
        %s6020 = ssub.s32 %s28, 2
        // Predicated region
        $region117: #{tpu_custom_call.1} parent=115 // pred_check
          %p6021 = pneg %p293
        $region118: #{tpu_custom_call.1} parent=115 // pred_check_branch
          %6023 = sbr.rel (%p6021) target = $region120
        $region119: #{tpu_custom_call.1} parent=115 // pred_region
          %s6024 = sand.u32 %s278, 1
          %s6025 = scalar_lea.sflag [#allocation4], %s6024
          %s6026 = sand.u32 %s278, 1
          %s6027 = smul.addr %s6026, 8
          %s6028 = scalar_lea.vmem [#allocation20], %s6027
          %6029 = dma.done %s6025, 128
        $region120: #{tpu_custom_call.1} parent=115 // pred_fallthru
          _
      $region116: #{tpu_custom_call.1} parent=5 // pred_fallthru
        _
    $region6: #{tpu_custom_call.1} parent=1 // loop_footer
      %s32 = sadd.s32 1, %s28
    $region7: #{tpu_custom_call.1} parent=1 // loop_footer_branch
      %27 = sbr.rel target = $region3
    $region8: #{tpu_custom_call.1} parent=1 // loop_exit
      _
    %6030 = vsyncpa [#allocation3], 1
    %s6031 = scalar_lea.sflag [#allocation3], 1
    %6032 = vsyncpa %s6031, 1
    %6033 = vsyncpa [#allocation6], 1
    %6034 = vsyncpa [#allocation9], 1
    %6035 = vsyncpa [#allocation12], 1
    %6036 = vsyncpa [#allocation15], 1
    %6037 = vsyncpa [#allocation18], 1
    %6038 = vsyncpa [#allocation4], 1
    %s6039 = scalar_lea.sflag [#allocation4], 1
    %6040 = vsyncpa %s6039, 1

</llo_original>
